<compile_context>
chip_gen: v5e
topology: v5e:2x2
jax: 0.10.0
libtpu: 0.0.40
codegen_flags: <defaults>
</compile_context>

<pallas_src>
import functools

import jax
import jax.numpy as jnp
import numpy as np
from jax import lax
from jax.experimental import pallas as pl
from jax.experimental.pallas import tpu as pltpu

LANE = 128


def _round_up(x, m):
    return (x + m - 1) // m * m


# ----------------------------------------------------------------------------
# Pallas kernel
# ----------------------------------------------------------------------------
def _depthwise3x3(xin, w, dil, l_out, w_out):
    """VALID depthwise 3x3 over a pre-padded strip.

    xin: (rows, w_out + 2*dil, C), w: (9, C) -> (l_out, w_out, C).
    Three column-shifted copies are materialized once and reused across the
    three row taps (row slices are on a non-minor dim and are cheap).
    """
    c = xin.shape[-1]
    acc = jnp.zeros((l_out, w_out, c), jnp.float32)
    for kj in range(3):
        col = xin[:, kj * dil:kj * dil + w_out, :]
        for ki in range(3):
            acc = acc + col[ki * dil:ki * dil + l_out, :, :] * w[ki * 3 + kj, :]
    return acc


def _row_mask(start, length, h):
    """Boolean (length,1,1) mask: True where global row index is inside [0,h)."""
    rows = start + lax.broadcasted_iota(jnp.int32, (length, 1, 1), 0)
    return (rows >= 0) & (rows < h)


def _blocka_fused_kernel(x_ref, dw1_ref, w1_ref, b1_ref,
                         dw2_ref, w2_ref, b2_ref,
                         dw3_ref, w3_ref, b3_ref,
                         wsk_ref, bsk_ref,
                         o_ref,
                         xpad_ref, h1p_ref, h2p_ref,
                         *, H, W, TH, CP, dil, HALO, L0, L1, L2):
    r = pl.program_id(1)
    row0 = pl.multiple_of(r * TH, TH)

    # Zero-padded ReLU(x) staged in a VMEM scratch (the x block is resident
    # across row tiles; this is VMEM-only work, no HBM padding pass).
    xpad_ref[...] = jnp.zeros((H + 2 * HALO, W + 2 * dil, CP), jnp.float32)
    xpad_ref[HALO:HALO + H, dil:dil + W, :] = jnp.maximum(x_ref[0], 0.0)

    # ---- stage 1: ReLU -> dw3x3(dil) -> folded BN/pointwise -----------------
    s1 = xpad_ref[pl.ds(row0, L0), :, :]
    a1 = _depthwise3x3(s1, dw1_ref[...], dil, L1, W)
    h1 = jnp.dot(a1.reshape(L1 * W, CP), w1_ref[...],
                 preferred_element_type=jnp.float32) + b1_ref[...]

    # ---- stage 2 -------------------------------------------------------------
    # Halo rows that fall outside the image must be zero (SAME padding of the
    # next depthwise), so mask them before feeding stage 2.
    m1 = _row_mask(row0 - (1 + dil), L1, H)
    h1r = jnp.where(m1, jnp.maximum(h1.reshape(L1, W, CP), 0.0), 0.0)
    h1p_ref[...] = jnp.zeros((L1, W + 2 * dil, CP), jnp.float32)
    h1p_ref[:, dil:dil + W, :] = h1r
    a2 = _depthwise3x3(h1p_ref[...], dw2_ref[...], dil, L2, W)
    h2 = jnp.dot(a2.reshape(L2 * W, CP), w2_ref[...],
                 preferred_element_type=jnp.float32) + b2_ref[...]

    # ---- stage 3 (dilation is always 1 for the last sepconv) ----------------
    m2 = _row_mask(row0 - 1, L2, H)
    h2r = jnp.where(m2, jnp.maximum(h2.reshape(L2, W, CP), 0.0), 0.0)
    h2p_ref[...] = jnp.zeros((L2, W + 2, CP), jnp.float32)
    h2p_ref[:, 1:1 + W, :] = h2r
    a3 = _depthwise3x3(h2p_ref[...], dw3_ref[...], 1, TH, W)
    h3 = jnp.dot(a3.reshape(TH * W, CP), w3_ref[...],
                 preferred_element_type=jnp.float32) + b3_ref[...]

    # ---- skip path (1x1 conv + folded BN) and residual add ------------------
    xs = x_ref[0, pl.ds(row0, TH), :, :].reshape(TH * W, CP)
    sk = jnp.dot(xs, wsk_ref[...],
                 preferred_element_type=jnp.float32) + bsk_ref[...]
    o_ref[0] = h3 + sk


# ----------------------------------------------------------------------------
# Parameter folding (eval-mode BN -> pointwise weight/bias) + padding to lanes
# ----------------------------------------------------------------------------
def _pad2d(a, rows, cols):
    return jnp.pad(a, ((0, rows - a.shape[0]), (0, cols - a.shape[1])))


def _pad1d(a, n):
    return jnp.pad(a, (0, n - a.shape[0]))


def _fold_stage(dw, dwbn, pw, outbn, cp):
    """Fold the depthwise-BN and output-BN of one stage into W/bias.

    Reference math:  y = ((acc * s_dw + b_dw) @ pw) * s_o + b_o
    Folded:          y = acc @ (s_dw[:,None] * pw * s_o[None,:])
                           + ((b_dw @ pw) * s_o + b_o)
    """
    s_dw, b_dw = dwbn
    s_o, b_o = outbn
    w_folded = (s_dw[:, None] * pw) * s_o[None, :]
    b_folded = (b_dw @ pw) * s_o + b_o
    return (_pad2d(dw, 9, cp), _pad2d(w_folded, cp, cp),
            _pad1d(b_folded, cp).reshape(1, cp))


def fold_blocka_params(p, cp):
    dw1, w1, b1 = _fold_stage(p["dw1"], p["dwbn1"], p["pw1"], p["bn1"], cp)
    dw2, w2, b2 = _fold_stage(p["dw2"], p["dwbn2"], p["pw2"], p["bn2"], cp)
    dw3, w3, b3 = _fold_stage(p["dw3"], p["dwbn3"], p["pw3"], p["bn3"], cp)
    s_sk, b_sk = p["skipbn"]
    wsk = _pad2d(p["skip_w"] * s_sk[None, :], cp, cp)
    bsk = _pad1d(b_sk, cp).reshape(1, cp)
    return dw1, w1, b1, dw2, w2, b2, dw3, w3, b3, wsk, bsk


# ----------------------------------------------------------------------------
# Wrapper: single fused pallas_call, grid = (batch, row_tiles)
# ----------------------------------------------------------------------------
def blocka_forward(x, p, dilation=1, row_tile=8):
    """Fused BlockA forward (stride=1, start_with_relu=True, skip conv)."""
    N, H, W, Cin = x.shape
    inter = p["pw1"].shape[1]
    Cout = p["pw3"].shape[1]
    CP = _round_up(max(Cin, inter, Cout), LANE)

    TH = row_tile if (H % row_tile == 0) else H
    assert (TH * W) % 8 == 0, "output row tile must be sublane aligned"

    HALO = 1 + 2 * dilation          # rows of input halo needed by the 3 stages
    L0 = TH + 2 * HALO               # input-strip rows for stage 1
    L1 = L0 - 2 * dilation           # stage-1 output rows
    L2 = L1 - 2 * dilation           # stage-2 output rows

    # One-time layout prep: pad channels to the 128-lane width (a no-op when
    # the real channel count is already a multiple of 128, as in the full net).
    xc = x if Cin == CP else jnp.pad(x, ((0, 0), (0, 0), (0, 0), (0, CP - Cin)))
    dw1, w1, b1, dw2, w2, b2, dw3, w3, b3, wsk, bsk = fold_blocka_params(p, CP)

    kernel = functools.partial(_blocka_fused_kernel, H=H, W=W, TH=TH, CP=CP,
                               dil=dilation, HALO=HALO, L0=L0, L1=L1, L2=L2)
    wmap = lambda n, r: (0, 0)
    out = pl.pallas_call(
        kernel,
        out_shape=jax.ShapeDtypeStruct((N, H * W, CP), jnp.float32),
        grid=(N, H // TH),
        in_specs=[
            pl.BlockSpec((1, H, W, CP), lambda n, r: (n, 0, 0, 0)),   # x (resident over r)
            pl.BlockSpec((9, CP), wmap), pl.BlockSpec((CP, CP), wmap),
            pl.BlockSpec((1, CP), wmap),                               # stage 1
            pl.BlockSpec((9, CP), wmap), pl.BlockSpec((CP, CP), wmap),
            pl.BlockSpec((1, CP), wmap),                               # stage 2
            pl.BlockSpec((9, CP), wmap), pl.BlockSpec((CP, CP), wmap),
            pl.BlockSpec((1, CP), wmap),                               # stage 3
            pl.BlockSpec((CP, CP), wmap), pl.BlockSpec((1, CP), wmap), # skip
        ],
        out_specs=pl.BlockSpec((1, TH * W, CP), lambda n, r: (n, r, 0)),
        scratch_shapes=[
            pltpu.VMEM((H + 2 * HALO, W + 2 * dilation, CP), jnp.float32),
            pltpu.VMEM((L1, W + 2 * dilation, CP), jnp.float32),
            pltpu.VMEM((L2, W + 2, CP), jnp.float32),
        ],
        compiler_params=pltpu.CompilerParams(
            dimension_semantics=("parallel", "parallel"),
            vmem_limit_bytes=48 * 1024 * 1024),
    )(xc, dw1, w1, b1, dw2, w2, b2, dw3, w3, b3, wsk, bsk)

    # Lane-dense (H*W, 128) kernel output -> NHWC, drop channel padding.
    return out.reshape(N, H, W, CP)[..., :Cout]


# ----------------------------------------------------------------------------
# Deterministic parameter construction (same as the previously-verified version)
# ----------------------------------------------------------------------------
def fold_bn(gamma, beta, mean, var, eps=1e-5):
    scale = gamma / jnp.sqrt(var + eps)
    shift = beta - mean * scale
    return scale, shift


def make_bn_params(key, c):
    k1, k2, k3, k4 = jax.random.split(key, 4)
    gamma = 1.0 + 0.1 * jax.random.normal(k1, (c,), jnp.float32)
    beta = 0.1 * jax.random.normal(k2, (c,), jnp.float32)
    mean = 0.1 * jax.random.normal(k3, (c,), jnp.float32)
    var = jnp.abs(1.0 + 0.1 * jax.random.normal(k4, (c,), jnp.float32))
    return fold_bn(gamma, beta, mean, var)


def make_blocka_params(key, in_channels, out_channels):
    inter = out_channels // 4
    keys = jax.random.split(key, 16)
    p = {}
    p["dw1"] = 0.2 * jax.random.normal(keys[0], (9, in_channels), jnp.float32)
    p["dwbn1"] = make_bn_params(keys[1], in_channels)
    p["pw1"] = 0.2 * jax.random.normal(keys[2], (in_channels, inter), jnp.float32)
    p["bn1"] = make_bn_params(keys[3], inter)
    p["dw2"] = 0.2 * jax.random.normal(keys[4], (9, inter), jnp.float32)
    p["dwbn2"] = make_bn_params(keys[5], inter)
    p["pw2"] = 0.2 * jax.random.normal(keys[6], (inter, inter), jnp.float32)
    p["bn2"] = make_bn_params(keys[7], inter)
    p["dw3"] = 0.2 * jax.random.normal(keys[8], (9, inter), jnp.float32)
    p["dwbn3"] = make_bn_params(keys[9], inter)
    p["pw3"] = 0.2 * jax.random.normal(keys[10], (inter, out_channels), jnp.float32)
    p["bn3"] = make_bn_params(keys[11], out_channels)
    p["skip_w"] = 0.2 * jax.random.normal(keys[12], (in_channels, out_channels),
                                          jnp.float32)
    p["skipbn"] = make_bn_params(keys[13], out_channels)
    return p


# ----------------------------------------------------------------------------
# Pure-JAX reference (unfolded math, for correctness check)
# ----------------------------------------------------------------------------
def _ref_stage(x, dw, dws, dwb, pw, os_, ob, dilation):
    N, H, W, C = x.shape
    pad = dilation
    xr = jnp.maximum(x, 0.0)
    xp = jnp.pad(xr, ((0, 0), (pad, pad), (pad, pad), (0, 0)))
    acc = jnp.zeros((N, H, W, C), jnp.float32)
    for ki in range(3):
        for kj in range(3):
            acc = acc + xp[:, ki * dilation:ki * dilation + H,
                           kj * dilation:kj * dilation + W, :] * dw[ki * 3 + kj]
    z = acc * dws + dwb
    y = jnp.einsum("nhwc,co->nhwo", z, pw)
    return y * os_ + ob


def blocka_reference(x, p, dilation=1):
    y = _ref_stage(x, p["dw1"], *p["dwbn1"], p["pw1"], *p["bn1"], dilation)
    y = _ref_stage(y, p["dw2"], *p["dwbn2"], p["pw2"], *p["bn2"], dilation)
    y = _ref_stage(y, p["dw3"], *p["dwbn3"], p["pw3"], *p["bn3"], 1)
    skip = jnp.einsum("nhwc,co->nhwo", x, p["skip_w"])
    skip = skip * p["skipbn"][0] + p["skipbn"][1]
    return y + skip


# ----------------------------------------------------------------------------
if __name__ == "__main__":
    N, H, W = 2, 16, 16
    in_channels, out_channels = 16, 32   # out != in -> skip conv path exercised
    dilation = 1

    key = jax.random.PRNGKey(0)
    kx, kp = jax.random.split(key)
    x = jax.random.normal(kx, (N, H, W, in_channels), jnp.float32)  # NHWC
    params = make_blocka_params(kp, in_channels, out_channels)

    out = jax.block_until_ready(blocka_forward(x, params, dilation))
    ref = jax.block_until_ready(blocka_reference(x, params, dilation))
    np.testing.assert_allclose(np.asarray(out), np.asarray(ref),
                               rtol=2e-4, atol=2e-4)

    print("KERNEL_OK")
</pallas_src>

<mosaic_0001>
module attributes {stable_mosaic.version = 11 : i64} {
  func.func @_blocka_fused_kernel(%arg0: i32, %arg1: i32, %arg2: memref<1x16x16x128xf32, #tpu.memory_space<vmem>>, %arg3: memref<9x128xf32, #tpu.memory_space<vmem>>, %arg4: memref<128x128xf32, #tpu.memory_space<vmem>>, %arg5: memref<1x128xf32, #tpu.memory_space<vmem>>, %arg6: memref<9x128xf32, #tpu.memory_space<vmem>>, %arg7: memref<128x128xf32, #tpu.memory_space<vmem>>, %arg8: memref<1x128xf32, #tpu.memory_space<vmem>>, %arg9: memref<9x128xf32, #tpu.memory_space<vmem>>, %arg10: memref<128x128xf32, #tpu.memory_space<vmem>>, %arg11: memref<1x128xf32, #tpu.memory_space<vmem>>, %arg12: memref<128x128xf32, #tpu.memory_space<vmem>>, %arg13: memref<1x128xf32, #tpu.memory_space<vmem>>, %arg14: memref<1x128x128xf32, #tpu.memory_space<vmem>>, %arg15: memref<22x18x128xf32, #tpu.memory_space<vmem>>, %arg16: memref<12x18x128xf32, #tpu.memory_space<vmem>>, %arg17: memref<10x18x128xf32, #tpu.memory_space<vmem>>) attributes {dimension_semantics = [#tpu.dimension_semantics<parallel>, #tpu.dimension_semantics<parallel>], iteration_bounds = array<i64: 2, 2>, scalar_prefetch = 0 : i64, scratch_operands = 3 : i64, tpu.core_type = #tpu.core_type<tc>, window_params = [{transform_indices = @transform_0, window_bounds = array<i64: 1, 16, 16, 128>}, {pipeline_mode = #tpu.pipeline_mode<synchronous>, transform_indices = @transform_1, window_bounds = array<i64: 9, 128>}, {pipeline_mode = #tpu.pipeline_mode<synchronous>, transform_indices = @transform_2, window_bounds = array<i64: 128, 128>}, {pipeline_mode = #tpu.pipeline_mode<synchronous>, transform_indices = @transform_3, window_bounds = array<i64: 1, 128>}, {pipeline_mode = #tpu.pipeline_mode<synchronous>, transform_indices = @transform_4, window_bounds = array<i64: 9, 128>}, {pipeline_mode = #tpu.pipeline_mode<synchronous>, transform_indices = @transform_5, window_bounds = array<i64: 128, 128>}, {pipeline_mode = #tpu.pipeline_mode<synchronous>, transform_indices = @transform_6, window_bounds = array<i64: 1, 128>}, {pipeline_mode = #tpu.pipeline_mode<synchronous>, transform_indices = @transform_7, window_bounds = array<i64: 9, 128>}, {pipeline_mode = #tpu.pipeline_mode<synchronous>, transform_indices = @transform_8, window_bounds = array<i64: 128, 128>}, {pipeline_mode = #tpu.pipeline_mode<synchronous>, transform_indices = @transform_9, window_bounds = array<i64: 1, 128>}, {pipeline_mode = #tpu.pipeline_mode<synchronous>, transform_indices = @transform_10, window_bounds = array<i64: 128, 128>}, {pipeline_mode = #tpu.pipeline_mode<synchronous>, transform_indices = @transform_11, window_bounds = array<i64: 1, 128>}, {transform_indices = @transform_12, window_bounds = array<i64: 1, 128, 128>}]} {
    %c8_i32 = arith.constant 8 : i32
    %0 = arith.muli %arg1, %c8_i32 : i32
    %1 = tpu.assume_multiple %0, 8 : i32
    %cst = arith.constant 0.000000e+00 : f32
    %2 = vector.broadcast %cst : f32 to vector<22x18x128xf32>
    %c0 = arith.constant 0 : index
    %c0_0 = arith.constant 0 : index
    %c0_1 = arith.constant 0 : index
    %3 = vector.load %arg15[%c0, %c0_0, %c0_1] : memref<22x18x128xf32, #tpu.memory_space<vmem>>, vector<22x18x128xf32>
    tpu.vector_store %arg15[%c0, %c0_0, %c0_1], %2 {strides = array<i32>} : memref<22x18x128xf32, #tpu.memory_space<vmem>>, vector<22x18x128xf32>,
    %c0_2 = arith.constant 0 : index
    %c0_3 = arith.constant 0 : index
    %c0_4 = arith.constant 0 : index
    %c0_5 = arith.constant 0 : index
    %4 = vector.load %arg2[%c0_2, %c0_3, %c0_4, %c0_5] : memref<1x16x16x128xf32, #tpu.memory_space<vmem>>, vector<1x16x16x128xf32>
    %5 = vector.shape_cast %4 : vector<1x16x16x128xf32> to vector<16x16x128xf32>
    %cst_6 = arith.constant 0.000000e+00 : f32
    %6 = vector.broadcast %cst_6 : f32 to vector<16x16x128xf32>
    %7 = arith.maximumf %5, %6 : vector<16x16x128xf32>
    %c3 = arith.constant 3 : index
    %c1 = arith.constant 1 : index
    %c0_7 = arith.constant 0 : index
    %8 = vector.load %arg15[%c3, %c1, %c0_7] : memref<22x18x128xf32, #tpu.memory_space<vmem>>, vector<16x16x128xf32>
    tpu.vector_store %arg15[%c3, %c1, %c0_7], %7 {strides = array<i32>} : memref<22x18x128xf32, #tpu.memory_space<vmem>>, vector<16x16x128xf32>,
    %9 = arith.index_cast %1 : i32 to index
    %c0_8 = arith.constant 0 : index
    %c0_9 = arith.constant 0 : index
    %10 = vector.load %arg15[%9, %c0_8, %c0_9] : memref<22x18x128xf32, #tpu.memory_space<vmem>>, vector<14x18x128xf32>
    %c0_10 = arith.constant 0 : index
    %c0_11 = arith.constant 0 : index
    %11 = vector.load %arg3[%c0_10, %c0_11] : memref<9x128xf32, #tpu.memory_space<vmem>>, vector<9x128xf32>
    %cst_12 = arith.constant 0.000000e+00 : f32
    %12 = vector.broadcast %cst_12 : f32 to vector<12x16x128xf32>
    %13 = vector.extract_strided_slice %10 {offsets = [0, 0, 0], sizes = [14, 16, 128], strides = [1, 1, 1]} : vector<14x18x128xf32> to vector<14x16x128xf32>
    %14 = vector.extract_strided_slice %13 {offsets = [0, 0, 0], sizes = [12, 16, 128], strides = [1, 1, 1]} : vector<14x16x128xf32> to vector<12x16x128xf32>
    %15 = vector.extract_strided_slice %11 {offsets = [0, 0], sizes = [1, 128], strides = [1, 1]} : vector<9x128xf32> to vector<1x128xf32>
    %16 = vector.shape_cast %15 : vector<1x128xf32> to vector<128xf32>
    %17 = vector.shape_cast %16 : vector<128xf32> to vector<1x1x128xf32>
    %18 = vector.broadcast %17 : vector<1x1x128xf32> to vector<12x16x128xf32>
    %19 = arith.mulf %14, %18 : vector<12x16x128xf32>
    %20 = arith.addf %12, %19 : vector<12x16x128xf32>
    %21 = vector.extract_strided_slice %13 {offsets = [1, 0, 0], sizes = [12, 16, 128], strides = [1, 1, 1]} : vector<14x16x128xf32> to vector<12x16x128xf32>
    %22 = vector.extract_strided_slice %11 {offsets = [3, 0], sizes = [1, 128], strides = [1, 1]} : vector<9x128xf32> to vector<1x128xf32>
    %23 = vector.shape_cast %22 : vector<1x128xf32> to vector<128xf32>
    %24 = vector.shape_cast %23 : vector<128xf32> to vector<1x1x128xf32>
    %25 = vector.broadcast %24 : vector<1x1x128xf32> to vector<12x16x128xf32>
    %26 = arith.mulf %21, %25 : vector<12x16x128xf32>
    %27 = arith.addf %20, %26 : vector<12x16x128xf32>
    %28 = vector.extract_strided_slice %13 {offsets = [2, 0, 0], sizes = [12, 16, 128], strides = [1, 1, 1]} : vector<14x16x128xf32> to vector<12x16x128xf32>
    %29 = vector.extract_strided_slice %11 {offsets = [6, 0], sizes = [1, 128], strides = [1, 1]} : vector<9x128xf32> to vector<1x128xf32>
    %30 = vector.shape_cast %29 : vector<1x128xf32> to vector<128xf32>
    %31 = vector.shape_cast %30 : vector<128xf32> to vector<1x1x128xf32>
    %32 = vector.broadcast %31 : vector<1x1x128xf32> to vector<12x16x128xf32>
    %33 = arith.mulf %28, %32 : vector<12x16x128xf32>
    %34 = arith.addf %27, %33 : vector<12x16x128xf32>
    %35 = vector.extract_strided_slice %10 {offsets = [0, 1, 0], sizes = [14, 16, 128], strides = [1, 1, 1]} : vector<14x18x128xf32> to vector<14x16x128xf32>
    %36 = vector.extract_strided_slice %35 {offsets = [0, 0, 0], sizes = [12, 16, 128], strides = [1, 1, 1]} : vector<14x16x128xf32> to vector<12x16x128xf32>
    %37 = vector.extract_strided_slice %11 {offsets = [1, 0], sizes = [1, 128], strides = [1, 1]} : vector<9x128xf32> to vector<1x128xf32>
    %38 = vector.shape_cast %37 : vector<1x128xf32> to vector<128xf32>
    %39 = vector.shape_cast %38 : vector<128xf32> to vector<1x1x128xf32>
    %40 = vector.broadcast %39 : vector<1x1x128xf32> to vector<12x16x128xf32>
    %41 = arith.mulf %36, %40 : vector<12x16x128xf32>
    %42 = arith.addf %34, %41 : vector<12x16x128xf32>
    %43 = vector.extract_strided_slice %35 {offsets = [1, 0, 0], sizes = [12, 16, 128], strides = [1, 1, 1]} : vector<14x16x128xf32> to vector<12x16x128xf32>
    %44 = vector.extract_strided_slice %11 {offsets = [4, 0], sizes = [1, 128], strides = [1, 1]} : vector<9x128xf32> to vector<1x128xf32>
    %45 = vector.shape_cast %44 : vector<1x128xf32> to vector<128xf32>
    %46 = vector.shape_cast %45 : vector<128xf32> to vector<1x1x128xf32>
    %47 = vector.broadcast %46 : vector<1x1x128xf32> to vector<12x16x128xf32>
    %48 = arith.mulf %43, %47 : vector<12x16x128xf32>
    %49 = arith.addf %42, %48 : vector<12x16x128xf32>
    %50 = vector.extract_strided_slice %35 {offsets = [2, 0, 0], sizes = [12, 16, 128], strides = [1, 1, 1]} : vector<14x16x128xf32> to vector<12x16x128xf32>
    %51 = vector.extract_strided_slice %11 {offsets = [7, 0], sizes = [1, 128], strides = [1, 1]} : vector<9x128xf32> to vector<1x128xf32>
    %52 = vector.shape_cast %51 : vector<1x128xf32> to vector<128xf32>
    %53 = vector.shape_cast %52 : vector<128xf32> to vector<1x1x128xf32>
    %54 = vector.broadcast %53 : vector<1x1x128xf32> to vector<12x16x128xf32>
    %55 = arith.mulf %50, %54 : vector<12x16x128xf32>
    %56 = arith.addf %49, %55 : vector<12x16x128xf32>
    %57 = vector.extract_strided_slice %10 {offsets = [0, 2, 0], sizes = [14, 16, 128], strides = [1, 1, 1]} : vector<14x18x128xf32> to vector<14x16x128xf32>
    %58 = vector.extract_strided_slice %57 {offsets = [0, 0, 0], sizes = [12, 16, 128], strides = [1, 1, 1]} : vector<14x16x128xf32> to vector<12x16x128xf32>
    %59 = vector.extract_strided_slice %11 {offsets = [2, 0], sizes = [1, 128], strides = [1, 1]} : vector<9x128xf32> to vector<1x128xf32>
    %60 = vector.shape_cast %59 : vector<1x128xf32> to vector<128xf32>
    %61 = vector.shape_cast %60 : vector<128xf32> to vector<1x1x128xf32>
    %62 = vector.broadcast %61 : vector<1x1x128xf32> to vector<12x16x128xf32>
    %63 = arith.mulf %58, %62 : vector<12x16x128xf32>
    %64 = arith.addf %56, %63 : vector<12x16x128xf32>
    %65 = vector.extract_strided_slice %57 {offsets = [1, 0, 0], sizes = [12, 16, 128], strides = [1, 1, 1]} : vector<14x16x128xf32> to vector<12x16x128xf32>
    %66 = vector.extract_strided_slice %11 {offsets = [5, 0], sizes = [1, 128], strides = [1, 1]} : vector<9x128xf32> to vector<1x128xf32>
    %67 = vector.shape_cast %66 : vector<1x128xf32> to vector<128xf32>
    %68 = vector.shape_cast %67 : vector<128xf32> to vector<1x1x128xf32>
    %69 = vector.broadcast %68 : vector<1x1x128xf32> to vector<12x16x128xf32>
    %70 = arith.mulf %65, %69 : vector<12x16x128xf32>
    %71 = arith.addf %64, %70 : vector<12x16x128xf32>
    %72 = vector.extract_strided_slice %57 {offsets = [2, 0, 0], sizes = [12, 16, 128], strides = [1, 1, 1]} : vector<14x16x128xf32> to vector<12x16x128xf32>
    %73 = vector.extract_strided_slice %11 {offsets = [8, 0], sizes = [1, 128], strides = [1, 1]} : vector<9x128xf32> to vector<1x128xf32>
    %74 = vector.shape_cast %73 : vector<1x128xf32> to vector<128xf32>
    %75 = vector.shape_cast %74 : vector<128xf32> to vector<1x1x128xf32>
    %76 = vector.broadcast %75 : vector<1x1x128xf32> to vector<12x16x128xf32>
    %77 = arith.mulf %72, %76 : vector<12x16x128xf32>
    %78 = arith.addf %71, %77 : vector<12x16x128xf32>
    %79 = vector.shape_cast %78 : vector<12x16x128xf32> to vector<192x128xf32>
    %c0_13 = arith.constant 0 : index
    %c0_14 = arith.constant 0 : index
    %80 = vector.load %arg4[%c0_13, %c0_14] : memref<128x128xf32, #tpu.memory_space<vmem>>, vector<128x128xf32>
    %cst_15 = arith.constant dense<0.000000e+00> : vector<192x128xf32>
    %81 = tpu.matmul %79, %80, %cst_15 {dimension_numbers = #tpu.dot_dimension_numbers<[1], [0], [0], [1], [0, 0, 1, 1], [], []>} : vector<192x128xf32>, vector<128x128xf32>, vector<192x128xf32> -> vector<192x128xf32>
    %c0_16 = arith.constant 0 : index
    %c0_17 = arith.constant 0 : index
    %82 = vector.load %arg5[%c0_16, %c0_17] : memref<1x128xf32, #tpu.memory_space<vmem>>, vector<1x128xf32>
    %83 = vector.broadcast %82 : vector<1x128xf32> to vector<192x128xf32>
    %84 = arith.addf %81, %83 : vector<192x128xf32>
    %c2_i32 = arith.constant 2 : i32
    %85 = arith.subi %1, %c2_i32 : i32
    %86 = tpu.iota {dimensions = array<i32: 0>} : vector<12x1x1xi32>
    %87 = vector.broadcast %85 : i32 to vector<12x1x1xi32>
    %88 = arith.addi %87, %86 : vector<12x1x1xi32>
    %c0_i32 = arith.constant 0 : i32
    %89 = vector.broadcast %c0_i32 : i32 to vector<12x1x1xi32>
    %90 = arith.cmpi sge, %88, %89 : vector<12x1x1xi32>
    %c16_i32 = arith.constant 16 : i32
    %91 = vector.broadcast %c16_i32 : i32 to vector<12x1x1xi32>
    %92 = arith.cmpi slt, %88, %91 : vector<12x1x1xi32>
    %93 = arith.andi %90, %92 : vector<12x1x1xi1>
    %94 = vector.shape_cast %84 : vector<192x128xf32> to vector<12x16x128xf32>
    %cst_18 = arith.constant 0.000000e+00 : f32
    %95 = vector.broadcast %cst_18 : f32 to vector<12x16x128xf32>
    %96 = arith.maximumf %94, %95 : vector<12x16x128xf32>
    %cst_19 = arith.constant 0.000000e+00 : f32
    %97 = vector.shape_cast %93 : vector<12x1x1xi1> to vector<12x1x1xi1>
    %98 = vector.broadcast %97 : vector<12x1x1xi1> to vector<12x16x128xi1>
    %99 = vector.broadcast %cst_19 : f32 to vector<12x16x128xf32>
    %100 = arith.select %98, %96, %99 : vector<12x16x128xi1>, vector<12x16x128xf32>
    %cst_20 = arith.constant 0.000000e+00 : f32
    %101 = vector.broadcast %cst_20 : f32 to vector<12x18x128xf32>
    %c0_21 = arith.constant 0 : index
    %c0_22 = arith.constant 0 : index
    %c0_23 = arith.constant 0 : index
    %102 = vector.load %arg16[%c0_21, %c0_22, %c0_23] : memref<12x18x128xf32, #tpu.memory_space<vmem>>, vector<12x18x128xf32>
    tpu.vector_store %arg16[%c0_21, %c0_22, %c0_23], %101 {strides = array<i32>} : memref<12x18x128xf32, #tpu.memory_space<vmem>>, vector<12x18x128xf32>,
    %c0_24 = arith.constant 0 : index
    %c1_25 = arith.constant 1 : index
    %c0_26 = arith.constant 0 : index
    %103 = vector.load %arg16[%c0_24, %c1_25, %c0_26] : memref<12x18x128xf32, #tpu.memory_space<vmem>>, vector<12x16x128xf32>
    tpu.vector_store %arg16[%c0_24, %c1_25, %c0_26], %100 {strides = array<i32>} : memref<12x18x128xf32, #tpu.memory_space<vmem>>, vector<12x16x128xf32>,
    %c0_27 = arith.constant 0 : index
    %c0_28 = arith.constant 0 : index
    %c0_29 = arith.constant 0 : index
    %104 = vector.load %arg16[%c0_27, %c0_28, %c0_29] : memref<12x18x128xf32, #tpu.memory_space<vmem>>, vector<12x18x128xf32>
    %c0_30 = arith.constant 0 : index
    %c0_31 = arith.constant 0 : index
    %105 = vector.load %arg6[%c0_30, %c0_31] : memref<9x128xf32, #tpu.memory_space<vmem>>, vector<9x128xf32>
    %cst_32 = arith.constant 0.000000e+00 : f32
    %106 = vector.broadcast %cst_32 : f32 to vector<10x16x128xf32>
    %107 = vector.extract_strided_slice %104 {offsets = [0, 0, 0], sizes = [12, 16, 128], strides = [1, 1, 1]} : vector<12x18x128xf32> to vector<12x16x128xf32>
    %108 = vector.extract_strided_slice %107 {offsets = [0, 0, 0], sizes = [10, 16, 128], strides = [1, 1, 1]} : vector<12x16x128xf32> to vector<10x16x128xf32>
    %109 = vector.extract_strided_slice %105 {offsets = [0, 0], sizes = [1, 128], strides = [1, 1]} : vector<9x128xf32> to vector<1x128xf32>
    %110 = vector.shape_cast %109 : vector<1x128xf32> to vector<128xf32>
    %111 = vector.shape_cast %110 : vector<128xf32> to vector<1x1x128xf32>
    %112 = vector.broadcast %111 : vector<1x1x128xf32> to vector<10x16x128xf32>
    %113 = arith.mulf %108, %112 : vector<10x16x128xf32>
    %114 = arith.addf %106, %113 : vector<10x16x128xf32>
    %115 = vector.extract_strided_slice %107 {offsets = [1, 0, 0], sizes = [10, 16, 128], strides = [1, 1, 1]} : vector<12x16x128xf32> to vector<10x16x128xf32>
    %116 = vector.extract_strided_slice %105 {offsets = [3, 0], sizes = [1, 128], strides = [1, 1]} : vector<9x128xf32> to vector<1x128xf32>
    %117 = vector.shape_cast %116 : vector<1x128xf32> to vector<128xf32>
    %118 = vector.shape_cast %117 : vector<128xf32> to vector<1x1x128xf32>
    %119 = vector.broadcast %118 : vector<1x1x128xf32> to vector<10x16x128xf32>
    %120 = arith.mulf %115, %119 : vector<10x16x128xf32>
    %121 = arith.addf %114, %120 : vector<10x16x128xf32>
    %122 = vector.extract_strided_slice %107 {offsets = [2, 0, 0], sizes = [10, 16, 128], strides = [1, 1, 1]} : vector<12x16x128xf32> to vector<10x16x128xf32>
    %123 = vector.extract_strided_slice %105 {offsets = [6, 0], sizes = [1, 128], strides = [1, 1]} : vector<9x128xf32> to vector<1x128xf32>
    %124 = vector.shape_cast %123 : vector<1x128xf32> to vector<128xf32>
    %125 = vector.shape_cast %124 : vector<128xf32> to vector<1x1x128xf32>
    %126 = vector.broadcast %125 : vector<1x1x128xf32> to vector<10x16x128xf32>
    %127 = arith.mulf %122, %126 : vector<10x16x128xf32>
    %128 = arith.addf %121, %127 : vector<10x16x128xf32>
    %129 = vector.extract_strided_slice %104 {offsets = [0, 1, 0], sizes = [12, 16, 128], strides = [1, 1, 1]} : vector<12x18x128xf32> to vector<12x16x128xf32>
    %130 = vector.extract_strided_slice %129 {offsets = [0, 0, 0], sizes = [10, 16, 128], strides = [1, 1, 1]} : vector<12x16x128xf32> to vector<10x16x128xf32>
    %131 = vector.extract_strided_slice %105 {offsets = [1, 0], sizes = [1, 128], strides = [1, 1]} : vector<9x128xf32> to vector<1x128xf32>
    %132 = vector.shape_cast %131 : vector<1x128xf32> to vector<128xf32>
    %133 = vector.shape_cast %132 : vector<128xf32> to vector<1x1x128xf32>
    %134 = vector.broadcast %133 : vector<1x1x128xf32> to vector<10x16x128xf32>
    %135 = arith.mulf %130, %134 : vector<10x16x128xf32>
    %136 = arith.addf %128, %135 : vector<10x16x128xf32>
    %137 = vector.extract_strided_slice %129 {offsets = [1, 0, 0], sizes = [10, 16, 128], strides = [1, 1, 1]} : vector<12x16x128xf32> to vector<10x16x128xf32>
    %138 = vector.extract_strided_slice %105 {offsets = [4, 0], sizes = [1, 128], strides = [1, 1]} : vector<9x128xf32> to vector<1x128xf32>
    %139 = vector.shape_cast %138 : vector<1x128xf32> to vector<128xf32>
    %140 = vector.shape_cast %139 : vector<128xf32> to vector<1x1x128xf32>
    %141 = vector.broadcast %140 : vector<1x1x128xf32> to vector<10x16x128xf32>
    %142 = arith.mulf %137, %141 : vector<10x16x128xf32>
    %143 = arith.addf %136, %142 : vector<10x16x128xf32>
    %144 = vector.extract_strided_slice %129 {offsets = [2, 0, 0], sizes = [10, 16, 128], strides = [1, 1, 1]} : vector<12x16x128xf32> to vector<10x16x128xf32>
    %145 = vector.extract_strided_slice %105 {offsets = [7, 0], sizes = [1, 128], strides = [1, 1]} : vector<9x128xf32> to vector<1x128xf32>
    %146 = vector.shape_cast %145 : vector<1x128xf32> to vector<128xf32>
    %147 = vector.shape_cast %146 : vector<128xf32> to vector<1x1x128xf32>
    %148 = vector.broadcast %147 : vector<1x1x128xf32> to vector<10x16x128xf32>
    %149 = arith.mulf %144, %148 : vector<10x16x128xf32>
    %150 = arith.addf %143, %149 : vector<10x16x128xf32>
    %151 = vector.extract_strided_slice %104 {offsets = [0, 2, 0], sizes = [12, 16, 128], strides = [1, 1, 1]} : vector<12x18x128xf32> to vector<12x16x128xf32>
    %152 = vector.extract_strided_slice %151 {offsets = [0, 0, 0], sizes = [10, 16, 128], strides = [1, 1, 1]} : vector<12x16x128xf32> to vector<10x16x128xf32>
    %153 = vector.extract_strided_slice %105 {offsets = [2, 0], sizes = [1, 128], strides = [1, 1]} : vector<9x128xf32> to vector<1x128xf32>
    %154 = vector.shape_cast %153 : vector<1x128xf32> to vector<128xf32>
    %155 = vector.shape_cast %154 : vector<128xf32> to vector<1x1x128xf32>
    %156 = vector.broadcast %155 : vector<1x1x128xf32> to vector<10x16x128xf32>
    %157 = arith.mulf %152, %156 : vector<10x16x128xf32>
    %158 = arith.addf %150, %157 : vector<10x16x128xf32>
    %159 = vector.extract_strided_slice %151 {offsets = [1, 0, 0], sizes = [10, 16, 128], strides = [1, 1, 1]} : vector<12x16x128xf32> to vector<10x16x128xf32>
    %160 = vector.extract_strided_slice %105 {offsets = [5, 0], sizes = [1, 128], strides = [1, 1]} : vector<9x128xf32> to vector<1x128xf32>
    %161 = vector.shape_cast %160 : vector<1x128xf32> to vector<128xf32>
    %162 = vector.shape_cast %161 : vector<128xf32> to vector<1x1x128xf32>
    %163 = vector.broadcast %162 : vector<1x1x128xf32> to vector<10x16x128xf32>
    %164 = arith.mulf %159, %163 : vector<10x16x128xf32>
    %165 = arith.addf %158, %164 : vector<10x16x128xf32>
    %166 = vector.extract_strided_slice %151 {offsets = [2, 0, 0], sizes = [10, 16, 128], strides = [1, 1, 1]} : vector<12x16x128xf32> to vector<10x16x128xf32>
    %167 = vector.extract_strided_slice %105 {offsets = [8, 0], sizes = [1, 128], strides = [1, 1]} : vector<9x128xf32> to vector<1x128xf32>
    %168 = vector.shape_cast %167 : vector<1x128xf32> to vector<128xf32>
    %169 = vector.shape_cast %168 : vector<128xf32> to vector<1x1x128xf32>
    %170 = vector.broadcast %169 : vector<1x1x128xf32> to vector<10x16x128xf32>
    %171 = arith.mulf %166, %170 : vector<10x16x128xf32>
    %172 = arith.addf %165, %171 : vector<10x16x128xf32>
    %173 = vector.shape_cast %172 : vector<10x16x128xf32> to vector<160x128xf32>
    %c0_33 = arith.constant 0 : index
    %c0_34 = arith.constant 0 : index
    %174 = vector.load %arg7[%c0_33, %c0_34] : memref<128x128xf32, #tpu.memory_space<vmem>>, vector<128x128xf32>
    %cst_35 = arith.constant dense<0.000000e+00> : vector<160x128xf32>
    %175 = tpu.matmul %173, %174, %cst_35 {dimension_numbers = #tpu.dot_dimension_numbers<[1], [0], [0], [1], [0, 0, 1, 1], [], []>} : vector<160x128xf32>, vector<128x128xf32>, vector<160x128xf32> -> vector<160x128xf32>
    %c0_36 = arith.constant 0 : index
    %c0_37 = arith.constant 0 : index
    %176 = vector.load %arg8[%c0_36, %c0_37] : memref<1x128xf32, #tpu.memory_space<vmem>>, vector<1x128xf32>
    %177 = vector.broadcast %176 : vector<1x128xf32> to vector<160x128xf32>
    %178 = arith.addf %175, %177 : vector<160x128xf32>
    %c1_i32 = arith.constant 1 : i32
    %179 = arith.subi %1, %c1_i32 : i32
    %180 = tpu.iota {dimensions = array<i32: 0>} : vector<10x1x1xi32>
    %181 = vector.broadcast %179 : i32 to vector<10x1x1xi32>
    %182 = arith.addi %181, %180 : vector<10x1x1xi32>
    %c0_i32_38 = arith.constant 0 : i32
    %183 = vector.broadcast %c0_i32_38 : i32 to vector<10x1x1xi32>
    %184 = arith.cmpi sge, %182, %183 : vector<10x1x1xi32>
    %c16_i32_39 = arith.constant 16 : i32
    %185 = vector.broadcast %c16_i32_39 : i32 to vector<10x1x1xi32>
    %186 = arith.cmpi slt, %182, %185 : vector<10x1x1xi32>
    %187 = arith.andi %184, %186 : vector<10x1x1xi1>
    %188 = vector.shape_cast %178 : vector<160x128xf32> to vector<10x16x128xf32>
    %cst_40 = arith.constant 0.000000e+00 : f32
    %189 = vector.broadcast %cst_40 : f32 to vector<10x16x128xf32>
    %190 = arith.maximumf %188, %189 : vector<10x16x128xf32>
    %cst_41 = arith.constant 0.000000e+00 : f32
    %191 = vector.shape_cast %187 : vector<10x1x1xi1> to vector<10x1x1xi1>
    %192 = vector.broadcast %191 : vector<10x1x1xi1> to vector<10x16x128xi1>
    %193 = vector.broadcast %cst_41 : f32 to vector<10x16x128xf32>
    %194 = arith.select %192, %190, %193 : vector<10x16x128xi1>, vector<10x16x128xf32>
    %cst_42 = arith.constant 0.000000e+00 : f32
    %195 = vector.broadcast %cst_42 : f32 to vector<10x18x128xf32>
    %c0_43 = arith.constant 0 : index
    %c0_44 = arith.constant 0 : index
    %c0_45 = arith.constant 0 : index
    %196 = vector.load %arg17[%c0_43, %c0_44, %c0_45] : memref<10x18x128xf32, #tpu.memory_space<vmem>>, vector<10x18x128xf32>
    tpu.vector_store %arg17[%c0_43, %c0_44, %c0_45], %195 {strides = array<i32>} : memref<10x18x128xf32, #tpu.memory_space<vmem>>, vector<10x18x128xf32>,
    %c0_46 = arith.constant 0 : index
    %c1_47 = arith.constant 1 : index
    %c0_48 = arith.constant 0 : index
    %197 = vector.load %arg17[%c0_46, %c1_47, %c0_48] : memref<10x18x128xf32, #tpu.memory_space<vmem>>, vector<10x16x128xf32>
    tpu.vector_store %arg17[%c0_46, %c1_47, %c0_48], %194 {strides = array<i32>} : memref<10x18x128xf32, #tpu.memory_space<vmem>>, vector<10x16x128xf32>,
    %c0_49 = arith.constant 0 : index
    %c0_50 = arith.constant 0 : index
    %c0_51 = arith.constant 0 : index
    %198 = vector.load %arg17[%c0_49, %c0_50, %c0_51] : memref<10x18x128xf32, #tpu.memory_space<vmem>>, vector<10x18x128xf32>
    %c0_52 = arith.constant 0 : index
    %c0_53 = arith.constant 0 : index
    %199 = vector.load %arg9[%c0_52, %c0_53] : memref<9x128xf32, #tpu.memory_space<vmem>>, vector<9x128xf32>
    %cst_54 = arith.constant 0.000000e+00 : f32
    %200 = vector.broadcast %cst_54 : f32 to vector<8x16x128xf32>
    %201 = vector.extract_strided_slice %198 {offsets = [0, 0, 0], sizes = [10, 16, 128], strides = [1, 1, 1]} : vector<10x18x128xf32> to vector<10x16x128xf32>
    %202 = vector.extract_strided_slice %201 {offsets = [0, 0, 0], sizes = [8, 16, 128], strides = [1, 1, 1]} : vector<10x16x128xf32> to vector<8x16x128xf32>
    %203 = vector.extract_strided_slice %199 {offsets = [0, 0], sizes = [1, 128], strides = [1, 1]} : vector<9x128xf32> to vector<1x128xf32>
    %204 = vector.shape_cast %203 : vector<1x128xf32> to vector<128xf32>
    %205 = vector.shape_cast %204 : vector<128xf32> to vector<1x1x128xf32>
    %206 = vector.broadcast %205 : vector<1x1x128xf32> to vector<8x16x128xf32>
    %207 = arith.mulf %202, %206 : vector<8x16x128xf32>
    %208 = arith.addf %200, %207 : vector<8x16x128xf32>
    %209 = vector.extract_strided_slice %201 {offsets = [1, 0, 0], sizes = [8, 16, 128], strides = [1, 1, 1]} : vector<10x16x128xf32> to vector<8x16x128xf32>
    %210 = vector.extract_strided_slice %199 {offsets = [3, 0], sizes = [1, 128], strides = [1, 1]} : vector<9x128xf32> to vector<1x128xf32>
    %211 = vector.shape_cast %210 : vector<1x128xf32> to vector<128xf32>
    %212 = vector.shape_cast %211 : vector<128xf32> to vector<1x1x128xf32>
    %213 = vector.broadcast %212 : vector<1x1x128xf32> to vector<8x16x128xf32>
    %214 = arith.mulf %209, %213 : vector<8x16x128xf32>
    %215 = arith.addf %208, %214 : vector<8x16x128xf32>
    %216 = vector.extract_strided_slice %201 {offsets = [2, 0, 0], sizes = [8, 16, 128], strides = [1, 1, 1]} : vector<10x16x128xf32> to vector<8x16x128xf32>
    %217 = vector.extract_strided_slice %199 {offsets = [6, 0], sizes = [1, 128], strides = [1, 1]} : vector<9x128xf32> to vector<1x128xf32>
    %218 = vector.shape_cast %217 : vector<1x128xf32> to vector<128xf32>
    %219 = vector.shape_cast %218 : vector<128xf32> to vector<1x1x128xf32>
    %220 = vector.broadcast %219 : vector<1x1x128xf32> to vector<8x16x128xf32>
    %221 = arith.mulf %216, %220 : vector<8x16x128xf32>
    %222 = arith.addf %215, %221 : vector<8x16x128xf32>
    %223 = vector.extract_strided_slice %198 {offsets = [0, 1, 0], sizes = [10, 16, 128], strides = [1, 1, 1]} : vector<10x18x128xf32> to vector<10x16x128xf32>
    %224 = vector.extract_strided_slice %223 {offsets = [0, 0, 0], sizes = [8, 16, 128], strides = [1, 1, 1]} : vector<10x16x128xf32> to vector<8x16x128xf32>
    %225 = vector.extract_strided_slice %199 {offsets = [1, 0], sizes = [1, 128], strides = [1, 1]} : vector<9x128xf32> to vector<1x128xf32>
    %226 = vector.shape_cast %225 : vector<1x128xf32> to vector<128xf32>
    %227 = vector.shape_cast %226 : vector<128xf32> to vector<1x1x128xf32>
    %228 = vector.broadcast %227 : vector<1x1x128xf32> to vector<8x16x128xf32>
    %229 = arith.mulf %224, %228 : vector<8x16x128xf32>
    %230 = arith.addf %222, %229 : vector<8x16x128xf32>
    %231 = vector.extract_strided_slice %223 {offsets = [1, 0, 0], sizes = [8, 16, 128], strides = [1, 1, 1]} : vector<10x16x128xf32> to vector<8x16x128xf32>
    %232 = vector.extract_strided_slice %199 {offsets = [4, 0], sizes = [1, 128], strides = [1, 1]} : vector<9x128xf32> to vector<1x128xf32>
    %233 = vector.shape_cast %232 : vector<1x128xf32> to vector<128xf32>
    %234 = vector.shape_cast %233 : vector<128xf32> to vector<1x1x128xf32>
    %235 = vector.broadcast %234 : vector<1x1x128xf32> to vector<8x16x128xf32>
    %236 = arith.mulf %231, %235 : vector<8x16x128xf32>
    %237 = arith.addf %230, %236 : vector<8x16x128xf32>
    %238 = vector.extract_strided_slice %223 {offsets = [2, 0, 0], sizes = [8, 16, 128], strides = [1, 1, 1]} : vector<10x16x128xf32> to vector<8x16x128xf32>
    %239 = vector.extract_strided_slice %199 {offsets = [7, 0], sizes = [1, 128], strides = [1, 1]} : vector<9x128xf32> to vector<1x128xf32>
    %240 = vector.shape_cast %239 : vector<1x128xf32> to vector<128xf32>
    %241 = vector.shape_cast %240 : vector<128xf32> to vector<1x1x128xf32>
    %242 = vector.broadcast %241 : vector<1x1x128xf32> to vector<8x16x128xf32>
    %243 = arith.mulf %238, %242 : vector<8x16x128xf32>
    %244 = arith.addf %237, %243 : vector<8x16x128xf32>
    %245 = vector.extract_strided_slice %198 {offsets = [0, 2, 0], sizes = [10, 16, 128], strides = [1, 1, 1]} : vector<10x18x128xf32> to vector<10x16x128xf32>
    %246 = vector.extract_strided_slice %245 {offsets = [0, 0, 0], sizes = [8, 16, 128], strides = [1, 1, 1]} : vector<10x16x128xf32> to vector<8x16x128xf32>
    %247 = vector.extract_strided_slice %199 {offsets = [2, 0], sizes = [1, 128], strides = [1, 1]} : vector<9x128xf32> to vector<1x128xf32>
    %248 = vector.shape_cast %247 : vector<1x128xf32> to vector<128xf32>
    %249 = vector.shape_cast %248 : vector<128xf32> to vector<1x1x128xf32>
    %250 = vector.broadcast %249 : vector<1x1x128xf32> to vector<8x16x128xf32>
    %251 = arith.mulf %246, %250 : vector<8x16x128xf32>
    %252 = arith.addf %244, %251 : vector<8x16x128xf32>
    %253 = vector.extract_strided_slice %245 {offsets = [1, 0, 0], sizes = [8, 16, 128], strides = [1, 1, 1]} : vector<10x16x128xf32> to vector<8x16x128xf32>
    %254 = vector.extract_strided_slice %199 {offsets = [5, 0], sizes = [1, 128], strides = [1, 1]} : vector<9x128xf32> to vector<1x128xf32>
    %255 = vector.shape_cast %254 : vector<1x128xf32> to vector<128xf32>
    %256 = vector.shape_cast %255 : vector<128xf32> to vector<1x1x128xf32>
    %257 = vector.broadcast %256 : vector<1x1x128xf32> to vector<8x16x128xf32>
    %258 = arith.mulf %253, %257 : vector<8x16x128xf32>
    %259 = arith.addf %252, %258 : vector<8x16x128xf32>
    %260 = vector.extract_strided_slice %245 {offsets = [2, 0, 0], sizes = [8, 16, 128], strides = [1, 1, 1]} : vector<10x16x128xf32> to vector<8x16x128xf32>
    %261 = vector.extract_strided_slice %199 {offsets = [8, 0], sizes = [1, 128], strides = [1, 1]} : vector<9x128xf32> to vector<1x128xf32>
    %262 = vector.shape_cast %261 : vector<1x128xf32> to vector<128xf32>
    %263 = vector.shape_cast %262 : vector<128xf32> to vector<1x1x128xf32>
    %264 = vector.broadcast %263 : vector<1x1x128xf32> to vector<8x16x128xf32>
    %265 = arith.mulf %260, %264 : vector<8x16x128xf32>
    %266 = arith.addf %259, %265 : vector<8x16x128xf32>
    %267 = vector.shape_cast %266 : vector<8x16x128xf32> to vector<128x128xf32>
    %c0_55 = arith.constant 0 : index
    %c0_56 = arith.constant 0 : index
    %268 = vector.load %arg10[%c0_55, %c0_56] : memref<128x128xf32, #tpu.memory_space<vmem>>, vector<128x128xf32>
    %cst_57 = arith.constant dense<0.000000e+00> : vector<128x128xf32>
    %269 = tpu.matmul %267, %268, %cst_57 {dimension_numbers = #tpu.dot_dimension_numbers<[1], [0], [0], [1], [0, 0, 1, 1], [], []>} : vector<128x128xf32>, vector<128x128xf32>, vector<128x128xf32> -> vector<128x128xf32>
    %c0_58 = arith.constant 0 : index
    %c0_59 = arith.constant 0 : index
    %270 = vector.load %arg11[%c0_58, %c0_59] : memref<1x128xf32, #tpu.memory_space<vmem>>, vector<1x128xf32>
    %271 = vector.broadcast %270 : vector<1x128xf32> to vector<128x128xf32>
    %272 = arith.addf %269, %271 : vector<128x128xf32>
    %c0_60 = arith.constant 0 : index
    %273 = arith.index_cast %1 : i32 to index
    %c0_61 = arith.constant 0 : index
    %c0_62 = arith.constant 0 : index
    %274 = vector.load %arg2[%c0_60, %273, %c0_61, %c0_62] : memref<1x16x16x128xf32, #tpu.memory_space<vmem>>, vector<1x8x16x128xf32>
    %275 = vector.shape_cast %274 : vector<1x8x16x128xf32> to vector<8x16x128xf32>
    %276 = vector.shape_cast %275 : vector<8x16x128xf32> to vector<128x128xf32>
    %c0_63 = arith.constant 0 : index
    %c0_64 = arith.constant 0 : index
    %277 = vector.load %arg12[%c0_63, %c0_64] : memref<128x128xf32, #tpu.memory_space<vmem>>, vector<128x128xf32>
    %cst_65 = arith.constant dense<0.000000e+00> : vector<128x128xf32>
    %278 = tpu.matmul %276, %277, %cst_65 {dimension_numbers = #tpu.dot_dimension_numbers<[1], [0], [0], [1], [0, 0, 1, 1], [], []>} : vector<128x128xf32>, vector<128x128xf32>, vector<128x128xf32> -> vector<128x128xf32>
    %c0_66 = arith.constant 0 : index
    %c0_67 = arith.constant 0 : index
    %279 = vector.load %arg13[%c0_66, %c0_67] : memref<1x128xf32, #tpu.memory_space<vmem>>, vector<1x128xf32>
    %280 = vector.broadcast %279 : vector<1x128xf32> to vector<128x128xf32>
    %281 = arith.addf %278, %280 : vector<128x128xf32>
    %282 = arith.addf %272, %281 : vector<128x128xf32>
    %c0_68 = arith.constant 0 : index
    %c0_69 = arith.constant 0 : index
    %c0_70 = arith.constant 0 : index
    %283 = vector.load %arg14[%c0_68, %c0_69, %c0_70] : memref<1x128x128xf32, #tpu.memory_space<vmem>>, vector<1x128x128xf32>
    %284 = vector.shape_cast %283 : vector<1x128x128xf32> to vector<128x128xf32>
    %285 = vector.shape_cast %282 : vector<128x128xf32> to vector<1x128x128xf32>
    tpu.vector_store %arg14[%c0_68, %c0_69, %c0_70], %285 {strides = array<i32>} : memref<1x128x128xf32, #tpu.memory_space<vmem>>, vector<1x128x128xf32>,
    return
  }
  func.func @transform_0(%arg0: i32, %arg1: i32) -> (i32, i32, i32, i32) {
    %c0_i32 = arith.constant 0 : i32
    %c0_i32_0 = arith.constant 0 : i32
    %c0_i32_1 = arith.constant 0 : i32
    %c0_i32_2 = arith.constant 0 : i32
    return %arg0, %c0_i32, %c0_i32_0, %c0_i32_1 : i32, i32, i32, i32
  }
  func.func @transform_1(%arg0: i32, %arg1: i32) -> (i32, i32) {
    %c0_i32 = arith.constant 0 : i32
    %c0_i32_0 = arith.constant 0 : i32
    %c0_i32_1 = arith.constant 0 : i32
    return %c0_i32, %c0_i32_0 : i32, i32
  }
  func.func @transform_2(%arg0: i32, %arg1: i32) -> (i32, i32) {
    %c0_i32 = arith.constant 0 : i32
    %c0_i32_0 = arith.constant 0 : i32
    %c0_i32_1 = arith.constant 0 : i32
    return %c0_i32, %c0_i32_0 : i32, i32
  }
  func.func @transform_3(%arg0: i32, %arg1: i32) -> (i32, i32) {
    %c0_i32 = arith.constant 0 : i32
    %c0_i32_0 = arith.constant 0 : i32
    %c0_i32_1 = arith.constant 0 : i32
    return %c0_i32, %c0_i32_0 : i32, i32
  }
  func.func @transform_4(%arg0: i32, %arg1: i32) -> (i32, i32) {
    %c0_i32 = arith.constant 0 : i32
    %c0_i32_0 = arith.constant 0 : i32
    %c0_i32_1 = arith.constant 0 : i32
    return %c0_i32, %c0_i32_0 : i32, i32
  }
  func.func @transform_5(%arg0: i32, %arg1: i32) -> (i32, i32) {
    %c0_i32 = arith.constant 0 : i32
    %c0_i32_0 = arith.constant 0 : i32
    %c0_i32_1 = arith.constant 0 : i32
    return %c0_i32, %c0_i32_0 : i32, i32
  }
  func.func @transform_6(%arg0: i32, %arg1: i32) -> (i32, i32) {
    %c0_i32 = arith.constant 0 : i32
    %c0_i32_0 = arith.constant 0 : i32
    %c0_i32_1 = arith.constant 0 : i32
    return %c0_i32, %c0_i32_0 : i32, i32
  }
  func.func @transform_7(%arg0: i32, %arg1: i32) -> (i32, i32) {
    %c0_i32 = arith.constant 0 : i32
    %c0_i32_0 = arith.constant 0 : i32
    %c0_i32_1 = arith.constant 0 : i32
    return %c0_i32, %c0_i32_0 : i32, i32
  }
  func.func @transform_8(%arg0: i32, %arg1: i32) -> (i32, i32) {
    %c0_i32 = arith.constant 0 : i32
    %c0_i32_0 = arith.constant 0 : i32
    %c0_i32_1 = arith.constant 0 : i32
    return %c0_i32, %c0_i32_0 : i32, i32
  }
  func.func @transform_9(%arg0: i32, %arg1: i32) -> (i32, i32) {
    %c0_i32 = arith.constant 0 : i32
    %c0_i32_0 = arith.constant 0 : i32
    %c0_i32_1 = arith.constant 0 : i32
    return %c0_i32, %c0_i32_0 : i32, i32
  }
  func.func @transform_10(%arg0: i32, %arg1: i32) -> (i32, i32) {
    %c0_i32 = arith.constant 0 : i32
    %c0_i32_0 = arith.constant 0 : i32
    %c0_i32_1 = arith.constant 0 : i32
    return %c0_i32, %c0_i32_0 : i32, i32
  }
  func.func @transform_11(%arg0: i32, %arg1: i32) -> (i32, i32) {
    %c0_i32 = arith.constant 0 : i32
    %c0_i32_0 = arith.constant 0 : i32
    %c0_i32_1 = arith.constant 0 : i32
    return %c0_i32, %c0_i32_0 : i32, i32
  }
  func.func @transform_12(%arg0: i32, %arg1: i32) -> (i32, i32, i32) {
    %c0_i32 = arith.constant 0 : i32
    %c0_i32_0 = arith.constant 0 : i32
    return %arg0, %arg1, %c0_i32 : i32, i32, i32
  }
}

</mosaic_0001>

<llo_original>
// kernel: tpu_custom_call.1
$region0: #{tpu_custom_call.1}
  #allocation0 [shape = 'u32[]', space=smem, size = 0x4, offset = 0x4, fixed_abs, tag = 'smem constant byte address 0x4 - core index']
  #allocation1 [shape = 'u32[72,128]{1,0:T(1,128)}', space=vmem, size = 0x9000, scoped, tag = 'internal scratch']
  #allocation2 [shape = 'f32[22,18,128]{2,1,0:T(8,128)}', space=vmem, size = 0x42000, scoped, tag = 'scratch operand']
  #allocation3 [shape = 'f32[12,18,128]{2,1,0:T(8,128)}', space=vmem, size = 0x24000, scoped, tag = 'scratch operand']
  #allocation4 [shape = 'f32[10,18,128]{2,1,0:T(8,128)}', space=vmem, size = 0x1e000, scoped, tag = 'scratch operand']
  %s0 = inlined_call_operand.hbm [shape: f32[2,16,16,128], index: 0, kind: input, shape index: {}]
  %s1 = inlined_call_operand.hbm [shape: f32[9,128], index: 1, kind: input, shape index: {}]
  %s2 = inlined_call_operand.hbm [shape: f32[128,128], index: 2, kind: input, shape index: {}]
  %s3 = inlined_call_operand.vmem [shape: f32[1,128], index: 3, kind: input, shape index: {}]
  %s4 = inlined_call_operand.hbm [shape: f32[9,128], index: 4, kind: input, shape index: {}]
  %s5 = inlined_call_operand.hbm [shape: f32[128,128], index: 5, kind: input, shape index: {}]
  %s6 = inlined_call_operand.vmem [shape: f32[1,128], index: 6, kind: input, shape index: {}]
  %s7 = inlined_call_operand.hbm [shape: f32[9,128], index: 7, kind: input, shape index: {}]
  %s8 = inlined_call_operand.hbm [shape: f32[128,128], index: 8, kind: input, shape index: {}]
  %s9 = inlined_call_operand.vmem [shape: f32[1,128], index: 9, kind: input, shape index: {}]
  %s10 = inlined_call_operand.hbm [shape: f32[128,128], index: 10, kind: input, shape index: {}]
  %s11 = inlined_call_operand.vmem [shape: f32[1,128], index: 11, kind: input, shape index: {}]
  %s12 = inlined_call_operand.hbm [shape: f32[2,256,128], index: 12, kind: output, shape index: {}]
  %s13 = sld [smem:[#allocation0]]
  $region113: #{tpu_custom_call.1} parent=0
    _
  %s15 = ssub.s32 1, %s13
  %s16 = scalar_select 0, %s15, %s13
  $region1: #{tpu_custom_call.1} parent=0
    #allocation5 [shape = 'u8[262144]{0}', space=vmem, size = 0x40000, scoped, tag = 'input window, operand 0']
    #allocation6 [shape = 's32[2]{0}', space=sflag, size = 0x8, scoped, tag = 'scoped memory for tpu_custom_call.1']
    #allocation7 [shape = 's32[2]{0}', space=sflag, size = 0x8, scoped, tag = 'scoped memory for tpu_custom_call.1']
    #allocation8 [shape = 'u8[8192]{0}', space=vmem, size = 0x2000, scoped, tag = 'input window, operand 1, single buffered']
    #allocation9 [shape = 's32[1]{0}', space=sflag, size = 0x4, scoped, tag = 'scoped memory for tpu_custom_call.1']
    #allocation10 [shape = 'u8[65536]{0}', space=vmem, size = 0x10000, scoped, tag = 'input window, operand 2, single buffered']
    #allocation11 [shape = 'u8[8192]{0}', space=vmem, size = 0x2000, scoped, tag = 'input window, operand 4, single buffered']
    #allocation12 [shape = 's32[1]{0}', space=sflag, size = 0x4, scoped, tag = 'scoped memory for tpu_custom_call.1']
    #allocation13 [shape = 'u8[65536]{0}', space=vmem, size = 0x10000, scoped, tag = 'input window, operand 5, single buffered']
    #allocation14 [shape = 'u8[8192]{0}', space=vmem, size = 0x2000, scoped, tag = 'input window, operand 7, single buffered']
    #allocation15 [shape = 's32[1]{0}', space=sflag, size = 0x4, scoped, tag = 'scoped memory for tpu_custom_call.1']
    #allocation16 [shape = 'u8[65536]{0}', space=vmem, size = 0x10000, scoped, tag = 'input window, operand 8, single buffered']
    #allocation17 [shape = 'u8[65536]{0}', space=vmem, size = 0x10000, scoped, tag = 'input window, operand 10, single buffered']
    #allocation18 [shape = 's32[1]{0}', space=sflag, size = 0x4, scoped, tag = 'scoped memory for tpu_custom_call.1']
    #allocation19 [shape = 'u8[131072]{0}', space=vmem, size = 0x20000, scoped, tag = 'output window, operand 0']
    %17 = vsyncpa [#allocation6], 0
    %s18 = scalar_lea.sflag [#allocation6], 1
    %19 = vsyncpa %s18, 0
    %20 = vsyncpa [#allocation9], 0
    %21 = vsyncpa [#allocation12], 0
    %22 = vsyncpa [#allocation15], 0
    %23 = vsyncpa [#allocation18], 0
    %24 = vsyncpa [#allocation7], 0
    %s25 = scalar_lea.sflag [#allocation7], 1
    %26 = vsyncpa %s25, 0
    loop: start=0, step=1, limit=6
    $region2: #{tpu_custom_call.1} parent=1 // loop_pre_header
      _
    $region3: #{tpu_custom_call.1} parent=1 // loop_header
      %s28 = sphi 0, %s32
      %p29 = scmp.ge.s32.totalorder %s28, 6
      %s35 = sphi 0, %s47
      %s36 = sphi 0, %s43
      %s37 = sphi 0, %s35
      %s38 = sphi 0, %s36
      %s39 = sphi 0, %s37
      %s40 = sphi 0, %s38
      %s50 = sphi 0, %s52
      %s53 = sphi 0, %s50
      %s54 = sphi 0, %s53
      %s70 = sphi 0, %s54
      %s74 = sphi 0, %s74
      %s76 = sphi 0, %s74
      %s77 = sphi 0, %s76
      %s91 = sphi 0, %s77
      %s95 = sphi 0, %s95
      %s97 = sphi 0, %s95
      %s98 = sphi 0, %s97
      %s112 = sphi 0, %s98
      %s116 = sphi 0, %s116
      %s118 = sphi 0, %s116
      %s119 = sphi 0, %s118
      %s133 = sphi 0, %s119
      %s137 = sphi 0, %s137
      %s139 = sphi 0, %s137
      %s140 = sphi 0, %s139
      %s154 = sphi 0, %s140
      %s158 = sphi 0, %s158
      %s160 = sphi 0, %s158
      %s161 = sphi 0, %s160
      %s175 = sphi 0, %s161
      %s179 = sphi 0, %s179
      %s181 = sphi 0, %s179
      %s182 = sphi 0, %s181
      %s196 = sphi 0, %s182
      %s200 = sphi 0, %s200
      %s202 = sphi 0, %s200
      %s203 = sphi 0, %s202
      %s217 = sphi 0, %s203
      %s221 = sphi 0, %s221
      %s223 = sphi 0, %s221
      %s224 = sphi 0, %s223
      %s238 = sphi 0, %s224
      %s242 = sphi 0, %s242
      %s244 = sphi 0, %s242
      %s245 = sphi 0, %s244
      %s259 = sphi 0, %s245
      %s263 = sphi 0, %s263
      %s265 = sphi 0, %s263
      %s266 = sphi 0, %s265
      %s280 = sphi 0, %s266
      %s284 = sphi 0, %s284
      %s286 = sphi 0, %s284
      %s287 = sphi 0, %s286
      %s301 = sphi 0, %s287
      %s309 = sphi 0, %s311
      %s312 = sphi 0, %s309
      %s313 = sphi 0, %s312
      %s329 = sphi 0, %s313
    $region4: #{tpu_custom_call.1} parent=1 // loop_header_branch
      %31 = sbr.rel (%p29) target = $region8
    $region5: #{tpu_custom_call.1} parent=1 // loop_body
      %s33 = ssub.s32 %s28, 1
      %s34 = ssub.s32 %s28, 2
      %s41 = sadd.s32 1, %s36
      %p42 = scmp.ge.s32.totalorder %s41, 2
      %s43 = scalar_select %p42, 0, %s41
      %s44 = sadd.s32 1, %s35
      %s45 = scalar_select %p42, %s44, %s35
      %p46 = scmp.ge.s32.totalorder %s45, 2
      %s47 = scalar_select %p46, 0, %s45
      %s48 = ssub.s32 %s35, %s47
      %p49 = scmp.eq.s32.totalorder %s48, 0
      %s51 = sadd.s32 %s50, 1
      %s52 = scalar_select %p49, %s50, %s51
      %p55 = pneg %p49
      %p56 = scmp.eq.s32.totalorder %s28, 3
      %p57 = por %p55, %p56
      %p58 = scmp.ne.s32.totalorder %s50, %s53
      %p59 = scmp.eq.s32.totalorder %s28, 0
      %p60 = por %p58, %p59
      %p61 = scmp.ne.s32.totalorder %s50, %s53
      %p62 = scmp.eq.s32.totalorder %s33, 3
      %p63 = por %p61, %p62
      %p64 = scmp.ne.s32.totalorder %s53, %s54
      %p65 = scmp.eq.s32.totalorder %s33, 0
      %p66 = por %p64, %p65
      %p67 = scmp.ne.s32.totalorder %s53, %s54
      %p68 = scmp.eq.s32.totalorder %s34, 3
      %p69 = por %p67, %p68
      %p71 = scmp.ne.s32.totalorder %s54, %s70
      %p72 = scmp.eq.s32.totalorder %s34, 0
      %p73 = por %p71, %p72
      %s75 = sadd.s32 %s74, 1
      %p78 = scmp.eq.s32.totalorder %s28, 3
      %p79 = scmp.ne.s32.totalorder %s74, %s76
      %p80 = scmp.eq.s32.totalorder %s28, 0
      %p81 = por %p79, %p80
      %p82 = scmp.ne.s32.totalorder %s74, %s76
      %p83 = scmp.eq.s32.totalorder %s33, 3
      %p84 = por %p82, %p83
      %p85 = scmp.ne.s32.totalorder %s76, %s77
      %p86 = scmp.eq.s32.totalorder %s33, 0
      %p87 = por %p85, %p86
      %p88 = scmp.ne.s32.totalorder %s76, %s77
      %p89 = scmp.eq.s32.totalorder %s34, 3
      %p90 = por %p88, %p89
      %p92 = scmp.ne.s32.totalorder %s77, %s91
      %p93 = scmp.eq.s32.totalorder %s34, 0
      %p94 = por %p92, %p93
      %s96 = sadd.s32 %s95, 1
      %p99 = scmp.eq.s32.totalorder %s28, 3
      %p100 = scmp.ne.s32.totalorder %s95, %s97
      %p101 = scmp.eq.s32.totalorder %s28, 0
      %p102 = por %p100, %p101
      %p103 = scmp.ne.s32.totalorder %s95, %s97
      %p104 = scmp.eq.s32.totalorder %s33, 3
      %p105 = por %p103, %p104
      %p106 = scmp.ne.s32.totalorder %s97, %s98
      %p107 = scmp.eq.s32.totalorder %s33, 0
      %p108 = por %p106, %p107
      %p109 = scmp.ne.s32.totalorder %s97, %s98
      %p110 = scmp.eq.s32.totalorder %s34, 3
      %p111 = por %p109, %p110
      %p113 = scmp.ne.s32.totalorder %s98, %s112
      %p114 = scmp.eq.s32.totalorder %s34, 0
      %p115 = por %p113, %p114
      %s117 = sadd.s32 %s116, 1
      %p120 = scmp.eq.s32.totalorder %s28, 3
      %p121 = scmp.ne.s32.totalorder %s116, %s118
      %p122 = scmp.eq.s32.totalorder %s28, 0
      %p123 = por %p121, %p122
      %p124 = scmp.ne.s32.totalorder %s116, %s118
      %p125 = scmp.eq.s32.totalorder %s33, 3
      %p126 = por %p124, %p125
      %p127 = scmp.ne.s32.totalorder %s118, %s119
      %p128 = scmp.eq.s32.totalorder %s33, 0
      %p129 = por %p127, %p128
      %p130 = scmp.ne.s32.totalorder %s118, %s119
      %p131 = scmp.eq.s32.totalorder %s34, 3
      %p132 = por %p130, %p131
      %p134 = scmp.ne.s32.totalorder %s119, %s133
      %p135 = scmp.eq.s32.totalorder %s34, 0
      %p136 = por %p134, %p135
      %s138 = sadd.s32 %s137, 1
      %p141 = scmp.eq.s32.totalorder %s28, 3
      %p142 = scmp.ne.s32.totalorder %s137, %s139
      %p143 = scmp.eq.s32.totalorder %s28, 0
      %p144 = por %p142, %p143
      %p145 = scmp.ne.s32.totalorder %s137, %s139
      %p146 = scmp.eq.s32.totalorder %s33, 3
      %p147 = por %p145, %p146
      %p148 = scmp.ne.s32.totalorder %s139, %s140
      %p149 = scmp.eq.s32.totalorder %s33, 0
      %p150 = por %p148, %p149
      %p151 = scmp.ne.s32.totalorder %s139, %s140
      %p152 = scmp.eq.s32.totalorder %s34, 3
      %p153 = por %p151, %p152
      %p155 = scmp.ne.s32.totalorder %s140, %s154
      %p156 = scmp.eq.s32.totalorder %s34, 0
      %p157 = por %p155, %p156
      %s159 = sadd.s32 %s158, 1
      %p162 = scmp.eq.s32.totalorder %s28, 3
      %p163 = scmp.ne.s32.totalorder %s158, %s160
      %p164 = scmp.eq.s32.totalorder %s28, 0
      %p165 = por %p163, %p164
      %p166 = scmp.ne.s32.totalorder %s158, %s160
      %p167 = scmp.eq.s32.totalorder %s33, 3
      %p168 = por %p166, %p167
      %p169 = scmp.ne.s32.totalorder %s160, %s161
      %p170 = scmp.eq.s32.totalorder %s33, 0
      %p171 = por %p169, %p170
      %p172 = scmp.ne.s32.totalorder %s160, %s161
      %p173 = scmp.eq.s32.totalorder %s34, 3
      %p174 = por %p172, %p173
      %p176 = scmp.ne.s32.totalorder %s161, %s175
      %p177 = scmp.eq.s32.totalorder %s34, 0
      %p178 = por %p176, %p177
      %s180 = sadd.s32 %s179, 1
      %p183 = scmp.eq.s32.totalorder %s28, 3
      %p184 = scmp.ne.s32.totalorder %s179, %s181
      %p185 = scmp.eq.s32.totalorder %s28, 0
      %p186 = por %p184, %p185
      %p187 = scmp.ne.s32.totalorder %s179, %s181
      %p188 = scmp.eq.s32.totalorder %s33, 3
      %p189 = por %p187, %p188
      %p190 = scmp.ne.s32.totalorder %s181, %s182
      %p191 = scmp.eq.s32.totalorder %s33, 0
      %p192 = por %p190, %p191
      %p193 = scmp.ne.s32.totalorder %s181, %s182
      %p194 = scmp.eq.s32.totalorder %s34, 3
      %p195 = por %p193, %p194
      %p197 = scmp.ne.s32.totalorder %s182, %s196
      %p198 = scmp.eq.s32.totalorder %s34, 0
      %p199 = por %p197, %p198
      %s201 = sadd.s32 %s200, 1
      %p204 = scmp.eq.s32.totalorder %s28, 3
      %p205 = scmp.ne.s32.totalorder %s200, %s202
      %p206 = scmp.eq.s32.totalorder %s28, 0
      %p207 = por %p205, %p206
      %p208 = scmp.ne.s32.totalorder %s200, %s202
      %p209 = scmp.eq.s32.totalorder %s33, 3
      %p210 = por %p208, %p209
      %p211 = scmp.ne.s32.totalorder %s202, %s203
      %p212 = scmp.eq.s32.totalorder %s33, 0
      %p213 = por %p211, %p212
      %p214 = scmp.ne.s32.totalorder %s202, %s203
      %p215 = scmp.eq.s32.totalorder %s34, 3
      %p216 = por %p214, %p215
      %p218 = scmp.ne.s32.totalorder %s203, %s217
      %p219 = scmp.eq.s32.totalorder %s34, 0
      %p220 = por %p218, %p219
      %s222 = sadd.s32 %s221, 1
      %p225 = scmp.eq.s32.totalorder %s28, 3
      %p226 = scmp.ne.s32.totalorder %s221, %s223
      %p227 = scmp.eq.s32.totalorder %s28, 0
      %p228 = por %p226, %p227
      %p229 = scmp.ne.s32.totalorder %s221, %s223
      %p230 = scmp.eq.s32.totalorder %s33, 3
      %p231 = por %p229, %p230
      %p232 = scmp.ne.s32.totalorder %s223, %s224
      %p233 = scmp.eq.s32.totalorder %s33, 0
      %p234 = por %p232, %p233
      %p235 = scmp.ne.s32.totalorder %s223, %s224
      %p236 = scmp.eq.s32.totalorder %s34, 3
      %p237 = por %p235, %p236
      %p239 = scmp.ne.s32.totalorder %s224, %s238
      %p240 = scmp.eq.s32.totalorder %s34, 0
      %p241 = por %p239, %p240
      %s243 = sadd.s32 %s242, 1
      %p246 = scmp.eq.s32.totalorder %s28, 3
      %p247 = scmp.ne.s32.totalorder %s242, %s244
      %p248 = scmp.eq.s32.totalorder %s28, 0
      %p249 = por %p247, %p248
      %p250 = scmp.ne.s32.totalorder %s242, %s244
      %p251 = scmp.eq.s32.totalorder %s33, 3
      %p252 = por %p250, %p251
      %p253 = scmp.ne.s32.totalorder %s244, %s245
      %p254 = scmp.eq.s32.totalorder %s33, 0
      %p255 = por %p253, %p254
      %p256 = scmp.ne.s32.totalorder %s244, %s245
      %p257 = scmp.eq.s32.totalorder %s34, 3
      %p258 = por %p256, %p257
      %p260 = scmp.ne.s32.totalorder %s245, %s259
      %p261 = scmp.eq.s32.totalorder %s34, 0
      %p262 = por %p260, %p261
      %s264 = sadd.s32 %s263, 1
      %p267 = scmp.eq.s32.totalorder %s28, 3
      %p268 = scmp.ne.s32.totalorder %s263, %s265
      %p269 = scmp.eq.s32.totalorder %s28, 0
      %p270 = por %p268, %p269
      %p271 = scmp.ne.s32.totalorder %s263, %s265
      %p272 = scmp.eq.s32.totalorder %s33, 3
      %p273 = por %p271, %p272
      %p274 = scmp.ne.s32.totalorder %s265, %s266
      %p275 = scmp.eq.s32.totalorder %s33, 0
      %p276 = por %p274, %p275
      %p277 = scmp.ne.s32.totalorder %s265, %s266
      %p278 = scmp.eq.s32.totalorder %s34, 3
      %p279 = por %p277, %p278
      %p281 = scmp.ne.s32.totalorder %s266, %s280
      %p282 = scmp.eq.s32.totalorder %s34, 0
      %p283 = por %p281, %p282
      %s285 = sadd.s32 %s284, 1
      %p288 = scmp.eq.s32.totalorder %s28, 3
      %p289 = scmp.ne.s32.totalorder %s284, %s286
      %p290 = scmp.eq.s32.totalorder %s28, 0
      %p291 = por %p289, %p290
      %p292 = scmp.ne.s32.totalorder %s284, %s286
      %p293 = scmp.eq.s32.totalorder %s33, 3
      %p294 = por %p292, %p293
      %p295 = scmp.ne.s32.totalorder %s286, %s287
      %p296 = scmp.eq.s32.totalorder %s33, 0
      %p297 = por %p295, %p296
      %p298 = scmp.ne.s32.totalorder %s286, %s287
      %p299 = scmp.eq.s32.totalorder %s34, 3
      %p300 = por %p298, %p299
      %p302 = scmp.ne.s32.totalorder %s287, %s301
      %p303 = scmp.eq.s32.totalorder %s34, 0
      %p304 = por %p302, %p303
      %s305 = ssub.s32 %s35, %s47
      %s306 = ssub.s32 %s36, %s43
      %s307 = sor.u32 %s305, %s306
      %p308 = scmp.eq.s32.totalorder %s307, 0
      %s310 = sadd.s32 %s309, 1
      %s311 = scalar_select %p308, %s309, %s310
      %p314 = pneg %p308
      %p315 = scmp.eq.s32.totalorder %s28, 3
      %p316 = por %p314, %p315
      %p317 = scmp.ne.s32.totalorder %s309, %s312
      %p318 = scmp.eq.s32.totalorder %s28, 0
      %p319 = por %p317, %p318
      %p320 = scmp.ne.s32.totalorder %s309, %s312
      %p321 = scmp.eq.s32.totalorder %s33, 3
      %p322 = por %p320, %p321
      %p323 = scmp.ne.s32.totalorder %s312, %s313
      %p324 = scmp.eq.s32.totalorder %s33, 0
      %p325 = por %p323, %p324
      %p326 = scmp.ne.s32.totalorder %s312, %s313
      %p327 = scmp.eq.s32.totalorder %s34, 3
      %p328 = por %p326, %p327
      %p330 = scmp.ne.s32.totalorder %s313, %s329
      %p331 = scmp.eq.s32.totalorder %s34, 0
      %p332 = por %p330, %p331
      %p333 = scmp.le.s32.totalorder 1, %s28
      %p334 = scmp.lt.s32.totalorder %s28, 5
      %p335 = pnand %p333, %p334
      %p336 = pneg %p335
      // Predicated region
      $region9: #{tpu_custom_call.1} parent=5 // pred_check
        _
      $region10: #{tpu_custom_call.1} parent=5 // pred_check_branch
        %338 = sbr.rel (%p335) target = $region12
      $region11: #{tpu_custom_call.1} parent=5 // pred_region
        %s339 = ssub.s32 %s28, 1
        // Predicated region
        $region13: #{tpu_custom_call.1} parent=11 // pred_check
          %p340 = pneg %p87
        $region14: #{tpu_custom_call.1} parent=11 // pred_check_branch
          %342 = sbr.rel (%p340) target = $region16
        $region15: #{tpu_custom_call.1} parent=11 // pred_region
          %344 = vsyncadd [#allocation9], 0
          %s345 = sshll.u32 %s1, 4
          %s346 = int_to_ptr.hbm [resolvable:$true] %s345
          %s347 = sshll.u32 [#allocation8], 4
          %s348 = int_to_ptr.vmem [resolvable:$true] %s347
          %353 = dma.hbm_to_vmem [thread:$0]  %s346, 256, %s348, [#allocation9], 128, 128, 8
        $region16: #{tpu_custom_call.1} parent=11 // pred_fallthru
          _
        // Predicated region
        $region17: #{tpu_custom_call.1} parent=11 // pred_check
          %p354 = pneg %p108
        $region18: #{tpu_custom_call.1} parent=11 // pred_check_branch
          %356 = sbr.rel (%p354) target = $region20
        $region19: #{tpu_custom_call.1} parent=11 // pred_region
          %358 = vsyncadd [#allocation9], 0
          %s359 = sshll.u32 %s2, 4
          %s360 = int_to_ptr.hbm [resolvable:$true] %s359
          %s361 = sshll.u32 [#allocation10], 4
          %s362 = int_to_ptr.vmem [resolvable:$true] %s361
          %367 = dma.hbm_to_vmem [thread:$0]  %s360, 2048, %s362, [#allocation9], 128, 128, 8
        $region20: #{tpu_custom_call.1} parent=11 // pred_fallthru
          _
        // Predicated region
        $region21: #{tpu_custom_call.1} parent=11 // pred_check
          %p368 = pneg %p129
        $region22: #{tpu_custom_call.1} parent=11 // pred_check_branch
          %370 = sbr.rel (%p368) target = $region24
        $region23: #{tpu_custom_call.1} parent=11 // pred_region
          _
        $region24: #{tpu_custom_call.1} parent=11 // pred_fallthru
          _
        // Predicated region
        $region25: #{tpu_custom_call.1} parent=11 // pred_check
          %p371 = pneg %p150
        $region26: #{tpu_custom_call.1} parent=11 // pred_check_branch
          %373 = sbr.rel (%p371) target = $region28
        $region27: #{tpu_custom_call.1} parent=11 // pred_region
          %375 = vsyncadd [#allocation12], 0
          %s376 = sshll.u32 %s4, 4
          %s377 = int_to_ptr.hbm [resolvable:$true] %s376
          %s378 = sshll.u32 [#allocation11], 4
          %s379 = int_to_ptr.vmem [resolvable:$true] %s378
          %384 = dma.hbm_to_vmem [thread:$0]  %s377, 256, %s379, [#allocation12], 128, 128, 8
        $region28: #{tpu_custom_call.1} parent=11 // pred_fallthru
          _
        // Predicated region
        $region29: #{tpu_custom_call.1} parent=11 // pred_check
          %p385 = pneg %p171
        $region30: #{tpu_custom_call.1} parent=11 // pred_check_branch
          %387 = sbr.rel (%p385) target = $region32
        $region31: #{tpu_custom_call.1} parent=11 // pred_region
          %389 = vsyncadd [#allocation12], 0
          %s390 = sshll.u32 %s5, 4
          %s391 = int_to_ptr.hbm [resolvable:$true] %s390
          %s392 = sshll.u32 [#allocation13], 4
          %s393 = int_to_ptr.vmem [resolvable:$true] %s392
          %398 = dma.hbm_to_vmem [thread:$0]  %s391, 2048, %s393, [#allocation12], 128, 128, 8
        $region32: #{tpu_custom_call.1} parent=11 // pred_fallthru
          _
        // Predicated region
        $region33: #{tpu_custom_call.1} parent=11 // pred_check
          %p399 = pneg %p192
        $region34: #{tpu_custom_call.1} parent=11 // pred_check_branch
          %401 = sbr.rel (%p399) target = $region36
        $region35: #{tpu_custom_call.1} parent=11 // pred_region
          _
        $region36: #{tpu_custom_call.1} parent=11 // pred_fallthru
          _
        // Predicated region
        $region37: #{tpu_custom_call.1} parent=11 // pred_check
          %p402 = pneg %p213
        $region38: #{tpu_custom_call.1} parent=11 // pred_check_branch
          %404 = sbr.rel (%p402) target = $region40
        $region39: #{tpu_custom_call.1} parent=11 // pred_region
          %406 = vsyncadd [#allocation15], 0
          %s407 = sshll.u32 %s7, 4
          %s408 = int_to_ptr.hbm [resolvable:$true] %s407
          %s409 = sshll.u32 [#allocation14], 4
          %s410 = int_to_ptr.vmem [resolvable:$true] %s409
          %415 = dma.hbm_to_vmem [thread:$0]  %s408, 256, %s410, [#allocation15], 128, 128, 8
        $region40: #{tpu_custom_call.1} parent=11 // pred_fallthru
          _
        // Predicated region
        $region41: #{tpu_custom_call.1} parent=11 // pred_check
          %p416 = pneg %p234
        $region42: #{tpu_custom_call.1} parent=11 // pred_check_branch
          %418 = sbr.rel (%p416) target = $region44
        $region43: #{tpu_custom_call.1} parent=11 // pred_region
          %420 = vsyncadd [#allocation15], 0
          %s421 = sshll.u32 %s8, 4
          %s422 = int_to_ptr.hbm [resolvable:$true] %s421
          %s423 = sshll.u32 [#allocation16], 4
          %s424 = int_to_ptr.vmem [resolvable:$true] %s423
          %429 = dma.hbm_to_vmem [thread:$0]  %s422, 2048, %s424, [#allocation15], 128, 128, 8
        $region44: #{tpu_custom_call.1} parent=11 // pred_fallthru
          _
        // Predicated region
        $region45: #{tpu_custom_call.1} parent=11 // pred_check
          %p430 = pneg %p255
        $region46: #{tpu_custom_call.1} parent=11 // pred_check_branch
          %432 = sbr.rel (%p430) target = $region48
        $region47: #{tpu_custom_call.1} parent=11 // pred_region
          _
        $region48: #{tpu_custom_call.1} parent=11 // pred_fallthru
          _
        // Predicated region
        $region49: #{tpu_custom_call.1} parent=11 // pred_check
          %p433 = pneg %p276
        $region50: #{tpu_custom_call.1} parent=11 // pred_check_branch
          %435 = sbr.rel (%p433) target = $region52
        $region51: #{tpu_custom_call.1} parent=11 // pred_region
          %437 = vsyncadd [#allocation18], 0
          %s438 = sshll.u32 %s10, 4
          %s439 = int_to_ptr.hbm [resolvable:$true] %s438
          %s440 = sshll.u32 [#allocation17], 4
          %s441 = int_to_ptr.vmem [resolvable:$true] %s440
          %446 = dma.hbm_to_vmem [thread:$0]  %s439, 2048, %s441, [#allocation18], 128, 128, 8
        $region52: #{tpu_custom_call.1} parent=11 // pred_fallthru
          _
        // Predicated region
        $region53: #{tpu_custom_call.1} parent=11 // pred_check
          %p447 = pneg %p297
        $region54: #{tpu_custom_call.1} parent=11 // pred_check_branch
          %449 = sbr.rel (%p447) target = $region56
        $region55: #{tpu_custom_call.1} parent=11 // pred_region
          _
        $region56: #{tpu_custom_call.1} parent=11 // pred_fallthru
          _
      $region12: #{tpu_custom_call.1} parent=5 // pred_fallthru
        _
      %p450 = scmp.lt.s32.totalorder %s28, 4
      // Predicated region
      $region57: #{tpu_custom_call.1} parent=5 // pred_check
        %p451 = pneg %p450
      $region58: #{tpu_custom_call.1} parent=5 // pred_check_branch
        %453 = sbr.rel (%p451) target = $region60
      $region59: #{tpu_custom_call.1} parent=5 // pred_region
        // Predicated region
        $region61: #{tpu_custom_call.1} parent=59 // pred_check
          %p454 = pneg %p60
        $region62: #{tpu_custom_call.1} parent=59 // pred_check_branch
          %456 = sbr.rel (%p454) target = $region64
        $region63: #{tpu_custom_call.1} parent=59 // pred_region
          %s457 = sand.u32 %s50, 1
          %s458 = scalar_lea.sflag [#allocation6], %s457
          %s459 = sand.u32 %s50, 1
          %s460 = smul.addr %s459, 256
          %s461 = scalar_lea.vmem [#allocation5], %s460
          %463 = vsyncadd %s458, 0
          %s464 = smul.addr %s35, 32
          %s465 = smul.addr %s464, 8
          %s466 = scalar_lea.hbm %s0, %s465
          %s467 = sshll.u32 %s466, 4
          %s468 = int_to_ptr.hbm [resolvable:$true] %s467
          %s469 = sshll.u32 %s461, 4
          %s470 = int_to_ptr.vmem [resolvable:$true] %s469
          %475 = dma.hbm_to_vmem [thread:$0]  %s468, 4096, %s470, %s458, 128, 128, 8
        $region64: #{tpu_custom_call.1} parent=59 // pred_fallthru
          _
      $region60: #{tpu_custom_call.1} parent=5 // pred_fallthru
        _
      %p476 = scmp.le.s32.totalorder 1, %s28
      %p477 = scmp.lt.s32.totalorder %s28, 5
      %p478 = pnand %p476, %p477
      %p479 = pneg %p478
      // Predicated region
      $region65: #{tpu_custom_call.1} parent=5 // pred_check
        _
      $region66: #{tpu_custom_call.1} parent=5 // pred_check_branch
        %481 = sbr.rel (%p478) target = $region68
      $region67: #{tpu_custom_call.1} parent=5 // pred_region
        %s482 = ssub.s32 %s28, 1
        %s483 = sand.u32 %s53, 1
        %s484 = scalar_lea.sflag [#allocation6], %s483
        %s485 = sand.u32 %s53, 1
        %s486 = smul.addr %s485, 256
        %s487 = scalar_lea.vmem [#allocation5], %s486
        // Predicated region
        $region69: #{tpu_custom_call.1} parent=67 // pred_check
          %p488 = pneg %p66
        $region70: #{tpu_custom_call.1} parent=67 // pred_check_branch
          %490 = sbr.rel (%p488) target = $region72
        $region71: #{tpu_custom_call.1} parent=67 // pred_region
          %492 = dma.done %s484, 4096
        $region72: #{tpu_custom_call.1} parent=67 // pred_fallthru
          _
        // Predicated region
        $region73: #{tpu_custom_call.1} parent=67 // pred_check
          %p493 = pneg %p87
        $region74: #{tpu_custom_call.1} parent=67 // pred_check_branch
          %495 = sbr.rel (%p493) target = $region76
        $region75: #{tpu_custom_call.1} parent=67 // pred_region
          %497 = dma.done [#allocation9], 256
        $region76: #{tpu_custom_call.1} parent=67 // pred_fallthru
          _
        // Predicated region
        $region77: #{tpu_custom_call.1} parent=67 // pred_check
          %p498 = pneg %p108
        $region78: #{tpu_custom_call.1} parent=67 // pred_check_branch
          %500 = sbr.rel (%p498) target = $region80
        $region79: #{tpu_custom_call.1} parent=67 // pred_region
          %502 = dma.done [#allocation9], 2048
        $region80: #{tpu_custom_call.1} parent=67 // pred_fallthru
          _
        // Predicated region
        $region81: #{tpu_custom_call.1} parent=67 // pred_check
          %p503 = pneg %p150
        $region82: #{tpu_custom_call.1} parent=67 // pred_check_branch
          %505 = sbr.rel (%p503) target = $region84
        $region83: #{tpu_custom_call.1} parent=67 // pred_region
          %507 = dma.done [#allocation12], 256
        $region84: #{tpu_custom_call.1} parent=67 // pred_fallthru
          _
        // Predicated region
        $region85: #{tpu_custom_call.1} parent=67 // pred_check
          %p508 = pneg %p171
        $region86: #{tpu_custom_call.1} parent=67 // pred_check_branch
          %510 = sbr.rel (%p508) target = $region88
        $region87: #{tpu_custom_call.1} parent=67 // pred_region
          %512 = dma.done [#allocation12], 2048
        $region88: #{tpu_custom_call.1} parent=67 // pred_fallthru
          _
        // Predicated region
        $region89: #{tpu_custom_call.1} parent=67 // pred_check
          %p513 = pneg %p213
        $region90: #{tpu_custom_call.1} parent=67 // pred_check_branch
          %515 = sbr.rel (%p513) target = $region92
        $region91: #{tpu_custom_call.1} parent=67 // pred_region
          %517 = dma.done [#allocation15], 256
        $region92: #{tpu_custom_call.1} parent=67 // pred_fallthru
          _
        // Predicated region
        $region93: #{tpu_custom_call.1} parent=67 // pred_check
          %p518 = pneg %p234
        $region94: #{tpu_custom_call.1} parent=67 // pred_check_branch
          %520 = sbr.rel (%p518) target = $region96
        $region95: #{tpu_custom_call.1} parent=67 // pred_region
          %522 = dma.done [#allocation15], 2048
        $region96: #{tpu_custom_call.1} parent=67 // pred_fallthru
          _
        // Predicated region
        $region97: #{tpu_custom_call.1} parent=67 // pred_check
          %p523 = pneg %p276
        $region98: #{tpu_custom_call.1} parent=67 // pred_check_branch
          %525 = sbr.rel (%p523) target = $region100
        $region99: #{tpu_custom_call.1} parent=67 // pred_region
          %527 = dma.done [#allocation18], 2048
        $region100: #{tpu_custom_call.1} parent=67 // pred_fallthru
          _
        %s528 = sand.u32 %s53, 1
        %s529 = scalar_lea.sflag [#allocation6], %s528
        %s530 = sand.u32 %s53, 1
        %s531 = smul.addr %s530, 256
        %s532 = scalar_lea.vmem [#allocation5], %s531
        %p533 = pneg %p66
        %p534 = pneg %p63
        %p535 = pneg %p87
        %p536 = pneg %p84
        %p537 = pneg %p108
        %p538 = pneg %p105
        %p539 = pneg %p129
        %p540 = pneg %p126
        %p541 = pneg %p150
        %p542 = pneg %p147
        %p543 = pneg %p171
        %p544 = pneg %p168
        %p545 = pneg %p192
        %p546 = pneg %p189
        %p547 = pneg %p213
        %p548 = pneg %p210
        %p549 = pneg %p234
        %p550 = pneg %p231
        %p551 = pneg %p255
        %p552 = pneg %p252
        %p553 = pneg %p276
        %p554 = pneg %p273
        %p555 = pneg %p297
        %p556 = pneg %p294
        %p557 = pneg %p325
        %p558 = pneg %p322
        %s559 = sand.u32 %s312, 1
        %s560 = scalar_lea.sflag [#allocation7], %s559
        %s561 = sand.u32 %s312, 1
        %s562 = smul.addr %s561, 128
        %s563 = scalar_lea.vmem [#allocation19], %s562
        %s564 = smul.u32 16, %s38
        %s565 = smul.u32 %s38, 8
        %566 = vst [vmem:[#allocation2] sm:$0xff] 0.0
        %567 = vst [vmem:[#allocation2 + $0x8] sm:$0xff] 0.0
        %568 = vst [vmem:[#allocation2 + $0x10] sm:$0x3] 0.0
        %569 = vst [vmem:[#allocation2 + $0x18] sm:$0xff] 0.0
        %570 = vst [vmem:[#allocation2 + $0x20] sm:$0xff] 0.0
        %571 = vst [vmem:[#allocation2 + $0x28] sm:$0x3] 0.0
        %572 = vst [vmem:[#allocation2 + $0x30] sm:$0xff] 0.0
        %573 = vst [vmem:[#allocation2 + $0x38] sm:$0xff] 0.0
        %574 = vst [vmem:[#allocation2 + $0x40] sm:$0x3] 0.0
        %575 = vst [vmem:[#allocation2 + $0x48] sm:$0xff] 0.0
        %576 = vst [vmem:[#allocation2 + $0x50] sm:$0xff] 0.0
        %577 = vst [vmem:[#allocation2 + $0x58] sm:$0x3] 0.0
        %578 = vst [vmem:[#allocation2 + $0x60] sm:$0xff] 0.0
        %579 = vst [vmem:[#allocation2 + $0x68] sm:$0xff] 0.0
        %580 = vst [vmem:[#allocation2 + $0x70] sm:$0x3] 0.0
        %581 = vst [vmem:[#allocation2 + $0x78] sm:$0xff] 0.0
        %582 = vst [vmem:[#allocation2 + $0x80] sm:$0xff] 0.0
        %583 = vst [vmem:[#allocation2 + $0x88] sm:$0x3] 0.0
        %584 = vst [vmem:[#allocation2 + $0x90] sm:$0xff] 0.0
        %585 = vst [vmem:[#allocation2 + $0x98] sm:$0xff] 0.0
        %586 = vst [vmem:[#allocation2 + $0xa0] sm:$0x3] 0.0
        %587 = vst [vmem:[#allocation2 + $0xa8] sm:$0xff] 0.0
        %588 = vst [vmem:[#allocation2 + $0xb0] sm:$0xff] 0.0
        %589 = vst [vmem:[#allocation2 + $0xb8] sm:$0x3] 0.0
        %590 = vst [vmem:[#allocation2 + $0xc0] sm:$0xff] 0.0
        %591 = vst [vmem:[#allocation2 + $0xc8] sm:$0xff] 0.0
        %592 = vst [vmem:[#allocation2 + $0xd0] sm:$0x3] 0.0
        %593 = vst [vmem:[#allocation2 + $0xd8] sm:$0xff] 0.0
        %594 = vst [vmem:[#allocation2 + $0xe0] sm:$0xff] 0.0
        %595 = vst [vmem:[#allocation2 + $0xe8] sm:$0x3] 0.0
        %596 = vst [vmem:[#allocation2 + $0xf0] sm:$0xff] 0.0
        %597 = vst [vmem:[#allocation2 + $0xf8] sm:$0xff] 0.0
        %598 = vst [vmem:[#allocation2 + $0x100] sm:$0x3] 0.0
        %599 = vst [vmem:[#allocation2 + $0x108] sm:$0xff] 0.0
        %600 = vst [vmem:[#allocation2 + $0x110] sm:$0xff] 0.0
        %601 = vst [vmem:[#allocation2 + $0x118] sm:$0x3] 0.0
        %602 = vst [vmem:[#allocation2 + $0x120] sm:$0xff] 0.0
        %603 = vst [vmem:[#allocation2 + $0x128] sm:$0xff] 0.0
        %604 = vst [vmem:[#allocation2 + $0x130] sm:$0x3] 0.0
        %605 = vst [vmem:[#allocation2 + $0x138] sm:$0xff] 0.0
        %606 = vst [vmem:[#allocation2 + $0x140] sm:$0xff] 0.0
        %607 = vst [vmem:[#allocation2 + $0x148] sm:$0x3] 0.0
        %608 = vst [vmem:[#allocation2 + $0x150] sm:$0xff] 0.0
        %609 = vst [vmem:[#allocation2 + $0x158] sm:$0xff] 0.0
        %610 = vst [vmem:[#allocation2 + $0x160] sm:$0x3] 0.0
        %611 = vst [vmem:[#allocation2 + $0x168] sm:$0xff] 0.0
        %612 = vst [vmem:[#allocation2 + $0x170] sm:$0xff] 0.0
        %613 = vst [vmem:[#allocation2 + $0x178] sm:$0x3] 0.0
        %614 = vst [vmem:[#allocation2 + $0x180] sm:$0xff] 0.0
        %615 = vst [vmem:[#allocation2 + $0x188] sm:$0xff] 0.0
        %616 = vst [vmem:[#allocation2 + $0x190] sm:$0x3] 0.0
        %617 = vst [vmem:[#allocation2 + $0x198] sm:$0xff] 0.0
        %618 = vst [vmem:[#allocation2 + $0x1a0] sm:$0xff] 0.0
        %619 = vst [vmem:[#allocation2 + $0x1a8] sm:$0x3] 0.0
        %620 = vst [vmem:[#allocation2 + $0x1b0] sm:$0xff] 0.0
        %621 = vst [vmem:[#allocation2 + $0x1b8] sm:$0xff] 0.0
        %622 = vst [vmem:[#allocation2 + $0x1c0] sm:$0x3] 0.0
        %623 = vst [vmem:[#allocation2 + $0x1c8] sm:$0xff] 0.0
        %624 = vst [vmem:[#allocation2 + $0x1d0] sm:$0xff] 0.0
        %625 = vst [vmem:[#allocation2 + $0x1d8] sm:$0x3] 0.0
        %626 = vst [vmem:[#allocation2 + $0x1e0] sm:$0xff] 0.0
        %627 = vst [vmem:[#allocation2 + $0x1e8] sm:$0xff] 0.0
        %628 = vst [vmem:[#allocation2 + $0x1f0] sm:$0x3] 0.0
        %629 = vst [vmem:[#allocation2 + $0x1f8] sm:$0xff] 0.0
        %630 = vst [vmem:[#allocation2 + $0x200] sm:$0xff] 0.0
        %631 = vst [vmem:[#allocation2 + $0x208] sm:$0x3] 0.0
        %v632 = vld [vmem:[%s487] sm:$0xff]
        %v633 = vld [vmem:[%s487 + $0x8] sm:$0xff]
        %v634 = vld [vmem:[%s487 + $0x10] sm:$0xff]
        %v635 = vld [vmem:[%s487 + $0x18] sm:$0xff]
        %v636 = vld [vmem:[%s487 + $0x20] sm:$0xff]
        %v637 = vld [vmem:[%s487 + $0x28] sm:$0xff]
        %v638 = vld [vmem:[%s487 + $0x30] sm:$0xff]
        %v639 = vld [vmem:[%s487 + $0x38] sm:$0xff]
        %v640 = vld [vmem:[%s487 + $0x40] sm:$0xff]
        %v641 = vld [vmem:[%s487 + $0x48] sm:$0xff]
        %v642 = vld [vmem:[%s487 + $0x50] sm:$0xff]
        %v643 = vld [vmem:[%s487 + $0x58] sm:$0xff]
        %v644 = vld [vmem:[%s487 + $0x60] sm:$0xff]
        %v645 = vld [vmem:[%s487 + $0x68] sm:$0xff]
        %v646 = vld [vmem:[%s487 + $0x70] sm:$0xff]
        %v647 = vld [vmem:[%s487 + $0x78] sm:$0xff]
        %v648 = vld [vmem:[%s487 + $0x80] sm:$0xff]
        %v649 = vld [vmem:[%s487 + $0x88] sm:$0xff]
        %v650 = vld [vmem:[%s487 + $0x90] sm:$0xff]
        %v651 = vld [vmem:[%s487 + $0x98] sm:$0xff]
        %v652 = vld [vmem:[%s487 + $0xa0] sm:$0xff]
        %v653 = vld [vmem:[%s487 + $0xa8] sm:$0xff]
        %v654 = vld [vmem:[%s487 + $0xb0] sm:$0xff]
        %v655 = vld [vmem:[%s487 + $0xb8] sm:$0xff]
        %v656 = vld [vmem:[%s487 + $0xc0] sm:$0xff]
        %v657 = vld [vmem:[%s487 + $0xc8] sm:$0xff]
        %v658 = vld [vmem:[%s487 + $0xd0] sm:$0xff]
        %v659 = vld [vmem:[%s487 + $0xd8] sm:$0xff]
        %v660 = vld [vmem:[%s487 + $0xe0] sm:$0xff]
        %v661 = vld [vmem:[%s487 + $0xe8] sm:$0xff]
        %v662 = vld [vmem:[%s487 + $0xf0] sm:$0xff]
        %v663 = vld [vmem:[%s487 + $0xf8] sm:$0xff]
        %v664 = vmax.f32 %v632, 0.0
        %v665 = vmax.f32 %v633, 0.0
        %v666 = vmax.f32 %v634, 0.0
        %v667 = vmax.f32 %v635, 0.0
        %v668 = vmax.f32 %v636, 0.0
        %v669 = vmax.f32 %v637, 0.0
        %v670 = vmax.f32 %v638, 0.0
        %v671 = vmax.f32 %v639, 0.0
        %v672 = vmax.f32 %v640, 0.0
        %v673 = vmax.f32 %v641, 0.0
        %v674 = vmax.f32 %v642, 0.0
        %v675 = vmax.f32 %v643, 0.0
        %v676 = vmax.f32 %v644, 0.0
        %v677 = vmax.f32 %v645, 0.0
        %v678 = vmax.f32 %v646, 0.0
        %v679 = vmax.f32 %v647, 0.0
        %v680 = vmax.f32 %v648, 0.0
        %v681 = vmax.f32 %v649, 0.0
        %v682 = vmax.f32 %v650, 0.0
        %v683 = vmax.f32 %v651, 0.0
        %v684 = vmax.f32 %v652, 0.0
        %v685 = vmax.f32 %v653, 0.0
        %v686 = vmax.f32 %v654, 0.0
        %v687 = vmax.f32 %v655, 0.0
        %v688 = vmax.f32 %v656, 0.0
        %v689 = vmax.f32 %v657, 0.0
        %v690 = vmax.f32 %v658, 0.0
        %v691 = vmax.f32 %v659, 0.0
        %v692 = vmax.f32 %v660, 0.0
        %v693 = vmax.f32 %v661, 0.0
        %v694 = vmax.f32 %v662, 0.0
        %v695 = vmax.f32 %v663, 0.0
        %s696 = scalar_lea.vmem [#allocation2], 72
        %697 = vst [vmem:[%s696 + $0x1] sm:$0xff] %v664
        %698 = vst [vmem:[%s696 + $0x9] sm:$0xff] %v665
        %699 = vst [vmem:[%s696 + $0x19] sm:$0xff] %v666
        %700 = vst [vmem:[%s696 + $0x21] sm:$0xff] %v667
        %701 = vst [vmem:[%s696 + $0x31] sm:$0xff] %v668
        %702 = vst [vmem:[%s696 + $0x39] sm:$0xff] %v669
        %703 = vst [vmem:[%s696 + $0x49] sm:$0xff] %v670
        %704 = vst [vmem:[%s696 + $0x51] sm:$0xff] %v671
        %705 = vst [vmem:[%s696 + $0x61] sm:$0xff] %v672
        %706 = vst [vmem:[%s696 + $0x69] sm:$0xff] %v673
        %707 = vst [vmem:[%s696 + $0x79] sm:$0xff] %v674
        %708 = vst [vmem:[%s696 + $0x81] sm:$0xff] %v675
        %709 = vst [vmem:[%s696 + $0x91] sm:$0xff] %v676
        %710 = vst [vmem:[%s696 + $0x99] sm:$0xff] %v677
        %711 = vst [vmem:[%s696 + $0xa9] sm:$0xff] %v678
        %712 = vst [vmem:[%s696 + $0xb1] sm:$0xff] %v679
        %713 = vst [vmem:[%s696 + $0xc1] sm:$0xff] %v680
        %714 = vst [vmem:[%s696 + $0xc9] sm:$0xff] %v681
        %715 = vst [vmem:[%s696 + $0xd9] sm:$0xff] %v682
        %716 = vst [vmem:[%s696 + $0xe1] sm:$0xff] %v683
        %717 = vst [vmem:[%s696 + $0xf1] sm:$0xff] %v684
        %718 = vst [vmem:[%s696 + $0xf9] sm:$0xff] %v685
        %719 = vst [vmem:[%s696 + $0x109] sm:$0xff] %v686
        %720 = vst [vmem:[%s696 + $0x111] sm:$0xff] %v687
        %721 = vst [vmem:[%s696 + $0x121] sm:$0xff] %v688
        %722 = vst [vmem:[%s696 + $0x129] sm:$0xff] %v689
        %723 = vst [vmem:[%s696 + $0x139] sm:$0xff] %v690
        %724 = vst [vmem:[%s696 + $0x141] sm:$0xff] %v691
        %725 = vst [vmem:[%s696 + $0x151] sm:$0xff] %v692
        %726 = vst [vmem:[%s696 + $0x159] sm:$0xff] %v693
        %727 = vst [vmem:[%s696 + $0x169] sm:$0xff] %v694
        %728 = vst [vmem:[%s696 + $0x171] sm:$0xff] %v695
        %s729 = smul.u32 %s565, 24
        %s730 = scalar_lea.vmem [#allocation2], %s729
        %v731 = vld [vmem:[%s730] sm:$0xff]
        %v732 = vld [vmem:[%s730 + $0x8] sm:$0xff]
        %v733 = vld [vmem:[%s730 + $0x10] sm:$0x3]
        %v734 = vld [vmem:[%s730 + $0x18] sm:$0xff]
        %v735 = vld [vmem:[%s730 + $0x20] sm:$0xff]
        %v736 = vld [vmem:[%s730 + $0x28] sm:$0x3]
        %v737 = vld [vmem:[%s730 + $0x30] sm:$0xff]
        %v738 = vld [vmem:[%s730 + $0x38] sm:$0xff]
        %v739 = vld [vmem:[%s730 + $0x40] sm:$0x3]
        %v740 = vld [vmem:[%s730 + $0x48] sm:$0xff]
        %v741 = vld [vmem:[%s730 + $0x50] sm:$0xff]
        %v742 = vld [vmem:[%s730 + $0x58] sm:$0x3]
        %v743 = vld [vmem:[%s730 + $0x60] sm:$0xff]
        %v744 = vld [vmem:[%s730 + $0x68] sm:$0xff]
        %v745 = vld [vmem:[%s730 + $0x70] sm:$0x3]
        %v746 = vld [vmem:[%s730 + $0x78] sm:$0xff]
        %v747 = vld [vmem:[%s730 + $0x80] sm:$0xff]
        %v748 = vld [vmem:[%s730 + $0x88] sm:$0x3]
        %v749 = vld [vmem:[%s730 + $0x90] sm:$0xff]
        %v750 = vld [vmem:[%s730 + $0x98] sm:$0xff]
        %v751 = vld [vmem:[%s730 + $0xa0] sm:$0x3]
        %v752 = vld [vmem:[%s730 + $0xa8] sm:$0xff]
        %v753 = vld [vmem:[%s730 + $0xb0] sm:$0xff]
        %v754 = vld [vmem:[%s730 + $0xb8] sm:$0x3]
        %v755 = vld [vmem:[%s730 + $0xc0] sm:$0xff]
        %v756 = vld [vmem:[%s730 + $0xc8] sm:$0xff]
        %v757 = vld [vmem:[%s730 + $0xd0] sm:$0x3]
        %v758 = vld [vmem:[%s730 + $0xd8] sm:$0xff]
        %v759 = vld [vmem:[%s730 + $0xe0] sm:$0xff]
        %v760 = vld [vmem:[%s730 + $0xe8] sm:$0x3]
        %v761 = vld [vmem:[%s730 + $0xf0] sm:$0xff]
        %v762 = vld [vmem:[%s730 + $0xf8] sm:$0xff]
        %v763 = vld [vmem:[%s730 + $0x100] sm:$0x3]
        %v764 = vld [vmem:[%s730 + $0x108] sm:$0xff]
        %v765 = vld [vmem:[%s730 + $0x110] sm:$0xff]
        %v766 = vld [vmem:[%s730 + $0x118] sm:$0x3]
        %v767 = vld [vmem:[%s730 + $0x120] sm:$0xff]
        %v768 = vld [vmem:[%s730 + $0x128] sm:$0xff]
        %v769 = vld [vmem:[%s730 + $0x130] sm:$0x3]
        %v770 = vld [vmem:[%s730 + $0x138] sm:$0xff]
        %v771 = vld [vmem:[%s730 + $0x140] sm:$0xff]
        %v772 = vld [vmem:[%s730 + $0x148] sm:$0x3]
        %v773 = vld [vmem:[#allocation8] sm:$0xff]
        %v774 = vld [vmem:[#allocation8 + $0x8] sm:$0x1]
        %v775 = vperm.slane %v773, 0
        %v776 = vmul.f32 %v731, %v775
        %v777 = vmul.f32 %v732, %v775
        %v778 = vmul.f32 %v734, %v775
        %v779 = vmul.f32 %v735, %v775
        %v780 = vmul.f32 %v737, %v775
        %v781 = vmul.f32 %v738, %v775
        %v782 = vmul.f32 %v740, %v775
        %v783 = vmul.f32 %v741, %v775
        %v784 = vmul.f32 %v743, %v775
        %v785 = vmul.f32 %v744, %v775
        %v786 = vmul.f32 %v746, %v775
        %v787 = vmul.f32 %v747, %v775
        %v788 = vmul.f32 %v749, %v775
        %v789 = vmul.f32 %v750, %v775
        %v790 = vmul.f32 %v752, %v775
        %v791 = vmul.f32 %v753, %v775
        %v792 = vmul.f32 %v755, %v775
        %v793 = vmul.f32 %v756, %v775
        %v794 = vmul.f32 %v758, %v775
        %v795 = vmul.f32 %v759, %v775
        %v796 = vmul.f32 %v761, %v775
        %v797 = vmul.f32 %v762, %v775
        %v798 = vmul.f32 %v764, %v775
        %v799 = vmul.f32 %v765, %v775
        %v800 = vadd.f32 %v776, 0.0
        %v801 = vadd.f32 %v777, 0.0
        %v802 = vadd.f32 %v778, 0.0
        %v803 = vadd.f32 %v779, 0.0
        %v804 = vadd.f32 %v780, 0.0
        %v805 = vadd.f32 %v781, 0.0
        %v806 = vadd.f32 %v782, 0.0
        %v807 = vadd.f32 %v783, 0.0
        %v808 = vadd.f32 %v784, 0.0
        %v809 = vadd.f32 %v785, 0.0
        %v810 = vadd.f32 %v786, 0.0
        %v811 = vadd.f32 %v787, 0.0
        %v812 = vadd.f32 %v788, 0.0
        %v813 = vadd.f32 %v789, 0.0
        %v814 = vadd.f32 %v790, 0.0
        %v815 = vadd.f32 %v791, 0.0
        %v816 = vadd.f32 %v792, 0.0
        %v817 = vadd.f32 %v793, 0.0
        %v818 = vadd.f32 %v794, 0.0
        %v819 = vadd.f32 %v795, 0.0
        %v820 = vadd.f32 %v796, 0.0
        %v821 = vadd.f32 %v797, 0.0
        %v822 = vadd.f32 %v798, 0.0
        %v823 = vadd.f32 %v799, 0.0
        %v824 = vperm.slane %v773, 3
        %v825 = vmul.f32 %v734, %v824
        %v826 = vmul.f32 %v735, %v824
        %v827 = vmul.f32 %v737, %v824
        %v828 = vmul.f32 %v738, %v824
        %v829 = vmul.f32 %v740, %v824
        %v830 = vmul.f32 %v741, %v824
        %v831 = vmul.f32 %v743, %v824
        %v832 = vmul.f32 %v744, %v824
        %v833 = vmul.f32 %v746, %v824
        %v834 = vmul.f32 %v747, %v824
        %v835 = vmul.f32 %v749, %v824
        %v836 = vmul.f32 %v750, %v824
        %v837 = vmul.f32 %v752, %v824
        %v838 = vmul.f32 %v753, %v824
        %v839 = vmul.f32 %v755, %v824
        %v840 = vmul.f32 %v756, %v824
        %v841 = vmul.f32 %v758, %v824
        %v842 = vmul.f32 %v759, %v824
        %v843 = vmul.f32 %v761, %v824
        %v844 = vmul.f32 %v762, %v824
        %v845 = vmul.f32 %v764, %v824
        %v846 = vmul.f32 %v765, %v824
        %v847 = vmul.f32 %v767, %v824
        %v848 = vmul.f32 %v768, %v824
        %v849 = vadd.f32 %v800, %v825
        %v850 = vadd.f32 %v801, %v826
        %v851 = vadd.f32 %v802, %v827
        %v852 = vadd.f32 %v803, %v828
        %v853 = vadd.f32 %v804, %v829
        %v854 = vadd.f32 %v805, %v830
        %v855 = vadd.f32 %v806, %v831
        %v856 = vadd.f32 %v807, %v832
        %v857 = vadd.f32 %v808, %v833
        %v858 = vadd.f32 %v809, %v834
        %v859 = vadd.f32 %v810, %v835
        %v860 = vadd.f32 %v811, %v836
        %v861 = vadd.f32 %v812, %v837
        %v862 = vadd.f32 %v813, %v838
        %v863 = vadd.f32 %v814, %v839
        %v864 = vadd.f32 %v815, %v840
        %v865 = vadd.f32 %v816, %v841
        %v866 = vadd.f32 %v817, %v842
        %v867 = vadd.f32 %v818, %v843
        %v868 = vadd.f32 %v819, %v844
        %v869 = vadd.f32 %v820, %v845
        %v870 = vadd.f32 %v821, %v846
        %v871 = vadd.f32 %v822, %v847
        %v872 = vadd.f32 %v823, %v848
        %v873 = vperm.slane %v773, 6
        %v874 = vmul.f32 %v737, %v873
        %v875 = vmul.f32 %v738, %v873
        %v876 = vmul.f32 %v740, %v873
        %v877 = vmul.f32 %v741, %v873
        %v878 = vmul.f32 %v743, %v873
        %v879 = vmul.f32 %v744, %v873
        %v880 = vmul.f32 %v746, %v873
        %v881 = vmul.f32 %v747, %v873
        %v882 = vmul.f32 %v749, %v873
        %v883 = vmul.f32 %v750, %v873
        %v884 = vmul.f32 %v752, %v873
        %v885 = vmul.f32 %v753, %v873
        %v886 = vmul.f32 %v755, %v873
        %v887 = vmul.f32 %v756, %v873
        %v888 = vmul.f32 %v758, %v873
        %v889 = vmul.f32 %v759, %v873
        %v890 = vmul.f32 %v761, %v873
        %v891 = vmul.f32 %v762, %v873
        %v892 = vmul.f32 %v764, %v873
        %v893 = vmul.f32 %v765, %v873
        %v894 = vmul.f32 %v767, %v873
        %v895 = vmul.f32 %v768, %v873
        %v896 = vmul.f32 %v770, %v873
        %v897 = vmul.f32 %v771, %v873
        %v898 = vadd.f32 %v849, %v874
        %v899 = vadd.f32 %v850, %v875
        %v900 = vadd.f32 %v851, %v876
        %v901 = vadd.f32 %v852, %v877
        %v902 = vadd.f32 %v853, %v878
        %v903 = vadd.f32 %v854, %v879
        %v904 = vadd.f32 %v855, %v880
        %v905 = vadd.f32 %v856, %v881
        %v906 = vadd.f32 %v857, %v882
        %v907 = vadd.f32 %v858, %v883
        %v908 = vadd.f32 %v859, %v884
        %v909 = vadd.f32 %v860, %v885
        %v910 = vadd.f32 %v861, %v886
        %v911 = vadd.f32 %v862, %v887
        %v912 = vadd.f32 %v863, %v888
        %v913 = vadd.f32 %v864, %v889
        %v914 = vadd.f32 %v865, %v890
        %v915 = vadd.f32 %v866, %v891
        %v916 = vadd.f32 %v867, %v892
        %v917 = vadd.f32 %v868, %v893
        %v918 = vadd.f32 %v869, %v894
        %v919 = vadd.f32 %v870, %v895
        %v920 = vadd.f32 %v871, %v896
        %v921 = vadd.f32 %v872, %v897
        %v922 = vperm.slane %v773, 1
        %v923 = vmul.f32 %v731, %v922
        %v924 = vmul.f32 %v732, %v922
        %v925 = vmul.f32 %v733, %v922
        %v926 = vmul.f32 %v734, %v922
        %v927 = vmul.f32 %v735, %v922
        %v928 = vmul.f32 %v736, %v922
        %v929 = vmul.f32 %v737, %v922
        %v930 = vmul.f32 %v738, %v922
        %v931 = vmul.f32 %v739, %v922
        %v932 = vmul.f32 %v740, %v922
        %v933 = vmul.f32 %v741, %v922
        %v934 = vmul.f32 %v742, %v922
        %v935 = vmul.f32 %v743, %v922
        %v936 = vmul.f32 %v744, %v922
        %v937 = vmul.f32 %v745, %v922
        %v938 = vmul.f32 %v746, %v922
        %v939 = vmul.f32 %v747, %v922
        %v940 = vmul.f32 %v748, %v922
        %v941 = vmul.f32 %v749, %v922
        %v942 = vmul.f32 %v750, %v922
        %v943 = vmul.f32 %v751, %v922
        %v944 = vmul.f32 %v752, %v922
        %v945 = vmul.f32 %v753, %v922
        %v946 = vmul.f32 %v754, %v922
        %v947 = vmul.f32 %v755, %v922
        %v948 = vmul.f32 %v756, %v922
        %v949 = vmul.f32 %v757, %v922
        %v950 = vmul.f32 %v758, %v922
        %v951 = vmul.f32 %v759, %v922
        %v952 = vmul.f32 %v760, %v922
        %v953 = vmul.f32 %v761, %v922
        %v954 = vmul.f32 %v762, %v922
        %v955 = vmul.f32 %v763, %v922
        %v956 = vmul.f32 %v764, %v922
        %v957 = vmul.f32 %v765, %v922
        %v958 = vmul.f32 %v766, %v922
        %vm995 = vcmask 1046528
        %v996 = vrot.slane %v923, 1
        %v997 = vrot.slane %v924, 1
        %v998 = vsel %vm995, %v996, %v997
        %v999 = vrot.slane %v925, 1
        %v1000 = vsel %vm995, %v997, %v999
        %v1001 = vrot.slane %v926, 1
        %v1002 = vrot.slane %v927, 1
        %v1003 = vsel %vm995, %v1001, %v1002
        %v1004 = vrot.slane %v928, 1
        %v1005 = vsel %vm995, %v1002, %v1004
        %v1006 = vrot.slane %v929, 1
        %v1007 = vrot.slane %v930, 1
        %v1008 = vsel %vm995, %v1006, %v1007
        %v1009 = vrot.slane %v931, 1
        %v1010 = vsel %vm995, %v1007, %v1009
        %v1011 = vrot.slane %v932, 1
        %v1012 = vrot.slane %v933, 1
        %v1013 = vsel %vm995, %v1011, %v1012
        %v1014 = vrot.slane %v934, 1
        %v1015 = vsel %vm995, %v1012, %v1014
        %v1016 = vrot.slane %v935, 1
        %v1017 = vrot.slane %v936, 1
        %v1018 = vsel %vm995, %v1016, %v1017
        %v1019 = vrot.slane %v937, 1
        %v1020 = vsel %vm995, %v1017, %v1019
        %v1021 = vrot.slane %v938, 1
        %v1022 = vrot.slane %v939, 1
        %v1023 = vsel %vm995, %v1021, %v1022
        %v1024 = vrot.slane %v940, 1
        %v1025 = vsel %vm995, %v1022, %v1024
        %v1026 = vrot.slane %v941, 1
        %v1027 = vrot.slane %v942, 1
        %v1028 = vsel %vm995, %v1026, %v1027
        %v1029 = vrot.slane %v943, 1
        %v1030 = vsel %vm995, %v1027, %v1029
        %v1031 = vrot.slane %v944, 1
        %v1032 = vrot.slane %v945, 1
        %v1033 = vsel %vm995, %v1031, %v1032
        %v1034 = vrot.slane %v946, 1
        %v1035 = vsel %vm995, %v1032, %v1034
        %v1036 = vrot.slane %v947, 1
        %v1037 = vrot.slane %v948, 1
        %v1038 = vsel %vm995, %v1036, %v1037
        %v1039 = vrot.slane %v949, 1
        %v1040 = vsel %vm995, %v1037, %v1039
        %v1041 = vrot.slane %v950, 1
        %v1042 = vrot.slane %v951, 1
        %v1043 = vsel %vm995, %v1041, %v1042
        %v1044 = vrot.slane %v952, 1
        %v1045 = vsel %vm995, %v1042, %v1044
        %v1046 = vrot.slane %v953, 1
        %v1047 = vrot.slane %v954, 1
        %v1048 = vsel %vm995, %v1046, %v1047
        %v1049 = vrot.slane %v955, 1
        %v1050 = vsel %vm995, %v1047, %v1049
        %v1051 = vrot.slane %v956, 1
        %v1052 = vrot.slane %v957, 1
        %v1053 = vsel %vm995, %v1051, %v1052
        %v1054 = vrot.slane %v958, 1
        %v1055 = vsel %vm995, %v1052, %v1054
        %v1080 = vadd.f32 %v898, %v998
        %v1081 = vadd.f32 %v899, %v1000
        %v1082 = vadd.f32 %v900, %v1003
        %v1083 = vadd.f32 %v901, %v1005
        %v1084 = vadd.f32 %v902, %v1008
        %v1085 = vadd.f32 %v903, %v1010
        %v1086 = vadd.f32 %v904, %v1013
        %v1087 = vadd.f32 %v905, %v1015
        %v1088 = vadd.f32 %v906, %v1018
        %v1089 = vadd.f32 %v907, %v1020
        %v1090 = vadd.f32 %v908, %v1023
        %v1091 = vadd.f32 %v909, %v1025
        %v1092 = vadd.f32 %v910, %v1028
        %v1093 = vadd.f32 %v911, %v1030
        %v1094 = vadd.f32 %v912, %v1033
        %v1095 = vadd.f32 %v913, %v1035
        %v1096 = vadd.f32 %v914, %v1038
        %v1097 = vadd.f32 %v915, %v1040
        %v1098 = vadd.f32 %v916, %v1043
        %v1099 = vadd.f32 %v917, %v1045
        %v1100 = vadd.f32 %v918, %v1048
        %v1101 = vadd.f32 %v919, %v1050
        %v1102 = vadd.f32 %v920, %v1053
        %v1103 = vadd.f32 %v921, %v1055
        %v1104 = vperm.slane %v773, 4
        %v1105 = vmul.f32 %v734, %v1104
        %v1106 = vmul.f32 %v735, %v1104
        %v1107 = vmul.f32 %v736, %v1104
        %v1108 = vmul.f32 %v737, %v1104
        %v1109 = vmul.f32 %v738, %v1104
        %v1110 = vmul.f32 %v739, %v1104
        %v1111 = vmul.f32 %v740, %v1104
        %v1112 = vmul.f32 %v741, %v1104
        %v1113 = vmul.f32 %v742, %v1104
        %v1114 = vmul.f32 %v743, %v1104
        %v1115 = vmul.f32 %v744, %v1104
        %v1116 = vmul.f32 %v745, %v1104
        %v1117 = vmul.f32 %v746, %v1104
        %v1118 = vmul.f32 %v747, %v1104
        %v1119 = vmul.f32 %v748, %v1104
        %v1120 = vmul.f32 %v749, %v1104
        %v1121 = vmul.f32 %v750, %v1104
        %v1122 = vmul.f32 %v751, %v1104
        %v1123 = vmul.f32 %v752, %v1104
        %v1124 = vmul.f32 %v753, %v1104
        %v1125 = vmul.f32 %v754, %v1104
        %v1126 = vmul.f32 %v755, %v1104
        %v1127 = vmul.f32 %v756, %v1104
        %v1128 = vmul.f32 %v757, %v1104
        %v1129 = vmul.f32 %v758, %v1104
        %v1130 = vmul.f32 %v759, %v1104
        %v1131 = vmul.f32 %v760, %v1104
        %v1132 = vmul.f32 %v761, %v1104
        %v1133 = vmul.f32 %v762, %v1104
        %v1134 = vmul.f32 %v763, %v1104
        %v1135 = vmul.f32 %v764, %v1104
        %v1136 = vmul.f32 %v765, %v1104
        %v1137 = vmul.f32 %v766, %v1104
        %v1138 = vmul.f32 %v767, %v1104
        %v1139 = vmul.f32 %v768, %v1104
        %v1140 = vmul.f32 %v769, %v1104
        %v1177 = vrot.slane %v1105, 1
        %v1178 = vrot.slane %v1106, 1
        %v1179 = vsel %vm995, %v1177, %v1178
        %v1180 = vrot.slane %v1107, 1
        %v1181 = vsel %vm995, %v1178, %v1180
        %v1182 = vrot.slane %v1108, 1
        %v1183 = vrot.slane %v1109, 1
        %v1184 = vsel %vm995, %v1182, %v1183
        %v1185 = vrot.slane %v1110, 1
        %v1186 = vsel %vm995, %v1183, %v1185
        %v1187 = vrot.slane %v1111, 1
        %v1188 = vrot.slane %v1112, 1
        %v1189 = vsel %vm995, %v1187, %v1188
        %v1190 = vrot.slane %v1113, 1
        %v1191 = vsel %vm995, %v1188, %v1190
        %v1192 = vrot.slane %v1114, 1
        %v1193 = vrot.slane %v1115, 1
        %v1194 = vsel %vm995, %v1192, %v1193
        %v1195 = vrot.slane %v1116, 1
        %v1196 = vsel %vm995, %v1193, %v1195
        %v1197 = vrot.slane %v1117, 1
        %v1198 = vrot.slane %v1118, 1
        %v1199 = vsel %vm995, %v1197, %v1198
        %v1200 = vrot.slane %v1119, 1
        %v1201 = vsel %vm995, %v1198, %v1200
        %v1202 = vrot.slane %v1120, 1
        %v1203 = vrot.slane %v1121, 1
        %v1204 = vsel %vm995, %v1202, %v1203
        %v1205 = vrot.slane %v1122, 1
        %v1206 = vsel %vm995, %v1203, %v1205
        %v1207 = vrot.slane %v1123, 1
        %v1208 = vrot.slane %v1124, 1
        %v1209 = vsel %vm995, %v1207, %v1208
        %v1210 = vrot.slane %v1125, 1
        %v1211 = vsel %vm995, %v1208, %v1210
        %v1212 = vrot.slane %v1126, 1
        %v1213 = vrot.slane %v1127, 1
        %v1214 = vsel %vm995, %v1212, %v1213
        %v1215 = vrot.slane %v1128, 1
        %v1216 = vsel %vm995, %v1213, %v1215
        %v1217 = vrot.slane %v1129, 1
        %v1218 = vrot.slane %v1130, 1
        %v1219 = vsel %vm995, %v1217, %v1218
        %v1220 = vrot.slane %v1131, 1
        %v1221 = vsel %vm995, %v1218, %v1220
        %v1222 = vrot.slane %v1132, 1
        %v1223 = vrot.slane %v1133, 1
        %v1224 = vsel %vm995, %v1222, %v1223
        %v1225 = vrot.slane %v1134, 1
        %v1226 = vsel %vm995, %v1223, %v1225
        %v1227 = vrot.slane %v1135, 1
        %v1228 = vrot.slane %v1136, 1
        %v1229 = vsel %vm995, %v1227, %v1228
        %v1230 = vrot.slane %v1137, 1
        %v1231 = vsel %vm995, %v1228, %v1230
        %v1232 = vrot.slane %v1138, 1
        %v1233 = vrot.slane %v1139, 1
        %v1234 = vsel %vm995, %v1232, %v1233
        %v1235 = vrot.slane %v1140, 1
        %v1236 = vsel %vm995, %v1233, %v1235
        %v1261 = vadd.f32 %v1080, %v1179
        %v1262 = vadd.f32 %v1081, %v1181
        %v1263 = vadd.f32 %v1082, %v1184
        %v1264 = vadd.f32 %v1083, %v1186
        %v1265 = vadd.f32 %v1084, %v1189
        %v1266 = vadd.f32 %v1085, %v1191
        %v1267 = vadd.f32 %v1086, %v1194
        %v1268 = vadd.f32 %v1087, %v1196
        %v1269 = vadd.f32 %v1088, %v1199
        %v1270 = vadd.f32 %v1089, %v1201
        %v1271 = vadd.f32 %v1090, %v1204
        %v1272 = vadd.f32 %v1091, %v1206
        %v1273 = vadd.f32 %v1092, %v1209
        %v1274 = vadd.f32 %v1093, %v1211
        %v1275 = vadd.f32 %v1094, %v1214
        %v1276 = vadd.f32 %v1095, %v1216
        %v1277 = vadd.f32 %v1096, %v1219
        %v1278 = vadd.f32 %v1097, %v1221
        %v1279 = vadd.f32 %v1098, %v1224
        %v1280 = vadd.f32 %v1099, %v1226
        %v1281 = vadd.f32 %v1100, %v1229
        %v1282 = vadd.f32 %v1101, %v1231
        %v1283 = vadd.f32 %v1102, %v1234
        %v1284 = vadd.f32 %v1103, %v1236
        %v1285 = vperm.slane %v773, 7
        %v1286 = vmul.f32 %v737, %v1285
        %v1287 = vmul.f32 %v738, %v1285
        %v1288 = vmul.f32 %v739, %v1285
        %v1289 = vmul.f32 %v740, %v1285
        %v1290 = vmul.f32 %v741, %v1285
        %v1291 = vmul.f32 %v742, %v1285
        %v1292 = vmul.f32 %v743, %v1285
        %v1293 = vmul.f32 %v744, %v1285
        %v1294 = vmul.f32 %v745, %v1285
        %v1295 = vmul.f32 %v746, %v1285
        %v1296 = vmul.f32 %v747, %v1285
        %v1297 = vmul.f32 %v748, %v1285
        %v1298 = vmul.f32 %v749, %v1285
        %v1299 = vmul.f32 %v750, %v1285
        %v1300 = vmul.f32 %v751, %v1285
        %v1301 = vmul.f32 %v752, %v1285
        %v1302 = vmul.f32 %v753, %v1285
        %v1303 = vmul.f32 %v754, %v1285
        %v1304 = vmul.f32 %v755, %v1285
        %v1305 = vmul.f32 %v756, %v1285
        %v1306 = vmul.f32 %v757, %v1285
        %v1307 = vmul.f32 %v758, %v1285
        %v1308 = vmul.f32 %v759, %v1285
        %v1309 = vmul.f32 %v760, %v1285
        %v1310 = vmul.f32 %v761, %v1285
        %v1311 = vmul.f32 %v762, %v1285
        %v1312 = vmul.f32 %v763, %v1285
        %v1313 = vmul.f32 %v764, %v1285
        %v1314 = vmul.f32 %v765, %v1285
        %v1315 = vmul.f32 %v766, %v1285
        %v1316 = vmul.f32 %v767, %v1285
        %v1317 = vmul.f32 %v768, %v1285
        %v1318 = vmul.f32 %v769, %v1285
        %v1319 = vmul.f32 %v770, %v1285
        %v1320 = vmul.f32 %v771, %v1285
        %v1321 = vmul.f32 %v772, %v1285
        %v1358 = vrot.slane %v1286, 1
        %v1359 = vrot.slane %v1287, 1
        %v1360 = vsel %vm995, %v1358, %v1359
        %v1361 = vrot.slane %v1288, 1
        %v1362 = vsel %vm995, %v1359, %v1361
        %v1363 = vrot.slane %v1289, 1
        %v1364 = vrot.slane %v1290, 1
        %v1365 = vsel %vm995, %v1363, %v1364
        %v1366 = vrot.slane %v1291, 1
        %v1367 = vsel %vm995, %v1364, %v1366
        %v1368 = vrot.slane %v1292, 1
        %v1369 = vrot.slane %v1293, 1
        %v1370 = vsel %vm995, %v1368, %v1369
        %v1371 = vrot.slane %v1294, 1
        %v1372 = vsel %vm995, %v1369, %v1371
        %v1373 = vrot.slane %v1295, 1
        %v1374 = vrot.slane %v1296, 1
        %v1375 = vsel %vm995, %v1373, %v1374
        %v1376 = vrot.slane %v1297, 1
        %v1377 = vsel %vm995, %v1374, %v1376
        %v1378 = vrot.slane %v1298, 1
        %v1379 = vrot.slane %v1299, 1
        %v1380 = vsel %vm995, %v1378, %v1379
        %v1381 = vrot.slane %v1300, 1
        %v1382 = vsel %vm995, %v1379, %v1381
        %v1383 = vrot.slane %v1301, 1
        %v1384 = vrot.slane %v1302, 1
        %v1385 = vsel %vm995, %v1383, %v1384
        %v1386 = vrot.slane %v1303, 1
        %v1387 = vsel %vm995, %v1384, %v1386
        %v1388 = vrot.slane %v1304, 1
        %v1389 = vrot.slane %v1305, 1
        %v1390 = vsel %vm995, %v1388, %v1389
        %v1391 = vrot.slane %v1306, 1
        %v1392 = vsel %vm995, %v1389, %v1391
        %v1393 = vrot.slane %v1307, 1
        %v1394 = vrot.slane %v1308, 1
        %v1395 = vsel %vm995, %v1393, %v1394
        %v1396 = vrot.slane %v1309, 1
        %v1397 = vsel %vm995, %v1394, %v1396
        %v1398 = vrot.slane %v1310, 1
        %v1399 = vrot.slane %v1311, 1
        %v1400 = vsel %vm995, %v1398, %v1399
        %v1401 = vrot.slane %v1312, 1
        %v1402 = vsel %vm995, %v1399, %v1401
        %v1403 = vrot.slane %v1313, 1
        %v1404 = vrot.slane %v1314, 1
        %v1405 = vsel %vm995, %v1403, %v1404
        %v1406 = vrot.slane %v1315, 1
        %v1407 = vsel %vm995, %v1404, %v1406
        %v1408 = vrot.slane %v1316, 1
        %v1409 = vrot.slane %v1317, 1
        %v1410 = vsel %vm995, %v1408, %v1409
        %v1411 = vrot.slane %v1318, 1
        %v1412 = vsel %vm995, %v1409, %v1411
        %v1413 = vrot.slane %v1319, 1
        %v1414 = vrot.slane %v1320, 1
        %v1415 = vsel %vm995, %v1413, %v1414
        %v1416 = vrot.slane %v1321, 1
        %v1417 = vsel %vm995, %v1414, %v1416
        %v1442 = vadd.f32 %v1261, %v1360
        %v1443 = vadd.f32 %v1262, %v1362
        %v1444 = vadd.f32 %v1263, %v1365
        %v1445 = vadd.f32 %v1264, %v1367
        %v1446 = vadd.f32 %v1265, %v1370
        %v1447 = vadd.f32 %v1266, %v1372
        %v1448 = vadd.f32 %v1267, %v1375
        %v1449 = vadd.f32 %v1268, %v1377
        %v1450 = vadd.f32 %v1269, %v1380
        %v1451 = vadd.f32 %v1270, %v1382
        %v1452 = vadd.f32 %v1271, %v1385
        %v1453 = vadd.f32 %v1272, %v1387
        %v1454 = vadd.f32 %v1273, %v1390
        %v1455 = vadd.f32 %v1274, %v1392
        %v1456 = vadd.f32 %v1275, %v1395
        %v1457 = vadd.f32 %v1276, %v1397
        %v1458 = vadd.f32 %v1277, %v1400
        %v1459 = vadd.f32 %v1278, %v1402
        %v1460 = vadd.f32 %v1279, %v1405
        %v1461 = vadd.f32 %v1280, %v1407
        %v1462 = vadd.f32 %v1281, %v1410
        %v1463 = vadd.f32 %v1282, %v1412
        %v1464 = vadd.f32 %v1283, %v1415
        %v1465 = vadd.f32 %v1284, %v1417
        %v1466 = vperm.slane %v773, 2
        %v1467 = vmul.f32 %v731, %v1466
        %v1468 = vmul.f32 %v732, %v1466
        %v1469 = vmul.f32 %v733, %v1466
        %v1470 = vmul.f32 %v734, %v1466
        %v1471 = vmul.f32 %v735, %v1466
        %v1472 = vmul.f32 %v736, %v1466
        %v1473 = vmul.f32 %v737, %v1466
        %v1474 = vmul.f32 %v738, %v1466
        %v1475 = vmul.f32 %v739, %v1466
        %v1476 = vmul.f32 %v740, %v1466
        %v1477 = vmul.f32 %v741, %v1466
        %v1478 = vmul.f32 %v742, %v1466
        %v1479 = vmul.f32 %v743, %v1466
        %v1480 = vmul.f32 %v744, %v1466
        %v1481 = vmul.f32 %v745, %v1466
        %v1482 = vmul.f32 %v746, %v1466
        %v1483 = vmul.f32 %v747, %v1466
        %v1484 = vmul.f32 %v748, %v1466
        %v1485 = vmul.f32 %v749, %v1466
        %v1486 = vmul.f32 %v750, %v1466
        %v1487 = vmul.f32 %v751, %v1466
        %v1488 = vmul.f32 %v752, %v1466
        %v1489 = vmul.f32 %v753, %v1466
        %v1490 = vmul.f32 %v754, %v1466
        %v1491 = vmul.f32 %v755, %v1466
        %v1492 = vmul.f32 %v756, %v1466
        %v1493 = vmul.f32 %v757, %v1466
        %v1494 = vmul.f32 %v758, %v1466
        %v1495 = vmul.f32 %v759, %v1466
        %v1496 = vmul.f32 %v760, %v1466
        %v1497 = vmul.f32 %v761, %v1466
        %v1498 = vmul.f32 %v762, %v1466
        %v1499 = vmul.f32 %v763, %v1466
        %v1500 = vmul.f32 %v764, %v1466
        %v1501 = vmul.f32 %v765, %v1466
        %v1502 = vmul.f32 %v766, %v1466
        %vm1539 = vcmask 1045504
        %v1540 = vrot.slane %v1467, 2
        %v1541 = vrot.slane %v1468, 2
        %v1542 = vsel %vm1539, %v1540, %v1541
        %v1543 = vrot.slane %v1469, 2
        %v1544 = vsel %vm1539, %v1541, %v1543
        %v1545 = vrot.slane %v1470, 2
        %v1546 = vrot.slane %v1471, 2
        %v1547 = vsel %vm1539, %v1545, %v1546
        %v1548 = vrot.slane %v1472, 2
        %v1549 = vsel %vm1539, %v1546, %v1548
        %v1550 = vrot.slane %v1473, 2
        %v1551 = vrot.slane %v1474, 2
        %v1552 = vsel %vm1539, %v1550, %v1551
        %v1553 = vrot.slane %v1475, 2
        %v1554 = vsel %vm1539, %v1551, %v1553
        %v1555 = vrot.slane %v1476, 2
        %v1556 = vrot.slane %v1477, 2
        %v1557 = vsel %vm1539, %v1555, %v1556
        %v1558 = vrot.slane %v1478, 2
        %v1559 = vsel %vm1539, %v1556, %v1558
        %v1560 = vrot.slane %v1479, 2
        %v1561 = vrot.slane %v1480, 2
        %v1562 = vsel %vm1539, %v1560, %v1561
        %v1563 = vrot.slane %v1481, 2
        %v1564 = vsel %vm1539, %v1561, %v1563
        %v1565 = vrot.slane %v1482, 2
        %v1566 = vrot.slane %v1483, 2
        %v1567 = vsel %vm1539, %v1565, %v1566
        %v1568 = vrot.slane %v1484, 2
        %v1569 = vsel %vm1539, %v1566, %v1568
        %v1570 = vrot.slane %v1485, 2
        %v1571 = vrot.slane %v1486, 2
        %v1572 = vsel %vm1539, %v1570, %v1571
        %v1573 = vrot.slane %v1487, 2
        %v1574 = vsel %vm1539, %v1571, %v1573
        %v1575 = vrot.slane %v1488, 2
        %v1576 = vrot.slane %v1489, 2
        %v1577 = vsel %vm1539, %v1575, %v1576
        %v1578 = vrot.slane %v1490, 2
        %v1579 = vsel %vm1539, %v1576, %v1578
        %v1580 = vrot.slane %v1491, 2
        %v1581 = vrot.slane %v1492, 2
        %v1582 = vsel %vm1539, %v1580, %v1581
        %v1583 = vrot.slane %v1493, 2
        %v1584 = vsel %vm1539, %v1581, %v1583
        %v1585 = vrot.slane %v1494, 2
        %v1586 = vrot.slane %v1495, 2
        %v1587 = vsel %vm1539, %v1585, %v1586
        %v1588 = vrot.slane %v1496, 2
        %v1589 = vsel %vm1539, %v1586, %v1588
        %v1590 = vrot.slane %v1497, 2
        %v1591 = vrot.slane %v1498, 2
        %v1592 = vsel %vm1539, %v1590, %v1591
        %v1593 = vrot.slane %v1499, 2
        %v1594 = vsel %vm1539, %v1591, %v1593
        %v1595 = vrot.slane %v1500, 2
        %v1596 = vrot.slane %v1501, 2
        %v1597 = vsel %vm1539, %v1595, %v1596
        %v1598 = vrot.slane %v1502, 2
        %v1599 = vsel %vm1539, %v1596, %v1598
        %v1624 = vadd.f32 %v1442, %v1542
        %v1625 = vadd.f32 %v1443, %v1544
        %v1626 = vadd.f32 %v1444, %v1547
        %v1627 = vadd.f32 %v1445, %v1549
        %v1628 = vadd.f32 %v1446, %v1552
        %v1629 = vadd.f32 %v1447, %v1554
        %v1630 = vadd.f32 %v1448, %v1557
        %v1631 = vadd.f32 %v1449, %v1559
        %v1632 = vadd.f32 %v1450, %v1562
        %v1633 = vadd.f32 %v1451, %v1564
        %v1634 = vadd.f32 %v1452, %v1567
        %v1635 = vadd.f32 %v1453, %v1569
        %v1636 = vadd.f32 %v1454, %v1572
        %v1637 = vadd.f32 %v1455, %v1574
        %v1638 = vadd.f32 %v1456, %v1577
        %v1639 = vadd.f32 %v1457, %v1579
        %v1640 = vadd.f32 %v1458, %v1582
        %v1641 = vadd.f32 %v1459, %v1584
        %v1642 = vadd.f32 %v1460, %v1587
        %v1643 = vadd.f32 %v1461, %v1589
        %v1644 = vadd.f32 %v1462, %v1592
        %v1645 = vadd.f32 %v1463, %v1594
        %v1646 = vadd.f32 %v1464, %v1597
        %v1647 = vadd.f32 %v1465, %v1599
        %v1648 = vperm.slane %v773, 5
        %v1649 = vmul.f32 %v734, %v1648
        %v1650 = vmul.f32 %v735, %v1648
        %v1651 = vmul.f32 %v736, %v1648
        %v1652 = vmul.f32 %v737, %v1648
        %v1653 = vmul.f32 %v738, %v1648
        %v1654 = vmul.f32 %v739, %v1648
        %v1655 = vmul.f32 %v740, %v1648
        %v1656 = vmul.f32 %v741, %v1648
        %v1657 = vmul.f32 %v742, %v1648
        %v1658 = vmul.f32 %v743, %v1648
        %v1659 = vmul.f32 %v744, %v1648
        %v1660 = vmul.f32 %v745, %v1648
        %v1661 = vmul.f32 %v746, %v1648
        %v1662 = vmul.f32 %v747, %v1648
        %v1663 = vmul.f32 %v748, %v1648
        %v1664 = vmul.f32 %v749, %v1648
        %v1665 = vmul.f32 %v750, %v1648
        %v1666 = vmul.f32 %v751, %v1648
        %v1667 = vmul.f32 %v752, %v1648
        %v1668 = vmul.f32 %v753, %v1648
        %v1669 = vmul.f32 %v754, %v1648
        %v1670 = vmul.f32 %v755, %v1648
        %v1671 = vmul.f32 %v756, %v1648
        %v1672 = vmul.f32 %v757, %v1648
        %v1673 = vmul.f32 %v758, %v1648
        %v1674 = vmul.f32 %v759, %v1648
        %v1675 = vmul.f32 %v760, %v1648
        %v1676 = vmul.f32 %v761, %v1648
        %v1677 = vmul.f32 %v762, %v1648
        %v1678 = vmul.f32 %v763, %v1648
        %v1679 = vmul.f32 %v764, %v1648
        %v1680 = vmul.f32 %v765, %v1648
        %v1681 = vmul.f32 %v766, %v1648
        %v1682 = vmul.f32 %v767, %v1648
        %v1683 = vmul.f32 %v768, %v1648
        %v1684 = vmul.f32 %v769, %v1648
        %v1721 = vrot.slane %v1649, 2
        %v1722 = vrot.slane %v1650, 2
        %v1723 = vsel %vm1539, %v1721, %v1722
        %v1724 = vrot.slane %v1651, 2
        %v1725 = vsel %vm1539, %v1722, %v1724
        %v1726 = vrot.slane %v1652, 2
        %v1727 = vrot.slane %v1653, 2
        %v1728 = vsel %vm1539, %v1726, %v1727
        %v1729 = vrot.slane %v1654, 2
        %v1730 = vsel %vm1539, %v1727, %v1729
        %v1731 = vrot.slane %v1655, 2
        %v1732 = vrot.slane %v1656, 2
        %v1733 = vsel %vm1539, %v1731, %v1732
        %v1734 = vrot.slane %v1657, 2
        %v1735 = vsel %vm1539, %v1732, %v1734
        %v1736 = vrot.slane %v1658, 2
        %v1737 = vrot.slane %v1659, 2
        %v1738 = vsel %vm1539, %v1736, %v1737
        %v1739 = vrot.slane %v1660, 2
        %v1740 = vsel %vm1539, %v1737, %v1739
        %v1741 = vrot.slane %v1661, 2
        %v1742 = vrot.slane %v1662, 2
        %v1743 = vsel %vm1539, %v1741, %v1742
        %v1744 = vrot.slane %v1663, 2
        %v1745 = vsel %vm1539, %v1742, %v1744
        %v1746 = vrot.slane %v1664, 2
        %v1747 = vrot.slane %v1665, 2
        %v1748 = vsel %vm1539, %v1746, %v1747
        %v1749 = vrot.slane %v1666, 2
        %v1750 = vsel %vm1539, %v1747, %v1749
        %v1751 = vrot.slane %v1667, 2
        %v1752 = vrot.slane %v1668, 2
        %v1753 = vsel %vm1539, %v1751, %v1752
        %v1754 = vrot.slane %v1669, 2
        %v1755 = vsel %vm1539, %v1752, %v1754
        %v1756 = vrot.slane %v1670, 2
        %v1757 = vrot.slane %v1671, 2
        %v1758 = vsel %vm1539, %v1756, %v1757
        %v1759 = vrot.slane %v1672, 2
        %v1760 = vsel %vm1539, %v1757, %v1759
        %v1761 = vrot.slane %v1673, 2
        %v1762 = vrot.slane %v1674, 2
        %v1763 = vsel %vm1539, %v1761, %v1762
        %v1764 = vrot.slane %v1675, 2
        %v1765 = vsel %vm1539, %v1762, %v1764
        %v1766 = vrot.slane %v1676, 2
        %v1767 = vrot.slane %v1677, 2
        %v1768 = vsel %vm1539, %v1766, %v1767
        %v1769 = vrot.slane %v1678, 2
        %v1770 = vsel %vm1539, %v1767, %v1769
        %v1771 = vrot.slane %v1679, 2
        %v1772 = vrot.slane %v1680, 2
        %v1773 = vsel %vm1539, %v1771, %v1772
        %v1774 = vrot.slane %v1681, 2
        %v1775 = vsel %vm1539, %v1772, %v1774
        %v1776 = vrot.slane %v1682, 2
        %v1777 = vrot.slane %v1683, 2
        %v1778 = vsel %vm1539, %v1776, %v1777
        %v1779 = vrot.slane %v1684, 2
        %v1780 = vsel %vm1539, %v1777, %v1779
        %v1805 = vadd.f32 %v1624, %v1723
        %v1806 = vadd.f32 %v1625, %v1725
        %v1807 = vadd.f32 %v1626, %v1728
        %v1808 = vadd.f32 %v1627, %v1730
        %v1809 = vadd.f32 %v1628, %v1733
        %v1810 = vadd.f32 %v1629, %v1735
        %v1811 = vadd.f32 %v1630, %v1738
        %v1812 = vadd.f32 %v1631, %v1740
        %v1813 = vadd.f32 %v1632, %v1743
        %v1814 = vadd.f32 %v1633, %v1745
        %v1815 = vadd.f32 %v1634, %v1748
        %v1816 = vadd.f32 %v1635, %v1750
        %v1817 = vadd.f32 %v1636, %v1753
        %v1818 = vadd.f32 %v1637, %v1755
        %v1819 = vadd.f32 %v1638, %v1758
        %v1820 = vadd.f32 %v1639, %v1760
        %v1821 = vadd.f32 %v1640, %v1763
        %v1822 = vadd.f32 %v1641, %v1765
        %v1823 = vadd.f32 %v1642, %v1768
        %v1824 = vadd.f32 %v1643, %v1770
        %v1825 = vadd.f32 %v1644, %v1773
        %v1826 = vadd.f32 %v1645, %v1775
        %v1827 = vadd.f32 %v1646, %v1778
        %v1828 = vadd.f32 %v1647, %v1780
        %v1829 = vperm.slane %v774, 0
        %v1830 = vmul.f32 %v737, %v1829
        %v1831 = vmul.f32 %v738, %v1829
        %v1832 = vmul.f32 %v739, %v1829
        %v1833 = vmul.f32 %v740, %v1829
        %v1834 = vmul.f32 %v741, %v1829
        %v1835 = vmul.f32 %v742, %v1829
        %v1836 = vmul.f32 %v743, %v1829
        %v1837 = vmul.f32 %v744, %v1829
        %v1838 = vmul.f32 %v745, %v1829
        %v1839 = vmul.f32 %v746, %v1829
        %v1840 = vmul.f32 %v747, %v1829
        %v1841 = vmul.f32 %v748, %v1829
        %v1842 = vmul.f32 %v749, %v1829
        %v1843 = vmul.f32 %v750, %v1829
        %v1844 = vmul.f32 %v751, %v1829
        %v1845 = vmul.f32 %v752, %v1829
        %v1846 = vmul.f32 %v753, %v1829
        %v1847 = vmul.f32 %v754, %v1829
        %v1848 = vmul.f32 %v755, %v1829
        %v1849 = vmul.f32 %v756, %v1829
        %v1850 = vmul.f32 %v757, %v1829
        %v1851 = vmul.f32 %v758, %v1829
        %v1852 = vmul.f32 %v759, %v1829
        %v1853 = vmul.f32 %v760, %v1829
        %v1854 = vmul.f32 %v761, %v1829
        %v1855 = vmul.f32 %v762, %v1829
        %v1856 = vmul.f32 %v763, %v1829
        %v1857 = vmul.f32 %v764, %v1829
        %v1858 = vmul.f32 %v765, %v1829
        %v1859 = vmul.f32 %v766, %v1829
        %v1860 = vmul.f32 %v767, %v1829
        %v1861 = vmul.f32 %v768, %v1829
        %v1862 = vmul.f32 %v769, %v1829
        %v1863 = vmul.f32 %v770, %v1829
        %v1864 = vmul.f32 %v771, %v1829
        %v1865 = vmul.f32 %v772, %v1829
        %v1902 = vrot.slane %v1830, 2
        %v1903 = vrot.slane %v1831, 2
        %v1904 = vsel %vm1539, %v1902, %v1903
        %v1905 = vrot.slane %v1832, 2
        %v1906 = vsel %vm1539, %v1903, %v1905
        %v1907 = vrot.slane %v1833, 2
        %v1908 = vrot.slane %v1834, 2
        %v1909 = vsel %vm1539, %v1907, %v1908
        %v1910 = vrot.slane %v1835, 2
        %v1911 = vsel %vm1539, %v1908, %v1910
        %v1912 = vrot.slane %v1836, 2
        %v1913 = vrot.slane %v1837, 2
        %v1914 = vsel %vm1539, %v1912, %v1913
        %v1915 = vrot.slane %v1838, 2
        %v1916 = vsel %vm1539, %v1913, %v1915
        %v1917 = vrot.slane %v1839, 2
        %v1918 = vrot.slane %v1840, 2
        %v1919 = vsel %vm1539, %v1917, %v1918
        %v1920 = vrot.slane %v1841, 2
        %v1921 = vsel %vm1539, %v1918, %v1920
        %v1922 = vrot.slane %v1842, 2
        %v1923 = vrot.slane %v1843, 2
        %v1924 = vsel %vm1539, %v1922, %v1923
        %v1925 = vrot.slane %v1844, 2
        %v1926 = vsel %vm1539, %v1923, %v1925
        %v1927 = vrot.slane %v1845, 2
        %v1928 = vrot.slane %v1846, 2
        %v1929 = vsel %vm1539, %v1927, %v1928
        %v1930 = vrot.slane %v1847, 2
        %v1931 = vsel %vm1539, %v1928, %v1930
        %v1932 = vrot.slane %v1848, 2
        %v1933 = vrot.slane %v1849, 2
        %v1934 = vsel %vm1539, %v1932, %v1933
        %v1935 = vrot.slane %v1850, 2
        %v1936 = vsel %vm1539, %v1933, %v1935
        %v1937 = vrot.slane %v1851, 2
        %v1938 = vrot.slane %v1852, 2
        %v1939 = vsel %vm1539, %v1937, %v1938
        %v1940 = vrot.slane %v1853, 2
        %v1941 = vsel %vm1539, %v1938, %v1940
        %v1942 = vrot.slane %v1854, 2
        %v1943 = vrot.slane %v1855, 2
        %v1944 = vsel %vm1539, %v1942, %v1943
        %v1945 = vrot.slane %v1856, 2
        %v1946 = vsel %vm1539, %v1943, %v1945
        %v1947 = vrot.slane %v1857, 2
        %v1948 = vrot.slane %v1858, 2
        %v1949 = vsel %vm1539, %v1947, %v1948
        %v1950 = vrot.slane %v1859, 2
        %v1951 = vsel %vm1539, %v1948, %v1950
        %v1952 = vrot.slane %v1860, 2
        %v1953 = vrot.slane %v1861, 2
        %v1954 = vsel %vm1539, %v1952, %v1953
        %v1955 = vrot.slane %v1862, 2
        %v1956 = vsel %vm1539, %v1953, %v1955
        %v1957 = vrot.slane %v1863, 2
        %v1958 = vrot.slane %v1864, 2
        %v1959 = vsel %vm1539, %v1957, %v1958
        %v1960 = vrot.slane %v1865, 2
        %v1961 = vsel %vm1539, %v1958, %v1960
        %v1986 = vadd.f32 %v1805, %v1904
        %v1987 = vadd.f32 %v1806, %v1906
        %v1988 = vadd.f32 %v1807, %v1909
        %v1989 = vadd.f32 %v1808, %v1911
        %v1990 = vadd.f32 %v1809, %v1914
        %v1991 = vadd.f32 %v1810, %v1916
        %v1992 = vadd.f32 %v1811, %v1919
        %v1993 = vadd.f32 %v1812, %v1921
        %v1994 = vadd.f32 %v1813, %v1924
        %v1995 = vadd.f32 %v1814, %v1926
        %v1996 = vadd.f32 %v1815, %v1929
        %v1997 = vadd.f32 %v1816, %v1931
        %v1998 = vadd.f32 %v1817, %v1934
        %v1999 = vadd.f32 %v1818, %v1936
        %v2000 = vadd.f32 %v1819, %v1939
        %v2001 = vadd.f32 %v1820, %v1941
        %v2002 = vadd.f32 %v1821, %v1944
        %v2003 = vadd.f32 %v1822, %v1946
        %v2004 = vadd.f32 %v1823, %v1949
        %v2005 = vadd.f32 %v1824, %v1951
        %v2006 = vadd.f32 %v1825, %v1954
        %v2007 = vadd.f32 %v1826, %v1956
        %v2008 = vadd.f32 %v1827, %v1959
        %v2009 = vadd.f32 %v1828, %v1961
        %v2010 = vld [vmem:[#allocation10] sm:$0xff]
        %v2011 = vld [vmem:[#allocation10 + $0x8] sm:$0xff]
        %v2012 = vld [vmem:[#allocation10 + $0x10] sm:$0xff]
        %v2013 = vld [vmem:[#allocation10 + $0x18] sm:$0xff]
        %v2014 = vld [vmem:[#allocation10 + $0x20] sm:$0xff]
        %v2015 = vld [vmem:[#allocation10 + $0x28] sm:$0xff]
        %v2016 = vld [vmem:[#allocation10 + $0x30] sm:$0xff]
        %v2017 = vld [vmem:[#allocation10 + $0x38] sm:$0xff]
        %v2018 = vld [vmem:[#allocation10 + $0x40] sm:$0xff]
        %v2019 = vld [vmem:[#allocation10 + $0x48] sm:$0xff]
        %v2020 = vld [vmem:[#allocation10 + $0x50] sm:$0xff]
        %v2021 = vld [vmem:[#allocation10 + $0x58] sm:$0xff]
        %v2022 = vld [vmem:[#allocation10 + $0x60] sm:$0xff]
        %v2023 = vld [vmem:[#allocation10 + $0x68] sm:$0xff]
        %v2024 = vld [vmem:[#allocation10 + $0x70] sm:$0xff]
        %v2025 = vld [vmem:[#allocation10 + $0x78] sm:$0xff]
        %v2026 = vld [vmem:[%s3] sm:$0x1]
        %v2028 = vperm.slane %v2026, 0
        %2030 = vmatpush.msra.mxu0 %v2025
        %2031 = vmatpush.msra.mxu0 %v2024
        %2032 = vmatpush.msra.mxu0 %v2023
        %2033 = vmatpush.msra.mxu0 %v2022
        %2034 = vmatpush.msra.mxu0 %v2021
        %2035 = vmatpush.msra.mxu0 %v2020
        %2036 = vmatpush.msra.mxu0 %v2019
        %2037 = vmatpush.msra.mxu0 %v2018
        %2038 = vmatpush.msra.mxu0 %v2017
        %2039 = vmatpush.msra.mxu0 %v2016
        %2040 = vmatpush.msra.mxu0 %v2015
        %2041 = vmatpush.msra.mxu0 %v2014
        %2042 = vmatpush.msra.mxu0 %v2013
        %2043 = vmatpush.msra.mxu0 %v2012
        %2044 = vmatpush.msra.mxu0 %v2011
        %2045 = vmatpush.msra.mxu0 %v2010
        %2046 = vmatmul.f32.gmra.mxu0 %v1986
        %v2047 = vpop.f32.mrf.mxu0
        %v2048 = vadd.f32 %v2028, %v2047
        %2049 = vmatmul.f32.gmra.mxu0 %v1987
        %v2050 = vpop.f32.mrf.mxu0
        %v2051 = vadd.f32 %v2028, %v2050
        %2052 = vmatmul.f32.gmra.mxu0 %v1988
        %v2053 = vpop.f32.mrf.mxu0
        %v2054 = vadd.f32 %v2028, %v2053
        %2055 = vmatmul.f32.gmra.mxu0 %v1989
        %v2056 = vpop.f32.mrf.mxu0
        %v2057 = vadd.f32 %v2028, %v2056
        %2058 = vmatmul.f32.gmra.mxu0 %v1990
        %v2059 = vpop.f32.mrf.mxu0
        %v2060 = vadd.f32 %v2028, %v2059
        %2061 = vmatmul.f32.gmra.mxu0 %v1991
        %v2062 = vpop.f32.mrf.mxu0
        %v2063 = vadd.f32 %v2028, %v2062
        %2064 = vmatmul.f32.gmra.mxu0 %v1992
        %v2065 = vpop.f32.mrf.mxu0
        %v2066 = vadd.f32 %v2028, %v2065
        %2067 = vmatmul.f32.gmra.mxu0 %v1993
        %v2068 = vpop.f32.mrf.mxu0
        %v2069 = vadd.f32 %v2028, %v2068
        %2070 = vmatmul.f32.gmra.mxu0 %v1994
        %v2071 = vpop.f32.mrf.mxu0
        %v2072 = vadd.f32 %v2028, %v2071
        %2073 = vmatmul.f32.gmra.mxu0 %v1995
        %v2074 = vpop.f32.mrf.mxu0
        %v2075 = vadd.f32 %v2028, %v2074
        %2076 = vmatmul.f32.gmra.mxu0 %v1996
        %v2077 = vpop.f32.mrf.mxu0
        %v2078 = vadd.f32 %v2028, %v2077
        %2079 = vmatmul.f32.gmra.mxu0 %v1997
        %v2080 = vpop.f32.mrf.mxu0
        %v2081 = vadd.f32 %v2028, %v2080
        %2082 = vmatmul.f32.gmra.mxu0 %v1998
        %v2083 = vpop.f32.mrf.mxu0
        %v2084 = vadd.f32 %v2028, %v2083
        %2085 = vmatmul.f32.gmra.mxu0 %v1999
        %v2086 = vpop.f32.mrf.mxu0
        %v2087 = vadd.f32 %v2028, %v2086
        %2088 = vmatmul.f32.gmra.mxu0 %v2000
        %v2089 = vpop.f32.mrf.mxu0
        %v2090 = vadd.f32 %v2028, %v2089
        %2091 = vmatmul.f32.gmra.mxu0 %v2001
        %v2092 = vpop.f32.mrf.mxu0
        %v2093 = vadd.f32 %v2028, %v2092
        %2094 = vmatmul.f32.gmra.mxu0 %v2002
        %v2095 = vpop.f32.mrf.mxu0
        %v2096 = vadd.f32 %v2028, %v2095
        %2097 = vmatmul.f32.gmra.mxu0 %v2003
        %v2098 = vpop.f32.mrf.mxu0
        %v2099 = vadd.f32 %v2028, %v2098
        %2100 = vmatmul.f32.gmra.mxu0 %v2004
        %v2101 = vpop.f32.mrf.mxu0
        %v2102 = vadd.f32 %v2028, %v2101
        %2103 = vmatmul.f32.gmra.mxu0 %v2005
        %v2104 = vpop.f32.mrf.mxu0
        %v2105 = vadd.f32 %v2028, %v2104
        %2106 = vmatmul.f32.gmra.mxu0 %v2006
        %v2107 = vpop.f32.mrf.mxu0
        %v2108 = vadd.f32 %v2028, %v2107
        %2109 = vmatmul.f32.gmra.mxu0 %v2007
        %v2110 = vpop.f32.mrf.mxu0
        %v2111 = vadd.f32 %v2028, %v2110
        %2112 = vmatmul.f32.gmra.mxu0 %v2008
        %v2113 = vpop.f32.mrf.mxu0
        %v2114 = vadd.f32 %v2028, %v2113
        %2115 = vmatmul.f32.gmra.mxu0 %v2009
        %v2116 = vpop.f32.mrf.mxu0
        %v2117 = vadd.f32 %v2028, %v2116
        %2118 = vdwg.mxu0
        %s2119 = ssub.s32 %s565, 2
        %v2120 = vstv %s2119
        %v2121 = vadd.s32 %v2120, 1
        %v2122 = vadd.s32 %v2120, 2
        %v2123 = vadd.s32 %v2120, 3
        %v2124 = vadd.s32 %v2120, 4
        %v2125 = vadd.s32 %v2120, 5
        %v2126 = vadd.s32 %v2120, 6
        %v2127 = vadd.s32 %v2120, 7
        %v2128 = vadd.s32 %v2120, 8
        %v2129 = vadd.s32 %v2120, 9
        %v2130 = vadd.s32 %v2120, 10
        %v2131 = vadd.s32 %v2120, 11
        %vm2132 = vcmp.ge.s32.totalorder %v2120, 0
        %vm2133 = vcmp.ge.s32.totalorder %v2121, 0
        %vm2134 = vcmp.ge.s32.totalorder %v2122, 0
        %vm2135 = vcmp.ge.s32.totalorder %v2123, 0
        %vm2136 = vcmp.ge.s32.totalorder %v2124, 0
        %vm2137 = vcmp.ge.s32.totalorder %v2125, 0
        %vm2138 = vcmp.ge.s32.totalorder %v2126, 0
        %vm2139 = vcmp.ge.s32.totalorder %v2127, 0
        %vm2140 = vcmp.ge.s32.totalorder %v2128, 0
        %vm2141 = vcmp.ge.s32.totalorder %v2129, 0
        %vm2142 = vcmp.ge.s32.totalorder %v2130, 0
        %vm2143 = vcmp.ge.s32.totalorder %v2131, 0
        %vm2144 = vcmp.lt.s32.totalorder %v2120, 16
        %vm2145 = vcmp.lt.s32.totalorder %v2121, 16
        %vm2146 = vcmp.lt.s32.totalorder %v2122, 16
        %vm2147 = vcmp.lt.s32.totalorder %v2123, 16
        %vm2148 = vcmp.lt.s32.totalorder %v2124, 16
        %vm2149 = vcmp.lt.s32.totalorder %v2125, 16
        %vm2150 = vcmp.lt.s32.totalorder %v2126, 16
        %vm2151 = vcmp.lt.s32.totalorder %v2127, 16
        %vm2152 = vcmp.lt.s32.totalorder %v2128, 16
        %vm2153 = vcmp.lt.s32.totalorder %v2129, 16
        %vm2154 = vcmp.lt.s32.totalorder %v2130, 16
        %vm2155 = vcmp.lt.s32.totalorder %v2131, 16
        %vm2156 = vmand %vm2132, %vm2144
        %vm2157 = vmand %vm2133, %vm2145
        %vm2158 = vmand %vm2134, %vm2146
        %vm2159 = vmand %vm2135, %vm2147
        %vm2160 = vmand %vm2136, %vm2148
        %vm2161 = vmand %vm2137, %vm2149
        %vm2162 = vmand %vm2138, %vm2150
        %vm2163 = vmand %vm2139, %vm2151
        %vm2164 = vmand %vm2140, %vm2152
        %vm2165 = vmand %vm2141, %vm2153
        %vm2166 = vmand %vm2142, %vm2154
        %vm2167 = vmand %vm2143, %vm2155
        %v2168 = vmax.f32 %v2048, 0.0
        %v2169 = vmax.f32 %v2051, 0.0
        %v2170 = vmax.f32 %v2054, 0.0
        %v2171 = vmax.f32 %v2057, 0.0
        %v2172 = vmax.f32 %v2060, 0.0
        %v2173 = vmax.f32 %v2063, 0.0
        %v2174 = vmax.f32 %v2066, 0.0
        %v2175 = vmax.f32 %v2069, 0.0
        %v2176 = vmax.f32 %v2072, 0.0
        %v2177 = vmax.f32 %v2075, 0.0
        %v2178 = vmax.f32 %v2078, 0.0
        %v2179 = vmax.f32 %v2081, 0.0
        %v2180 = vmax.f32 %v2084, 0.0
        %v2181 = vmax.f32 %v2087, 0.0
        %v2182 = vmax.f32 %v2090, 0.0
        %v2183 = vmax.f32 %v2093, 0.0
        %v2184 = vmax.f32 %v2096, 0.0
        %v2185 = vmax.f32 %v2099, 0.0
        %v2186 = vmax.f32 %v2102, 0.0
        %v2187 = vmax.f32 %v2105, 0.0
        %v2188 = vmax.f32 %v2108, 0.0
        %v2189 = vmax.f32 %v2111, 0.0
        %v2190 = vmax.f32 %v2114, 0.0
        %v2191 = vmax.f32 %v2117, 0.0
        %v2192 = vsel %vm2156, 1, 0
        %v2193 = vsel %vm2157, 1, 0
        %v2194 = vsel %vm2158, 1, 0
        %v2195 = vsel %vm2159, 1, 0
        %v2196 = vsel %vm2160, 1, 0
        %v2197 = vsel %vm2161, 1, 0
        %v2198 = vsel %vm2162, 1, 0
        %v2199 = vsel %vm2163, 1, 0
        %v2200 = vsel %vm2164, 1, 0
        %v2201 = vsel %vm2165, 1, 0
        %v2202 = vsel %vm2166, 1, 0
        %v2203 = vsel %vm2167, 1, 0
        %vm2204 = vcmp.eq.s32.totalorder %v2192, 1
        %vm2205 = vcmp.eq.s32.totalorder %v2193, 1
        %vm2206 = vcmp.eq.s32.totalorder %v2194, 1
        %vm2207 = vcmp.eq.s32.totalorder %v2195, 1
        %vm2208 = vcmp.eq.s32.totalorder %v2196, 1
        %vm2209 = vcmp.eq.s32.totalorder %v2197, 1
        %vm2210 = vcmp.eq.s32.totalorder %v2198, 1
        %vm2211 = vcmp.eq.s32.totalorder %v2199, 1
        %vm2212 = vcmp.eq.s32.totalorder %v2200, 1
        %vm2213 = vcmp.eq.s32.totalorder %v2201, 1
        %vm2214 = vcmp.eq.s32.totalorder %v2202, 1
        %vm2215 = vcmp.eq.s32.totalorder %v2203, 1
        %v2216 = vsel %vm2204, %v2168, 0.0
        %v2217 = vsel %vm2204, %v2169, 0.0
        %v2218 = vsel %vm2205, %v2170, 0.0
        %v2219 = vsel %vm2205, %v2171, 0.0
        %v2220 = vsel %vm2206, %v2172, 0.0
        %v2221 = vsel %vm2206, %v2173, 0.0
        %v2222 = vsel %vm2207, %v2174, 0.0
        %v2223 = vsel %vm2207, %v2175, 0.0
        %v2224 = vsel %vm2208, %v2176, 0.0
        %v2225 = vsel %vm2208, %v2177, 0.0
        %v2226 = vsel %vm2209, %v2178, 0.0
        %v2227 = vsel %vm2209, %v2179, 0.0
        %v2228 = vsel %vm2210, %v2180, 0.0
        %v2229 = vsel %vm2210, %v2181, 0.0
        %v2230 = vsel %vm2211, %v2182, 0.0
        %v2231 = vsel %vm2211, %v2183, 0.0
        %v2232 = vsel %vm2212, %v2184, 0.0
        %v2233 = vsel %vm2212, %v2185, 0.0
        %v2234 = vsel %vm2213, %v2186, 0.0
        %v2235 = vsel %vm2213, %v2187, 0.0
        %v2236 = vsel %vm2214, %v2188, 0.0
        %v2237 = vsel %vm2214, %v2189, 0.0
        %v2238 = vsel %vm2215, %v2190, 0.0
        %v2239 = vsel %vm2215, %v2191, 0.0
        %2240 = vst [vmem:[#allocation3] sm:$0xff] 0.0
        %2241 = vst [vmem:[#allocation3 + $0x8] sm:$0xff] 0.0
        %2242 = vst [vmem:[#allocation3 + $0x10] sm:$0x3] 0.0
        %2243 = vst [vmem:[#allocation3 + $0x18] sm:$0xff] 0.0
        %2244 = vst [vmem:[#allocation3 + $0x20] sm:$0xff] 0.0
        %2245 = vst [vmem:[#allocation3 + $0x28] sm:$0x3] 0.0
        %2246 = vst [vmem:[#allocation3 + $0x30] sm:$0xff] 0.0
        %2247 = vst [vmem:[#allocation3 + $0x38] sm:$0xff] 0.0
        %2248 = vst [vmem:[#allocation3 + $0x40] sm:$0x3] 0.0
        %2249 = vst [vmem:[#allocation3 + $0x48] sm:$0xff] 0.0
        %2250 = vst [vmem:[#allocation3 + $0x50] sm:$0xff] 0.0
        %2251 = vst [vmem:[#allocation3 + $0x58] sm:$0x3] 0.0
        %2252 = vst [vmem:[#allocation3 + $0x60] sm:$0xff] 0.0
        %2253 = vst [vmem:[#allocation3 + $0x68] sm:$0xff] 0.0
        %2254 = vst [vmem:[#allocation3 + $0x70] sm:$0x3] 0.0
        %2255 = vst [vmem:[#allocation3 + $0x78] sm:$0xff] 0.0
        %2256 = vst [vmem:[#allocation3 + $0x80] sm:$0xff] 0.0
        %2257 = vst [vmem:[#allocation3 + $0x88] sm:$0x3] 0.0
        %2258 = vst [vmem:[#allocation3 + $0x90] sm:$0xff] 0.0
        %2259 = vst [vmem:[#allocation3 + $0x98] sm:$0xff] 0.0
        %2260 = vst [vmem:[#allocation3 + $0xa0] sm:$0x3] 0.0
        %2261 = vst [vmem:[#allocation3 + $0xa8] sm:$0xff] 0.0
        %2262 = vst [vmem:[#allocation3 + $0xb0] sm:$0xff] 0.0
        %2263 = vst [vmem:[#allocation3 + $0xb8] sm:$0x3] 0.0
        %2264 = vst [vmem:[#allocation3 + $0xc0] sm:$0xff] 0.0
        %2265 = vst [vmem:[#allocation3 + $0xc8] sm:$0xff] 0.0
        %2266 = vst [vmem:[#allocation3 + $0xd0] sm:$0x3] 0.0
        %2267 = vst [vmem:[#allocation3 + $0xd8] sm:$0xff] 0.0
        %2268 = vst [vmem:[#allocation3 + $0xe0] sm:$0xff] 0.0
        %2269 = vst [vmem:[#allocation3 + $0xe8] sm:$0x3] 0.0
        %2270 = vst [vmem:[#allocation3 + $0xf0] sm:$0xff] 0.0
        %2271 = vst [vmem:[#allocation3 + $0xf8] sm:$0xff] 0.0
        %2272 = vst [vmem:[#allocation3 + $0x100] sm:$0x3] 0.0
        %2273 = vst [vmem:[#allocation3 + $0x108] sm:$0xff] 0.0
        %2274 = vst [vmem:[#allocation3 + $0x110] sm:$0xff] 0.0
        %2275 = vst [vmem:[#allocation3 + $0x118] sm:$0x3] 0.0
        %2276 = vst [vmem:[#allocation3 + $0x1] sm:$0xff] %v2216
        %2277 = vst [vmem:[#allocation3 + $0x9] sm:$0xff] %v2217
        %2278 = vst [vmem:[#allocation3 + $0x19] sm:$0xff] %v2218
        %2279 = vst [vmem:[#allocation3 + $0x21] sm:$0xff] %v2219
        %2280 = vst [vmem:[#allocation3 + $0x31] sm:$0xff] %v2220
        %2281 = vst [vmem:[#allocation3 + $0x39] sm:$0xff] %v2221
        %2282 = vst [vmem:[#allocation3 + $0x49] sm:$0xff] %v2222
        %2283 = vst [vmem:[#allocation3 + $0x51] sm:$0xff] %v2223
        %2284 = vst [vmem:[#allocation3 + $0x61] sm:$0xff] %v2224
        %2285 = vst [vmem:[#allocation3 + $0x69] sm:$0xff] %v2225
        %2286 = vst [vmem:[#allocation3 + $0x79] sm:$0xff] %v2226
        %2287 = vst [vmem:[#allocation3 + $0x81] sm:$0xff] %v2227
        %2288 = vst [vmem:[#allocation3 + $0x91] sm:$0xff] %v2228
        %2289 = vst [vmem:[#allocation3 + $0x99] sm:$0xff] %v2229
        %2290 = vst [vmem:[#allocation3 + $0xa9] sm:$0xff] %v2230
        %2291 = vst [vmem:[#allocation3 + $0xb1] sm:$0xff] %v2231
        %2292 = vst [vmem:[#allocation3 + $0xc1] sm:$0xff] %v2232
        %2293 = vst [vmem:[#allocation3 + $0xc9] sm:$0xff] %v2233
        %2294 = vst [vmem:[#allocation3 + $0xd9] sm:$0xff] %v2234
        %2295 = vst [vmem:[#allocation3 + $0xe1] sm:$0xff] %v2235
        %2296 = vst [vmem:[#allocation3 + $0xf1] sm:$0xff] %v2236
        %2297 = vst [vmem:[#allocation3 + $0xf9] sm:$0xff] %v2237
        %2298 = vst [vmem:[#allocation3 + $0x109] sm:$0xff] %v2238
        %2299 = vst [vmem:[#allocation3 + $0x111] sm:$0xff] %v2239
        %v2300 = vld [vmem:[#allocation3] sm:$0xff]
        %v2301 = vld [vmem:[#allocation3 + $0x8] sm:$0xff]
        %v2302 = vld [vmem:[#allocation3 + $0x10] sm:$0x3]
        %v2303 = vld [vmem:[#allocation3 + $0x18] sm:$0xff]
        %v2304 = vld [vmem:[#allocation3 + $0x20] sm:$0xff]
        %v2305 = vld [vmem:[#allocation3 + $0x28] sm:$0x3]
        %v2306 = vld [vmem:[#allocation3 + $0x30] sm:$0xff]
        %v2307 = vld [vmem:[#allocation3 + $0x38] sm:$0xff]
        %v2308 = vld [vmem:[#allocation3 + $0x40] sm:$0x3]
        %v2309 = vld [vmem:[#allocation3 + $0x48] sm:$0xff]
        %v2310 = vld [vmem:[#allocation3 + $0x50] sm:$0xff]
        %v2311 = vld [vmem:[#allocation3 + $0x58] sm:$0x3]
        %v2312 = vld [vmem:[#allocation3 + $0x60] sm:$0xff]
        %v2313 = vld [vmem:[#allocation3 + $0x68] sm:$0xff]
        %v2314 = vld [vmem:[#allocation3 + $0x70] sm:$0x3]
        %v2315 = vld [vmem:[#allocation3 + $0x78] sm:$0xff]
        %v2316 = vld [vmem:[#allocation3 + $0x80] sm:$0xff]
        %v2317 = vld [vmem:[#allocation3 + $0x88] sm:$0x3]
        %v2318 = vld [vmem:[#allocation3 + $0x90] sm:$0xff]
        %v2319 = vld [vmem:[#allocation3 + $0x98] sm:$0xff]
        %v2320 = vld [vmem:[#allocation3 + $0xa0] sm:$0x3]
        %v2321 = vld [vmem:[#allocation3 + $0xa8] sm:$0xff]
        %v2322 = vld [vmem:[#allocation3 + $0xb0] sm:$0xff]
        %v2323 = vld [vmem:[#allocation3 + $0xb8] sm:$0x3]
        %v2324 = vld [vmem:[#allocation3 + $0xc0] sm:$0xff]
        %v2325 = vld [vmem:[#allocation3 + $0xc8] sm:$0xff]
        %v2326 = vld [vmem:[#allocation3 + $0xd0] sm:$0x3]
        %v2327 = vld [vmem:[#allocation3 + $0xd8] sm:$0xff]
        %v2328 = vld [vmem:[#allocation3 + $0xe0] sm:$0xff]
        %v2329 = vld [vmem:[#allocation3 + $0xe8] sm:$0x3]
        %v2330 = vld [vmem:[#allocation3 + $0xf0] sm:$0xff]
        %v2331 = vld [vmem:[#allocation3 + $0xf8] sm:$0xff]
        %v2332 = vld [vmem:[#allocation3 + $0x100] sm:$0x3]
        %v2333 = vld [vmem:[#allocation3 + $0x108] sm:$0xff]
        %v2334 = vld [vmem:[#allocation3 + $0x110] sm:$0xff]
        %v2335 = vld [vmem:[#allocation3 + $0x118] sm:$0x3]
        %v2336 = vld [vmem:[#allocation11] sm:$0xff]
        %v2337 = vld [vmem:[#allocation11 + $0x8] sm:$0x1]
        %v2338 = vperm.slane %v2336, 0
        %v2339 = vmul.f32 %v2300, %v2338
        %v2340 = vmul.f32 %v2301, %v2338
        %v2341 = vmul.f32 %v2303, %v2338
        %v2342 = vmul.f32 %v2304, %v2338
        %v2343 = vmul.f32 %v2306, %v2338
        %v2344 = vmul.f32 %v2307, %v2338
        %v2345 = vmul.f32 %v2309, %v2338
        %v2346 = vmul.f32 %v2310, %v2338
        %v2347 = vmul.f32 %v2312, %v2338
        %v2348 = vmul.f32 %v2313, %v2338
        %v2349 = vmul.f32 %v2315, %v2338
        %v2350 = vmul.f32 %v2316, %v2338
        %v2351 = vmul.f32 %v2318, %v2338
        %v2352 = vmul.f32 %v2319, %v2338
        %v2353 = vmul.f32 %v2321, %v2338
        %v2354 = vmul.f32 %v2322, %v2338
        %v2355 = vmul.f32 %v2324, %v2338
        %v2356 = vmul.f32 %v2325, %v2338
        %v2357 = vmul.f32 %v2327, %v2338
        %v2358 = vmul.f32 %v2328, %v2338
        %v2359 = vadd.f32 %v2339, 0.0
        %v2360 = vadd.f32 %v2340, 0.0
        %v2361 = vadd.f32 %v2341, 0.0
        %v2362 = vadd.f32 %v2342, 0.0
        %v2363 = vadd.f32 %v2343, 0.0
        %v2364 = vadd.f32 %v2344, 0.0
        %v2365 = vadd.f32 %v2345, 0.0
        %v2366 = vadd.f32 %v2346, 0.0
        %v2367 = vadd.f32 %v2347, 0.0
        %v2368 = vadd.f32 %v2348, 0.0
        %v2369 = vadd.f32 %v2349, 0.0
        %v2370 = vadd.f32 %v2350, 0.0
        %v2371 = vadd.f32 %v2351, 0.0
        %v2372 = vadd.f32 %v2352, 0.0
        %v2373 = vadd.f32 %v2353, 0.0
        %v2374 = vadd.f32 %v2354, 0.0
        %v2375 = vadd.f32 %v2355, 0.0
        %v2376 = vadd.f32 %v2356, 0.0
        %v2377 = vadd.f32 %v2357, 0.0
        %v2378 = vadd.f32 %v2358, 0.0
        %v2379 = vperm.slane %v2336, 3
        %v2380 = vmul.f32 %v2303, %v2379
        %v2381 = vmul.f32 %v2304, %v2379
        %v2382 = vmul.f32 %v2306, %v2379
        %v2383 = vmul.f32 %v2307, %v2379
        %v2384 = vmul.f32 %v2309, %v2379
        %v2385 = vmul.f32 %v2310, %v2379
        %v2386 = vmul.f32 %v2312, %v2379
        %v2387 = vmul.f32 %v2313, %v2379
        %v2388 = vmul.f32 %v2315, %v2379
        %v2389 = vmul.f32 %v2316, %v2379
        %v2390 = vmul.f32 %v2318, %v2379
        %v2391 = vmul.f32 %v2319, %v2379
        %v2392 = vmul.f32 %v2321, %v2379
        %v2393 = vmul.f32 %v2322, %v2379
        %v2394 = vmul.f32 %v2324, %v2379
        %v2395 = vmul.f32 %v2325, %v2379
        %v2396 = vmul.f32 %v2327, %v2379
        %v2397 = vmul.f32 %v2328, %v2379
        %v2398 = vmul.f32 %v2330, %v2379
        %v2399 = vmul.f32 %v2331, %v2379
        %v2400 = vadd.f32 %v2359, %v2380
        %v2401 = vadd.f32 %v2360, %v2381
        %v2402 = vadd.f32 %v2361, %v2382
        %v2403 = vadd.f32 %v2362, %v2383
        %v2404 = vadd.f32 %v2363, %v2384
        %v2405 = vadd.f32 %v2364, %v2385
        %v2406 = vadd.f32 %v2365, %v2386
        %v2407 = vadd.f32 %v2366, %v2387
        %v2408 = vadd.f32 %v2367, %v2388
        %v2409 = vadd.f32 %v2368, %v2389
        %v2410 = vadd.f32 %v2369, %v2390
        %v2411 = vadd.f32 %v2370, %v2391
        %v2412 = vadd.f32 %v2371, %v2392
        %v2413 = vadd.f32 %v2372, %v2393
        %v2414 = vadd.f32 %v2373, %v2394
        %v2415 = vadd.f32 %v2374, %v2395
        %v2416 = vadd.f32 %v2375, %v2396
        %v2417 = vadd.f32 %v2376, %v2397
        %v2418 = vadd.f32 %v2377, %v2398
        %v2419 = vadd.f32 %v2378, %v2399
        %v2420 = vperm.slane %v2336, 6
        %v2421 = vmul.f32 %v2306, %v2420
        %v2422 = vmul.f32 %v2307, %v2420
        %v2423 = vmul.f32 %v2309, %v2420
        %v2424 = vmul.f32 %v2310, %v2420
        %v2425 = vmul.f32 %v2312, %v2420
        %v2426 = vmul.f32 %v2313, %v2420
        %v2427 = vmul.f32 %v2315, %v2420
        %v2428 = vmul.f32 %v2316, %v2420
        %v2429 = vmul.f32 %v2318, %v2420
        %v2430 = vmul.f32 %v2319, %v2420
        %v2431 = vmul.f32 %v2321, %v2420
        %v2432 = vmul.f32 %v2322, %v2420
        %v2433 = vmul.f32 %v2324, %v2420
        %v2434 = vmul.f32 %v2325, %v2420
        %v2435 = vmul.f32 %v2327, %v2420
        %v2436 = vmul.f32 %v2328, %v2420
        %v2437 = vmul.f32 %v2330, %v2420
        %v2438 = vmul.f32 %v2331, %v2420
        %v2439 = vmul.f32 %v2333, %v2420
        %v2440 = vmul.f32 %v2334, %v2420
        %v2441 = vadd.f32 %v2400, %v2421
        %v2442 = vadd.f32 %v2401, %v2422
        %v2443 = vadd.f32 %v2402, %v2423
        %v2444 = vadd.f32 %v2403, %v2424
        %v2445 = vadd.f32 %v2404, %v2425
        %v2446 = vadd.f32 %v2405, %v2426
        %v2447 = vadd.f32 %v2406, %v2427
        %v2448 = vadd.f32 %v2407, %v2428
        %v2449 = vadd.f32 %v2408, %v2429
        %v2450 = vadd.f32 %v2409, %v2430
        %v2451 = vadd.f32 %v2410, %v2431
        %v2452 = vadd.f32 %v2411, %v2432
        %v2453 = vadd.f32 %v2412, %v2433
        %v2454 = vadd.f32 %v2413, %v2434
        %v2455 = vadd.f32 %v2414, %v2435
        %v2456 = vadd.f32 %v2415, %v2436
        %v2457 = vadd.f32 %v2416, %v2437
        %v2458 = vadd.f32 %v2417, %v2438
        %v2459 = vadd.f32 %v2418, %v2439
        %v2460 = vadd.f32 %v2419, %v2440
        %v2461 = vperm.slane %v2336, 1
        %v2462 = vmul.f32 %v2300, %v2461
        %v2463 = vmul.f32 %v2301, %v2461
        %v2464 = vmul.f32 %v2302, %v2461
        %v2465 = vmul.f32 %v2303, %v2461
        %v2466 = vmul.f32 %v2304, %v2461
        %v2467 = vmul.f32 %v2305, %v2461
        %v2468 = vmul.f32 %v2306, %v2461
        %v2469 = vmul.f32 %v2307, %v2461
        %v2470 = vmul.f32 %v2308, %v2461
        %v2471 = vmul.f32 %v2309, %v2461
        %v2472 = vmul.f32 %v2310, %v2461
        %v2473 = vmul.f32 %v2311, %v2461
        %v2474 = vmul.f32 %v2312, %v2461
        %v2475 = vmul.f32 %v2313, %v2461
        %v2476 = vmul.f32 %v2314, %v2461
        %v2477 = vmul.f32 %v2315, %v2461
        %v2478 = vmul.f32 %v2316, %v2461
        %v2479 = vmul.f32 %v2317, %v2461
        %v2480 = vmul.f32 %v2318, %v2461
        %v2481 = vmul.f32 %v2319, %v2461
        %v2482 = vmul.f32 %v2320, %v2461
        %v2483 = vmul.f32 %v2321, %v2461
        %v2484 = vmul.f32 %v2322, %v2461
        %v2485 = vmul.f32 %v2323, %v2461
        %v2486 = vmul.f32 %v2324, %v2461
        %v2487 = vmul.f32 %v2325, %v2461
        %v2488 = vmul.f32 %v2326, %v2461
        %v2489 = vmul.f32 %v2327, %v2461
        %v2490 = vmul.f32 %v2328, %v2461
        %v2491 = vmul.f32 %v2329, %v2461
        %v2522 = vrot.slane %v2462, 1
        %v2523 = vrot.slane %v2463, 1
        %v2524 = vsel %vm995, %v2522, %v2523
        %v2525 = vrot.slane %v2464, 1
        %v2526 = vsel %vm995, %v2523, %v2525
        %v2527 = vrot.slane %v2465, 1
        %v2528 = vrot.slane %v2466, 1
        %v2529 = vsel %vm995, %v2527, %v2528
        %v2530 = vrot.slane %v2467, 1
        %v2531 = vsel %vm995, %v2528, %v2530
        %v2532 = vrot.slane %v2468, 1
        %v2533 = vrot.slane %v2469, 1
        %v2534 = vsel %vm995, %v2532, %v2533
        %v2535 = vrot.slane %v2470, 1
        %v2536 = vsel %vm995, %v2533, %v2535
        %v2537 = vrot.slane %v2471, 1
        %v2538 = vrot.slane %v2472, 1
        %v2539 = vsel %vm995, %v2537, %v2538
        %v2540 = vrot.slane %v2473, 1
        %v2541 = vsel %vm995, %v2538, %v2540
        %v2542 = vrot.slane %v2474, 1
        %v2543 = vrot.slane %v2475, 1
        %v2544 = vsel %vm995, %v2542, %v2543
        %v2545 = vrot.slane %v2476, 1
        %v2546 = vsel %vm995, %v2543, %v2545
        %v2547 = vrot.slane %v2477, 1
        %v2548 = vrot.slane %v2478, 1
        %v2549 = vsel %vm995, %v2547, %v2548
        %v2550 = vrot.slane %v2479, 1
        %v2551 = vsel %vm995, %v2548, %v2550
        %v2552 = vrot.slane %v2480, 1
        %v2553 = vrot.slane %v2481, 1
        %v2554 = vsel %vm995, %v2552, %v2553
        %v2555 = vrot.slane %v2482, 1
        %v2556 = vsel %vm995, %v2553, %v2555
        %v2557 = vrot.slane %v2483, 1
        %v2558 = vrot.slane %v2484, 1
        %v2559 = vsel %vm995, %v2557, %v2558
        %v2560 = vrot.slane %v2485, 1
        %v2561 = vsel %vm995, %v2558, %v2560
        %v2562 = vrot.slane %v2486, 1
        %v2563 = vrot.slane %v2487, 1
        %v2564 = vsel %vm995, %v2562, %v2563
        %v2565 = vrot.slane %v2488, 1
        %v2566 = vsel %vm995, %v2563, %v2565
        %v2567 = vrot.slane %v2489, 1
        %v2568 = vrot.slane %v2490, 1
        %v2569 = vsel %vm995, %v2567, %v2568
        %v2570 = vrot.slane %v2491, 1
        %v2571 = vsel %vm995, %v2568, %v2570
        %v2592 = vadd.f32 %v2441, %v2524
        %v2593 = vadd.f32 %v2442, %v2526
        %v2594 = vadd.f32 %v2443, %v2529
        %v2595 = vadd.f32 %v2444, %v2531
        %v2596 = vadd.f32 %v2445, %v2534
        %v2597 = vadd.f32 %v2446, %v2536
        %v2598 = vadd.f32 %v2447, %v2539
        %v2599 = vadd.f32 %v2448, %v2541
        %v2600 = vadd.f32 %v2449, %v2544
        %v2601 = vadd.f32 %v2450, %v2546
        %v2602 = vadd.f32 %v2451, %v2549
        %v2603 = vadd.f32 %v2452, %v2551
        %v2604 = vadd.f32 %v2453, %v2554
        %v2605 = vadd.f32 %v2454, %v2556
        %v2606 = vadd.f32 %v2455, %v2559
        %v2607 = vadd.f32 %v2456, %v2561
        %v2608 = vadd.f32 %v2457, %v2564
        %v2609 = vadd.f32 %v2458, %v2566
        %v2610 = vadd.f32 %v2459, %v2569
        %v2611 = vadd.f32 %v2460, %v2571
        %v2612 = vperm.slane %v2336, 4
        %v2613 = vmul.f32 %v2303, %v2612
        %v2614 = vmul.f32 %v2304, %v2612
        %v2615 = vmul.f32 %v2305, %v2612
        %v2616 = vmul.f32 %v2306, %v2612
        %v2617 = vmul.f32 %v2307, %v2612
        %v2618 = vmul.f32 %v2308, %v2612
        %v2619 = vmul.f32 %v2309, %v2612
        %v2620 = vmul.f32 %v2310, %v2612
        %v2621 = vmul.f32 %v2311, %v2612
        %v2622 = vmul.f32 %v2312, %v2612
        %v2623 = vmul.f32 %v2313, %v2612
        %v2624 = vmul.f32 %v2314, %v2612
        %v2625 = vmul.f32 %v2315, %v2612
        %v2626 = vmul.f32 %v2316, %v2612
        %v2627 = vmul.f32 %v2317, %v2612
        %v2628 = vmul.f32 %v2318, %v2612
        %v2629 = vmul.f32 %v2319, %v2612
        %v2630 = vmul.f32 %v2320, %v2612
        %v2631 = vmul.f32 %v2321, %v2612
        %v2632 = vmul.f32 %v2322, %v2612
        %v2633 = vmul.f32 %v2323, %v2612
        %v2634 = vmul.f32 %v2324, %v2612
        %v2635 = vmul.f32 %v2325, %v2612
        %v2636 = vmul.f32 %v2326, %v2612
        %v2637 = vmul.f32 %v2327, %v2612
        %v2638 = vmul.f32 %v2328, %v2612
        %v2639 = vmul.f32 %v2329, %v2612
        %v2640 = vmul.f32 %v2330, %v2612
        %v2641 = vmul.f32 %v2331, %v2612
        %v2642 = vmul.f32 %v2332, %v2612
        %v2673 = vrot.slane %v2613, 1
        %v2674 = vrot.slane %v2614, 1
        %v2675 = vsel %vm995, %v2673, %v2674
        %v2676 = vrot.slane %v2615, 1
        %v2677 = vsel %vm995, %v2674, %v2676
        %v2678 = vrot.slane %v2616, 1
        %v2679 = vrot.slane %v2617, 1
        %v2680 = vsel %vm995, %v2678, %v2679
        %v2681 = vrot.slane %v2618, 1
        %v2682 = vsel %vm995, %v2679, %v2681
        %v2683 = vrot.slane %v2619, 1
        %v2684 = vrot.slane %v2620, 1
        %v2685 = vsel %vm995, %v2683, %v2684
        %v2686 = vrot.slane %v2621, 1
        %v2687 = vsel %vm995, %v2684, %v2686
        %v2688 = vrot.slane %v2622, 1
        %v2689 = vrot.slane %v2623, 1
        %v2690 = vsel %vm995, %v2688, %v2689
        %v2691 = vrot.slane %v2624, 1
        %v2692 = vsel %vm995, %v2689, %v2691
        %v2693 = vrot.slane %v2625, 1
        %v2694 = vrot.slane %v2626, 1
        %v2695 = vsel %vm995, %v2693, %v2694
        %v2696 = vrot.slane %v2627, 1
        %v2697 = vsel %vm995, %v2694, %v2696
        %v2698 = vrot.slane %v2628, 1
        %v2699 = vrot.slane %v2629, 1
        %v2700 = vsel %vm995, %v2698, %v2699
        %v2701 = vrot.slane %v2630, 1
        %v2702 = vsel %vm995, %v2699, %v2701
        %v2703 = vrot.slane %v2631, 1
        %v2704 = vrot.slane %v2632, 1
        %v2705 = vsel %vm995, %v2703, %v2704
        %v2706 = vrot.slane %v2633, 1
        %v2707 = vsel %vm995, %v2704, %v2706
        %v2708 = vrot.slane %v2634, 1
        %v2709 = vrot.slane %v2635, 1
        %v2710 = vsel %vm995, %v2708, %v2709
        %v2711 = vrot.slane %v2636, 1
        %v2712 = vsel %vm995, %v2709, %v2711
        %v2713 = vrot.slane %v2637, 1
        %v2714 = vrot.slane %v2638, 1
        %v2715 = vsel %vm995, %v2713, %v2714
        %v2716 = vrot.slane %v2639, 1
        %v2717 = vsel %vm995, %v2714, %v2716
        %v2718 = vrot.slane %v2640, 1
        %v2719 = vrot.slane %v2641, 1
        %v2720 = vsel %vm995, %v2718, %v2719
        %v2721 = vrot.slane %v2642, 1
        %v2722 = vsel %vm995, %v2719, %v2721
        %v2743 = vadd.f32 %v2592, %v2675
        %v2744 = vadd.f32 %v2593, %v2677
        %v2745 = vadd.f32 %v2594, %v2680
        %v2746 = vadd.f32 %v2595, %v2682
        %v2747 = vadd.f32 %v2596, %v2685
        %v2748 = vadd.f32 %v2597, %v2687
        %v2749 = vadd.f32 %v2598, %v2690
        %v2750 = vadd.f32 %v2599, %v2692
        %v2751 = vadd.f32 %v2600, %v2695
        %v2752 = vadd.f32 %v2601, %v2697
        %v2753 = vadd.f32 %v2602, %v2700
        %v2754 = vadd.f32 %v2603, %v2702
        %v2755 = vadd.f32 %v2604, %v2705
        %v2756 = vadd.f32 %v2605, %v2707
        %v2757 = vadd.f32 %v2606, %v2710
        %v2758 = vadd.f32 %v2607, %v2712
        %v2759 = vadd.f32 %v2608, %v2715
        %v2760 = vadd.f32 %v2609, %v2717
        %v2761 = vadd.f32 %v2610, %v2720
        %v2762 = vadd.f32 %v2611, %v2722
        %v2763 = vperm.slane %v2336, 7
        %v2764 = vmul.f32 %v2306, %v2763
        %v2765 = vmul.f32 %v2307, %v2763
        %v2766 = vmul.f32 %v2308, %v2763
        %v2767 = vmul.f32 %v2309, %v2763
        %v2768 = vmul.f32 %v2310, %v2763
        %v2769 = vmul.f32 %v2311, %v2763
        %v2770 = vmul.f32 %v2312, %v2763
        %v2771 = vmul.f32 %v2313, %v2763
        %v2772 = vmul.f32 %v2314, %v2763
        %v2773 = vmul.f32 %v2315, %v2763
        %v2774 = vmul.f32 %v2316, %v2763
        %v2775 = vmul.f32 %v2317, %v2763
        %v2776 = vmul.f32 %v2318, %v2763
        %v2777 = vmul.f32 %v2319, %v2763
        %v2778 = vmul.f32 %v2320, %v2763
        %v2779 = vmul.f32 %v2321, %v2763
        %v2780 = vmul.f32 %v2322, %v2763
        %v2781 = vmul.f32 %v2323, %v2763
        %v2782 = vmul.f32 %v2324, %v2763
        %v2783 = vmul.f32 %v2325, %v2763
        %v2784 = vmul.f32 %v2326, %v2763
        %v2785 = vmul.f32 %v2327, %v2763
        %v2786 = vmul.f32 %v2328, %v2763
        %v2787 = vmul.f32 %v2329, %v2763
        %v2788 = vmul.f32 %v2330, %v2763
        %v2789 = vmul.f32 %v2331, %v2763
        %v2790 = vmul.f32 %v2332, %v2763
        %v2791 = vmul.f32 %v2333, %v2763
        %v2792 = vmul.f32 %v2334, %v2763
        %v2793 = vmul.f32 %v2335, %v2763
        %v2824 = vrot.slane %v2764, 1
        %v2825 = vrot.slane %v2765, 1
        %v2826 = vsel %vm995, %v2824, %v2825
        %v2827 = vrot.slane %v2766, 1
        %v2828 = vsel %vm995, %v2825, %v2827
        %v2829 = vrot.slane %v2767, 1
        %v2830 = vrot.slane %v2768, 1
        %v2831 = vsel %vm995, %v2829, %v2830
        %v2832 = vrot.slane %v2769, 1
        %v2833 = vsel %vm995, %v2830, %v2832
        %v2834 = vrot.slane %v2770, 1
        %v2835 = vrot.slane %v2771, 1
        %v2836 = vsel %vm995, %v2834, %v2835
        %v2837 = vrot.slane %v2772, 1
        %v2838 = vsel %vm995, %v2835, %v2837
        %v2839 = vrot.slane %v2773, 1
        %v2840 = vrot.slane %v2774, 1
        %v2841 = vsel %vm995, %v2839, %v2840
        %v2842 = vrot.slane %v2775, 1
        %v2843 = vsel %vm995, %v2840, %v2842
        %v2844 = vrot.slane %v2776, 1
        %v2845 = vrot.slane %v2777, 1
        %v2846 = vsel %vm995, %v2844, %v2845
        %v2847 = vrot.slane %v2778, 1
        %v2848 = vsel %vm995, %v2845, %v2847
        %v2849 = vrot.slane %v2779, 1
        %v2850 = vrot.slane %v2780, 1
        %v2851 = vsel %vm995, %v2849, %v2850
        %v2852 = vrot.slane %v2781, 1
        %v2853 = vsel %vm995, %v2850, %v2852
        %v2854 = vrot.slane %v2782, 1
        %v2855 = vrot.slane %v2783, 1
        %v2856 = vsel %vm995, %v2854, %v2855
        %v2857 = vrot.slane %v2784, 1
        %v2858 = vsel %vm995, %v2855, %v2857
        %v2859 = vrot.slane %v2785, 1
        %v2860 = vrot.slane %v2786, 1
        %v2861 = vsel %vm995, %v2859, %v2860
        %v2862 = vrot.slane %v2787, 1
        %v2863 = vsel %vm995, %v2860, %v2862
        %v2864 = vrot.slane %v2788, 1
        %v2865 = vrot.slane %v2789, 1
        %v2866 = vsel %vm995, %v2864, %v2865
        %v2867 = vrot.slane %v2790, 1
        %v2868 = vsel %vm995, %v2865, %v2867
        %v2869 = vrot.slane %v2791, 1
        %v2870 = vrot.slane %v2792, 1
        %v2871 = vsel %vm995, %v2869, %v2870
        %v2872 = vrot.slane %v2793, 1
        %v2873 = vsel %vm995, %v2870, %v2872
        %v2894 = vadd.f32 %v2743, %v2826
        %v2895 = vadd.f32 %v2744, %v2828
        %v2896 = vadd.f32 %v2745, %v2831
        %v2897 = vadd.f32 %v2746, %v2833
        %v2898 = vadd.f32 %v2747, %v2836
        %v2899 = vadd.f32 %v2748, %v2838
        %v2900 = vadd.f32 %v2749, %v2841
        %v2901 = vadd.f32 %v2750, %v2843
        %v2902 = vadd.f32 %v2751, %v2846
        %v2903 = vadd.f32 %v2752, %v2848
        %v2904 = vadd.f32 %v2753, %v2851
        %v2905 = vadd.f32 %v2754, %v2853
        %v2906 = vadd.f32 %v2755, %v2856
        %v2907 = vadd.f32 %v2756, %v2858
        %v2908 = vadd.f32 %v2757, %v2861
        %v2909 = vadd.f32 %v2758, %v2863
        %v2910 = vadd.f32 %v2759, %v2866
        %v2911 = vadd.f32 %v2760, %v2868
        %v2912 = vadd.f32 %v2761, %v2871
        %v2913 = vadd.f32 %v2762, %v2873
        %v2914 = vperm.slane %v2336, 2
        %v2915 = vmul.f32 %v2300, %v2914
        %v2916 = vmul.f32 %v2301, %v2914
        %v2917 = vmul.f32 %v2302, %v2914
        %v2918 = vmul.f32 %v2303, %v2914
        %v2919 = vmul.f32 %v2304, %v2914
        %v2920 = vmul.f32 %v2305, %v2914
        %v2921 = vmul.f32 %v2306, %v2914
        %v2922 = vmul.f32 %v2307, %v2914
        %v2923 = vmul.f32 %v2308, %v2914
        %v2924 = vmul.f32 %v2309, %v2914
        %v2925 = vmul.f32 %v2310, %v2914
        %v2926 = vmul.f32 %v2311, %v2914
        %v2927 = vmul.f32 %v2312, %v2914
        %v2928 = vmul.f32 %v2313, %v2914
        %v2929 = vmul.f32 %v2314, %v2914
        %v2930 = vmul.f32 %v2315, %v2914
        %v2931 = vmul.f32 %v2316, %v2914
        %v2932 = vmul.f32 %v2317, %v2914
        %v2933 = vmul.f32 %v2318, %v2914
        %v2934 = vmul.f32 %v2319, %v2914
        %v2935 = vmul.f32 %v2320, %v2914
        %v2936 = vmul.f32 %v2321, %v2914
        %v2937 = vmul.f32 %v2322, %v2914
        %v2938 = vmul.f32 %v2323, %v2914
        %v2939 = vmul.f32 %v2324, %v2914
        %v2940 = vmul.f32 %v2325, %v2914
        %v2941 = vmul.f32 %v2326, %v2914
        %v2942 = vmul.f32 %v2327, %v2914
        %v2943 = vmul.f32 %v2328, %v2914
        %v2944 = vmul.f32 %v2329, %v2914
        %v2975 = vrot.slane %v2915, 2
        %v2976 = vrot.slane %v2916, 2
        %v2977 = vsel %vm1539, %v2975, %v2976
        %v2978 = vrot.slane %v2917, 2
        %v2979 = vsel %vm1539, %v2976, %v2978
        %v2980 = vrot.slane %v2918, 2
        %v2981 = vrot.slane %v2919, 2
        %v2982 = vsel %vm1539, %v2980, %v2981
        %v2983 = vrot.slane %v2920, 2
        %v2984 = vsel %vm1539, %v2981, %v2983
        %v2985 = vrot.slane %v2921, 2
        %v2986 = vrot.slane %v2922, 2
        %v2987 = vsel %vm1539, %v2985, %v2986
        %v2988 = vrot.slane %v2923, 2
        %v2989 = vsel %vm1539, %v2986, %v2988
        %v2990 = vrot.slane %v2924, 2
        %v2991 = vrot.slane %v2925, 2
        %v2992 = vsel %vm1539, %v2990, %v2991
        %v2993 = vrot.slane %v2926, 2
        %v2994 = vsel %vm1539, %v2991, %v2993
        %v2995 = vrot.slane %v2927, 2
        %v2996 = vrot.slane %v2928, 2
        %v2997 = vsel %vm1539, %v2995, %v2996
        %v2998 = vrot.slane %v2929, 2
        %v2999 = vsel %vm1539, %v2996, %v2998
        %v3000 = vrot.slane %v2930, 2
        %v3001 = vrot.slane %v2931, 2
        %v3002 = vsel %vm1539, %v3000, %v3001
        %v3003 = vrot.slane %v2932, 2
        %v3004 = vsel %vm1539, %v3001, %v3003
        %v3005 = vrot.slane %v2933, 2
        %v3006 = vrot.slane %v2934, 2
        %v3007 = vsel %vm1539, %v3005, %v3006
        %v3008 = vrot.slane %v2935, 2
        %v3009 = vsel %vm1539, %v3006, %v3008
        %v3010 = vrot.slane %v2936, 2
        %v3011 = vrot.slane %v2937, 2
        %v3012 = vsel %vm1539, %v3010, %v3011
        %v3013 = vrot.slane %v2938, 2
        %v3014 = vsel %vm1539, %v3011, %v3013
        %v3015 = vrot.slane %v2939, 2
        %v3016 = vrot.slane %v2940, 2
        %v3017 = vsel %vm1539, %v3015, %v3016
        %v3018 = vrot.slane %v2941, 2
        %v3019 = vsel %vm1539, %v3016, %v3018
        %v3020 = vrot.slane %v2942, 2
        %v3021 = vrot.slane %v2943, 2
        %v3022 = vsel %vm1539, %v3020, %v3021
        %v3023 = vrot.slane %v2944, 2
        %v3024 = vsel %vm1539, %v3021, %v3023
        %v3045 = vadd.f32 %v2894, %v2977
        %v3046 = vadd.f32 %v2895, %v2979
        %v3047 = vadd.f32 %v2896, %v2982
        %v3048 = vadd.f32 %v2897, %v2984
        %v3049 = vadd.f32 %v2898, %v2987
        %v3050 = vadd.f32 %v2899, %v2989
        %v3051 = vadd.f32 %v2900, %v2992
        %v3052 = vadd.f32 %v2901, %v2994
        %v3053 = vadd.f32 %v2902, %v2997
        %v3054 = vadd.f32 %v2903, %v2999
        %v3055 = vadd.f32 %v2904, %v3002
        %v3056 = vadd.f32 %v2905, %v3004
        %v3057 = vadd.f32 %v2906, %v3007
        %v3058 = vadd.f32 %v2907, %v3009
        %v3059 = vadd.f32 %v2908, %v3012
        %v3060 = vadd.f32 %v2909, %v3014
        %v3061 = vadd.f32 %v2910, %v3017
        %v3062 = vadd.f32 %v2911, %v3019
        %v3063 = vadd.f32 %v2912, %v3022
        %v3064 = vadd.f32 %v2913, %v3024
        %v3065 = vperm.slane %v2336, 5
        %v3066 = vmul.f32 %v2303, %v3065
        %v3067 = vmul.f32 %v2304, %v3065
        %v3068 = vmul.f32 %v2305, %v3065
        %v3069 = vmul.f32 %v2306, %v3065
        %v3070 = vmul.f32 %v2307, %v3065
        %v3071 = vmul.f32 %v2308, %v3065
        %v3072 = vmul.f32 %v2309, %v3065
        %v3073 = vmul.f32 %v2310, %v3065
        %v3074 = vmul.f32 %v2311, %v3065
        %v3075 = vmul.f32 %v2312, %v3065
        %v3076 = vmul.f32 %v2313, %v3065
        %v3077 = vmul.f32 %v2314, %v3065
        %v3078 = vmul.f32 %v2315, %v3065
        %v3079 = vmul.f32 %v2316, %v3065
        %v3080 = vmul.f32 %v2317, %v3065
        %v3081 = vmul.f32 %v2318, %v3065
        %v3082 = vmul.f32 %v2319, %v3065
        %v3083 = vmul.f32 %v2320, %v3065
        %v3084 = vmul.f32 %v2321, %v3065
        %v3085 = vmul.f32 %v2322, %v3065
        %v3086 = vmul.f32 %v2323, %v3065
        %v3087 = vmul.f32 %v2324, %v3065
        %v3088 = vmul.f32 %v2325, %v3065
        %v3089 = vmul.f32 %v2326, %v3065
        %v3090 = vmul.f32 %v2327, %v3065
        %v3091 = vmul.f32 %v2328, %v3065
        %v3092 = vmul.f32 %v2329, %v3065
        %v3093 = vmul.f32 %v2330, %v3065
        %v3094 = vmul.f32 %v2331, %v3065
        %v3095 = vmul.f32 %v2332, %v3065
        %v3126 = vrot.slane %v3066, 2
        %v3127 = vrot.slane %v3067, 2
        %v3128 = vsel %vm1539, %v3126, %v3127
        %v3129 = vrot.slane %v3068, 2
        %v3130 = vsel %vm1539, %v3127, %v3129
        %v3131 = vrot.slane %v3069, 2
        %v3132 = vrot.slane %v3070, 2
        %v3133 = vsel %vm1539, %v3131, %v3132
        %v3134 = vrot.slane %v3071, 2
        %v3135 = vsel %vm1539, %v3132, %v3134
        %v3136 = vrot.slane %v3072, 2
        %v3137 = vrot.slane %v3073, 2
        %v3138 = vsel %vm1539, %v3136, %v3137
        %v3139 = vrot.slane %v3074, 2
        %v3140 = vsel %vm1539, %v3137, %v3139
        %v3141 = vrot.slane %v3075, 2
        %v3142 = vrot.slane %v3076, 2
        %v3143 = vsel %vm1539, %v3141, %v3142
        %v3144 = vrot.slane %v3077, 2
        %v3145 = vsel %vm1539, %v3142, %v3144
        %v3146 = vrot.slane %v3078, 2
        %v3147 = vrot.slane %v3079, 2
        %v3148 = vsel %vm1539, %v3146, %v3147
        %v3149 = vrot.slane %v3080, 2
        %v3150 = vsel %vm1539, %v3147, %v3149
        %v3151 = vrot.slane %v3081, 2
        %v3152 = vrot.slane %v3082, 2
        %v3153 = vsel %vm1539, %v3151, %v3152
        %v3154 = vrot.slane %v3083, 2
        %v3155 = vsel %vm1539, %v3152, %v3154
        %v3156 = vrot.slane %v3084, 2
        %v3157 = vrot.slane %v3085, 2
        %v3158 = vsel %vm1539, %v3156, %v3157
        %v3159 = vrot.slane %v3086, 2
        %v3160 = vsel %vm1539, %v3157, %v3159
        %v3161 = vrot.slane %v3087, 2
        %v3162 = vrot.slane %v3088, 2
        %v3163 = vsel %vm1539, %v3161, %v3162
        %v3164 = vrot.slane %v3089, 2
        %v3165 = vsel %vm1539, %v3162, %v3164
        %v3166 = vrot.slane %v3090, 2
        %v3167 = vrot.slane %v3091, 2
        %v3168 = vsel %vm1539, %v3166, %v3167
        %v3169 = vrot.slane %v3092, 2
        %v3170 = vsel %vm1539, %v3167, %v3169
        %v3171 = vrot.slane %v3093, 2
        %v3172 = vrot.slane %v3094, 2
        %v3173 = vsel %vm1539, %v3171, %v3172
        %v3174 = vrot.slane %v3095, 2
        %v3175 = vsel %vm1539, %v3172, %v3174
        %v3196 = vadd.f32 %v3045, %v3128
        %v3197 = vadd.f32 %v3046, %v3130
        %v3198 = vadd.f32 %v3047, %v3133
        %v3199 = vadd.f32 %v3048, %v3135
        %v3200 = vadd.f32 %v3049, %v3138
        %v3201 = vadd.f32 %v3050, %v3140
        %v3202 = vadd.f32 %v3051, %v3143
        %v3203 = vadd.f32 %v3052, %v3145
        %v3204 = vadd.f32 %v3053, %v3148
        %v3205 = vadd.f32 %v3054, %v3150
        %v3206 = vadd.f32 %v3055, %v3153
        %v3207 = vadd.f32 %v3056, %v3155
        %v3208 = vadd.f32 %v3057, %v3158
        %v3209 = vadd.f32 %v3058, %v3160
        %v3210 = vadd.f32 %v3059, %v3163
        %v3211 = vadd.f32 %v3060, %v3165
        %v3212 = vadd.f32 %v3061, %v3168
        %v3213 = vadd.f32 %v3062, %v3170
        %v3214 = vadd.f32 %v3063, %v3173
        %v3215 = vadd.f32 %v3064, %v3175
        %v3216 = vperm.slane %v2337, 0
        %v3217 = vmul.f32 %v2306, %v3216
        %v3218 = vmul.f32 %v2307, %v3216
        %v3219 = vmul.f32 %v2308, %v3216
        %v3220 = vmul.f32 %v2309, %v3216
        %v3221 = vmul.f32 %v2310, %v3216
        %v3222 = vmul.f32 %v2311, %v3216
        %v3223 = vmul.f32 %v2312, %v3216
        %v3224 = vmul.f32 %v2313, %v3216
        %v3225 = vmul.f32 %v2314, %v3216
        %v3226 = vmul.f32 %v2315, %v3216
        %v3227 = vmul.f32 %v2316, %v3216
        %v3228 = vmul.f32 %v2317, %v3216
        %v3229 = vmul.f32 %v2318, %v3216
        %v3230 = vmul.f32 %v2319, %v3216
        %v3231 = vmul.f32 %v2320, %v3216
        %v3232 = vmul.f32 %v2321, %v3216
        %v3233 = vmul.f32 %v2322, %v3216
        %v3234 = vmul.f32 %v2323, %v3216
        %v3235 = vmul.f32 %v2324, %v3216
        %v3236 = vmul.f32 %v2325, %v3216
        %v3237 = vmul.f32 %v2326, %v3216
        %v3238 = vmul.f32 %v2327, %v3216
        %v3239 = vmul.f32 %v2328, %v3216
        %v3240 = vmul.f32 %v2329, %v3216
        %v3241 = vmul.f32 %v2330, %v3216
        %v3242 = vmul.f32 %v2331, %v3216
        %v3243 = vmul.f32 %v2332, %v3216
        %v3244 = vmul.f32 %v2333, %v3216
        %v3245 = vmul.f32 %v2334, %v3216
        %v3246 = vmul.f32 %v2335, %v3216
        %v3277 = vrot.slane %v3217, 2
        %v3278 = vrot.slane %v3218, 2
        %v3279 = vsel %vm1539, %v3277, %v3278
        %v3280 = vrot.slane %v3219, 2
        %v3281 = vsel %vm1539, %v3278, %v3280
        %v3282 = vrot.slane %v3220, 2
        %v3283 = vrot.slane %v3221, 2
        %v3284 = vsel %vm1539, %v3282, %v3283
        %v3285 = vrot.slane %v3222, 2
        %v3286 = vsel %vm1539, %v3283, %v3285
        %v3287 = vrot.slane %v3223, 2
        %v3288 = vrot.slane %v3224, 2
        %v3289 = vsel %vm1539, %v3287, %v3288
        %v3290 = vrot.slane %v3225, 2
        %v3291 = vsel %vm1539, %v3288, %v3290
        %v3292 = vrot.slane %v3226, 2
        %v3293 = vrot.slane %v3227, 2
        %v3294 = vsel %vm1539, %v3292, %v3293
        %v3295 = vrot.slane %v3228, 2
        %v3296 = vsel %vm1539, %v3293, %v3295
        %v3297 = vrot.slane %v3229, 2
        %v3298 = vrot.slane %v3230, 2
        %v3299 = vsel %vm1539, %v3297, %v3298
        %v3300 = vrot.slane %v3231, 2
        %v3301 = vsel %vm1539, %v3298, %v3300
        %v3302 = vrot.slane %v3232, 2
        %v3303 = vrot.slane %v3233, 2
        %v3304 = vsel %vm1539, %v3302, %v3303
        %v3305 = vrot.slane %v3234, 2
        %v3306 = vsel %vm1539, %v3303, %v3305
        %v3307 = vrot.slane %v3235, 2
        %v3308 = vrot.slane %v3236, 2
        %v3309 = vsel %vm1539, %v3307, %v3308
        %v3310 = vrot.slane %v3237, 2
        %v3311 = vsel %vm1539, %v3308, %v3310
        %v3312 = vrot.slane %v3238, 2
        %v3313 = vrot.slane %v3239, 2
        %v3314 = vsel %vm1539, %v3312, %v3313
        %v3315 = vrot.slane %v3240, 2
        %v3316 = vsel %vm1539, %v3313, %v3315
        %v3317 = vrot.slane %v3241, 2
        %v3318 = vrot.slane %v3242, 2
        %v3319 = vsel %vm1539, %v3317, %v3318
        %v3320 = vrot.slane %v3243, 2
        %v3321 = vsel %vm1539, %v3318, %v3320
        %v3322 = vrot.slane %v3244, 2
        %v3323 = vrot.slane %v3245, 2
        %v3324 = vsel %vm1539, %v3322, %v3323
        %v3325 = vrot.slane %v3246, 2
        %v3326 = vsel %vm1539, %v3323, %v3325
        %v3347 = vadd.f32 %v3196, %v3279
        %v3348 = vadd.f32 %v3197, %v3281
        %v3349 = vadd.f32 %v3198, %v3284
        %v3350 = vadd.f32 %v3199, %v3286
        %v3351 = vadd.f32 %v3200, %v3289
        %v3352 = vadd.f32 %v3201, %v3291
        %v3353 = vadd.f32 %v3202, %v3294
        %v3354 = vadd.f32 %v3203, %v3296
        %v3355 = vadd.f32 %v3204, %v3299
        %v3356 = vadd.f32 %v3205, %v3301
        %v3357 = vadd.f32 %v3206, %v3304
        %v3358 = vadd.f32 %v3207, %v3306
        %v3359 = vadd.f32 %v3208, %v3309
        %v3360 = vadd.f32 %v3209, %v3311
        %v3361 = vadd.f32 %v3210, %v3314
        %v3362 = vadd.f32 %v3211, %v3316
        %v3363 = vadd.f32 %v3212, %v3319
        %v3364 = vadd.f32 %v3213, %v3321
        %v3365 = vadd.f32 %v3214, %v3324
        %v3366 = vadd.f32 %v3215, %v3326
        %v3367 = vld [vmem:[#allocation13] sm:$0xff]
        %v3368 = vld [vmem:[#allocation13 + $0x8] sm:$0xff]
        %v3369 = vld [vmem:[#allocation13 + $0x10] sm:$0xff]
        %v3370 = vld [vmem:[#allocation13 + $0x18] sm:$0xff]
        %v3371 = vld [vmem:[#allocation13 + $0x20] sm:$0xff]
        %v3372 = vld [vmem:[#allocation13 + $0x28] sm:$0xff]
        %v3373 = vld [vmem:[#allocation13 + $0x30] sm:$0xff]
        %v3374 = vld [vmem:[#allocation13 + $0x38] sm:$0xff]
        %v3375 = vld [vmem:[#allocation13 + $0x40] sm:$0xff]
        %v3376 = vld [vmem:[#allocation13 + $0x48] sm:$0xff]
        %v3377 = vld [vmem:[#allocation13 + $0x50] sm:$0xff]
        %v3378 = vld [vmem:[#allocation13 + $0x58] sm:$0xff]
        %v3379 = vld [vmem:[#allocation13 + $0x60] sm:$0xff]
        %v3380 = vld [vmem:[#allocation13 + $0x68] sm:$0xff]
        %v3381 = vld [vmem:[#allocation13 + $0x70] sm:$0xff]
        %v3382 = vld [vmem:[#allocation13 + $0x78] sm:$0xff]
        %v3383 = vld [vmem:[%s6] sm:$0x1]
        %v3385 = vperm.slane %v3383, 0
        %3387 = vmatpush.msra.mxu0 %v3382
        %3388 = vmatpush.msra.mxu0 %v3381
        %3389 = vmatpush.msra.mxu0 %v3380
        %3390 = vmatpush.msra.mxu0 %v3379
        %3391 = vmatpush.msra.mxu0 %v3378
        %3392 = vmatpush.msra.mxu0 %v3377
        %3393 = vmatpush.msra.mxu0 %v3376
        %3394 = vmatpush.msra.mxu0 %v3375
        %3395 = vmatpush.msra.mxu0 %v3374
        %3396 = vmatpush.msra.mxu0 %v3373
        %3397 = vmatpush.msra.mxu0 %v3372
        %3398 = vmatpush.msra.mxu0 %v3371
        %3399 = vmatpush.msra.mxu0 %v3370
        %3400 = vmatpush.msra.mxu0 %v3369
        %3401 = vmatpush.msra.mxu0 %v3368
        %3402 = vmatpush.msra.mxu0 %v3367
        %3403 = vmatmul.f32.gmra.mxu0 %v3347
        %v3404 = vpop.f32.mrf.mxu0
        %v3405 = vadd.f32 %v3385, %v3404
        %3406 = vmatmul.f32.gmra.mxu0 %v3348
        %v3407 = vpop.f32.mrf.mxu0
        %v3408 = vadd.f32 %v3385, %v3407
        %3409 = vmatmul.f32.gmra.mxu0 %v3349
        %v3410 = vpop.f32.mrf.mxu0
        %v3411 = vadd.f32 %v3385, %v3410
        %3412 = vmatmul.f32.gmra.mxu0 %v3350
        %v3413 = vpop.f32.mrf.mxu0
        %v3414 = vadd.f32 %v3385, %v3413
        %3415 = vmatmul.f32.gmra.mxu0 %v3351
        %v3416 = vpop.f32.mrf.mxu0
        %v3417 = vadd.f32 %v3385, %v3416
        %3418 = vmatmul.f32.gmra.mxu0 %v3352
        %v3419 = vpop.f32.mrf.mxu0
        %v3420 = vadd.f32 %v3385, %v3419
        %3421 = vmatmul.f32.gmra.mxu0 %v3353
        %v3422 = vpop.f32.mrf.mxu0
        %v3423 = vadd.f32 %v3385, %v3422
        %3424 = vmatmul.f32.gmra.mxu0 %v3354
        %v3425 = vpop.f32.mrf.mxu0
        %v3426 = vadd.f32 %v3385, %v3425
        %3427 = vmatmul.f32.gmra.mxu0 %v3355
        %v3428 = vpop.f32.mrf.mxu0
        %v3429 = vadd.f32 %v3385, %v3428
        %3430 = vmatmul.f32.gmra.mxu0 %v3356
        %v3431 = vpop.f32.mrf.mxu0
        %v3432 = vadd.f32 %v3385, %v3431
        %3433 = vmatmul.f32.gmra.mxu0 %v3357
        %v3434 = vpop.f32.mrf.mxu0
        %v3435 = vadd.f32 %v3385, %v3434
        %3436 = vmatmul.f32.gmra.mxu0 %v3358
        %v3437 = vpop.f32.mrf.mxu0
        %v3438 = vadd.f32 %v3385, %v3437
        %3439 = vmatmul.f32.gmra.mxu0 %v3359
        %v3440 = vpop.f32.mrf.mxu0
        %v3441 = vadd.f32 %v3385, %v3440
        %3442 = vmatmul.f32.gmra.mxu0 %v3360
        %v3443 = vpop.f32.mrf.mxu0
        %v3444 = vadd.f32 %v3385, %v3443
        %3445 = vmatmul.f32.gmra.mxu0 %v3361
        %v3446 = vpop.f32.mrf.mxu0
        %v3447 = vadd.f32 %v3385, %v3446
        %3448 = vmatmul.f32.gmra.mxu0 %v3362
        %v3449 = vpop.f32.mrf.mxu0
        %v3450 = vadd.f32 %v3385, %v3449
        %3451 = vmatmul.f32.gmra.mxu0 %v3363
        %v3452 = vpop.f32.mrf.mxu0
        %v3453 = vadd.f32 %v3385, %v3452
        %3454 = vmatmul.f32.gmra.mxu0 %v3364
        %v3455 = vpop.f32.mrf.mxu0
        %v3456 = vadd.f32 %v3385, %v3455
        %3457 = vmatmul.f32.gmra.mxu0 %v3365
        %v3458 = vpop.f32.mrf.mxu0
        %v3459 = vadd.f32 %v3385, %v3458
        %3460 = vmatmul.f32.gmra.mxu0 %v3366
        %v3461 = vpop.f32.mrf.mxu0
        %v3462 = vadd.f32 %v3385, %v3461
        %3463 = vdwg.mxu0
        %s3464 = ssub.s32 %s565, 1
        %v3465 = vstv %s3464
        %v3466 = vadd.s32 %v3465, 1
        %v3467 = vadd.s32 %v3465, 2
        %v3468 = vadd.s32 %v3465, 3
        %v3469 = vadd.s32 %v3465, 4
        %v3470 = vadd.s32 %v3465, 5
        %v3471 = vadd.s32 %v3465, 6
        %v3472 = vadd.s32 %v3465, 7
        %v3473 = vadd.s32 %v3465, 8
        %v3474 = vadd.s32 %v3465, 9
        %vm3475 = vcmp.ge.s32.totalorder %v3465, 0
        %vm3476 = vcmp.ge.s32.totalorder %v3466, 0
        %vm3477 = vcmp.ge.s32.totalorder %v3467, 0
        %vm3478 = vcmp.ge.s32.totalorder %v3468, 0
        %vm3479 = vcmp.ge.s32.totalorder %v3469, 0
        %vm3480 = vcmp.ge.s32.totalorder %v3470, 0
        %vm3481 = vcmp.ge.s32.totalorder %v3471, 0
        %vm3482 = vcmp.ge.s32.totalorder %v3472, 0
        %vm3483 = vcmp.ge.s32.totalorder %v3473, 0
        %vm3484 = vcmp.ge.s32.totalorder %v3474, 0
        %vm3485 = vcmp.lt.s32.totalorder %v3465, 16
        %vm3486 = vcmp.lt.s32.totalorder %v3466, 16
        %vm3487 = vcmp.lt.s32.totalorder %v3467, 16
        %vm3488 = vcmp.lt.s32.totalorder %v3468, 16
        %vm3489 = vcmp.lt.s32.totalorder %v3469, 16
        %vm3490 = vcmp.lt.s32.totalorder %v3470, 16
        %vm3491 = vcmp.lt.s32.totalorder %v3471, 16
        %vm3492 = vcmp.lt.s32.totalorder %v3472, 16
        %vm3493 = vcmp.lt.s32.totalorder %v3473, 16
        %vm3494 = vcmp.lt.s32.totalorder %v3474, 16
        %vm3495 = vmand %vm3475, %vm3485
        %vm3496 = vmand %vm3476, %vm3486
        %vm3497 = vmand %vm3477, %vm3487
        %vm3498 = vmand %vm3478, %vm3488
        %vm3499 = vmand %vm3479, %vm3489
        %vm3500 = vmand %vm3480, %vm3490
        %vm3501 = vmand %vm3481, %vm3491
        %vm3502 = vmand %vm3482, %vm3492
        %vm3503 = vmand %vm3483, %vm3493
        %vm3504 = vmand %vm3484, %vm3494
        %v3505 = vmax.f32 %v3405, 0.0
        %v3506 = vmax.f32 %v3408, 0.0
        %v3507 = vmax.f32 %v3411, 0.0
        %v3508 = vmax.f32 %v3414, 0.0
        %v3509 = vmax.f32 %v3417, 0.0
        %v3510 = vmax.f32 %v3420, 0.0
        %v3511 = vmax.f32 %v3423, 0.0
        %v3512 = vmax.f32 %v3426, 0.0
        %v3513 = vmax.f32 %v3429, 0.0
        %v3514 = vmax.f32 %v3432, 0.0
        %v3515 = vmax.f32 %v3435, 0.0
        %v3516 = vmax.f32 %v3438, 0.0
        %v3517 = vmax.f32 %v3441, 0.0
        %v3518 = vmax.f32 %v3444, 0.0
        %v3519 = vmax.f32 %v3447, 0.0
        %v3520 = vmax.f32 %v3450, 0.0
        %v3521 = vmax.f32 %v3453, 0.0
        %v3522 = vmax.f32 %v3456, 0.0
        %v3523 = vmax.f32 %v3459, 0.0
        %v3524 = vmax.f32 %v3462, 0.0
        %v3525 = vsel %vm3495, 1, 0
        %v3526 = vsel %vm3496, 1, 0
        %v3527 = vsel %vm3497, 1, 0
        %v3528 = vsel %vm3498, 1, 0
        %v3529 = vsel %vm3499, 1, 0
        %v3530 = vsel %vm3500, 1, 0
        %v3531 = vsel %vm3501, 1, 0
        %v3532 = vsel %vm3502, 1, 0
        %v3533 = vsel %vm3503, 1, 0
        %v3534 = vsel %vm3504, 1, 0
        %vm3535 = vcmp.eq.s32.totalorder %v3525, 1
        %vm3536 = vcmp.eq.s32.totalorder %v3526, 1
        %vm3537 = vcmp.eq.s32.totalorder %v3527, 1
        %vm3538 = vcmp.eq.s32.totalorder %v3528, 1
        %vm3539 = vcmp.eq.s32.totalorder %v3529, 1
        %vm3540 = vcmp.eq.s32.totalorder %v3530, 1
        %vm3541 = vcmp.eq.s32.totalorder %v3531, 1
        %vm3542 = vcmp.eq.s32.totalorder %v3532, 1
        %vm3543 = vcmp.eq.s32.totalorder %v3533, 1
        %vm3544 = vcmp.eq.s32.totalorder %v3534, 1
        %v3545 = vsel %vm3535, %v3505, 0.0
        %v3546 = vsel %vm3535, %v3506, 0.0
        %v3547 = vsel %vm3536, %v3507, 0.0
        %v3548 = vsel %vm3536, %v3508, 0.0
        %v3549 = vsel %vm3537, %v3509, 0.0
        %v3550 = vsel %vm3537, %v3510, 0.0
        %v3551 = vsel %vm3538, %v3511, 0.0
        %v3552 = vsel %vm3538, %v3512, 0.0
        %v3553 = vsel %vm3539, %v3513, 0.0
        %v3554 = vsel %vm3539, %v3514, 0.0
        %v3555 = vsel %vm3540, %v3515, 0.0
        %v3556 = vsel %vm3540, %v3516, 0.0
        %v3557 = vsel %vm3541, %v3517, 0.0
        %v3558 = vsel %vm3541, %v3518, 0.0
        %v3559 = vsel %vm3542, %v3519, 0.0
        %v3560 = vsel %vm3542, %v3520, 0.0
        %v3561 = vsel %vm3543, %v3521, 0.0
        %v3562 = vsel %vm3543, %v3522, 0.0
        %v3563 = vsel %vm3544, %v3523, 0.0
        %v3564 = vsel %vm3544, %v3524, 0.0
        %3565 = vst [vmem:[#allocation4] sm:$0xff] 0.0
        %3566 = vst [vmem:[#allocation4 + $0x8] sm:$0xff] 0.0
        %3567 = vst [vmem:[#allocation4 + $0x10] sm:$0x3] 0.0
        %3568 = vst [vmem:[#allocation4 + $0x18] sm:$0xff] 0.0
        %3569 = vst [vmem:[#allocation4 + $0x20] sm:$0xff] 0.0
        %3570 = vst [vmem:[#allocation4 + $0x28] sm:$0x3] 0.0
        %3571 = vst [vmem:[#allocation4 + $0x30] sm:$0xff] 0.0
        %3572 = vst [vmem:[#allocation4 + $0x38] sm:$0xff] 0.0
        %3573 = vst [vmem:[#allocation4 + $0x40] sm:$0x3] 0.0
        %3574 = vst [vmem:[#allocation4 + $0x48] sm:$0xff] 0.0
        %3575 = vst [vmem:[#allocation4 + $0x50] sm:$0xff] 0.0
        %3576 = vst [vmem:[#allocation4 + $0x58] sm:$0x3] 0.0
        %3577 = vst [vmem:[#allocation4 + $0x60] sm:$0xff] 0.0
        %3578 = vst [vmem:[#allocation4 + $0x68] sm:$0xff] 0.0
        %3579 = vst [vmem:[#allocation4 + $0x70] sm:$0x3] 0.0
        %3580 = vst [vmem:[#allocation4 + $0x78] sm:$0xff] 0.0
        %3581 = vst [vmem:[#allocation4 + $0x80] sm:$0xff] 0.0
        %3582 = vst [vmem:[#allocation4 + $0x88] sm:$0x3] 0.0
        %3583 = vst [vmem:[#allocation4 + $0x90] sm:$0xff] 0.0
        %3584 = vst [vmem:[#allocation4 + $0x98] sm:$0xff] 0.0
        %3585 = vst [vmem:[#allocation4 + $0xa0] sm:$0x3] 0.0
        %3586 = vst [vmem:[#allocation4 + $0xa8] sm:$0xff] 0.0
        %3587 = vst [vmem:[#allocation4 + $0xb0] sm:$0xff] 0.0
        %3588 = vst [vmem:[#allocation4 + $0xb8] sm:$0x3] 0.0
        %3589 = vst [vmem:[#allocation4 + $0xc0] sm:$0xff] 0.0
        %3590 = vst [vmem:[#allocation4 + $0xc8] sm:$0xff] 0.0
        %3591 = vst [vmem:[#allocation4 + $0xd0] sm:$0x3] 0.0
        %3592 = vst [vmem:[#allocation4 + $0xd8] sm:$0xff] 0.0
        %3593 = vst [vmem:[#allocation4 + $0xe0] sm:$0xff] 0.0
        %3594 = vst [vmem:[#allocation4 + $0xe8] sm:$0x3] 0.0
        %3595 = vst [vmem:[#allocation4 + $0x1] sm:$0xff] %v3545
        %3596 = vst [vmem:[#allocation4 + $0x9] sm:$0xff] %v3546
        %3597 = vst [vmem:[#allocation4 + $0x19] sm:$0xff] %v3547
        %3598 = vst [vmem:[#allocation4 + $0x21] sm:$0xff] %v3548
        %3599 = vst [vmem:[#allocation4 + $0x31] sm:$0xff] %v3549
        %3600 = vst [vmem:[#allocation4 + $0x39] sm:$0xff] %v3550
        %3601 = vst [vmem:[#allocation4 + $0x49] sm:$0xff] %v3551
        %3602 = vst [vmem:[#allocation4 + $0x51] sm:$0xff] %v3552
        %3603 = vst [vmem:[#allocation4 + $0x61] sm:$0xff] %v3553
        %3604 = vst [vmem:[#allocation4 + $0x69] sm:$0xff] %v3554
        %3605 = vst [vmem:[#allocation4 + $0x79] sm:$0xff] %v3555
        %3606 = vst [vmem:[#allocation4 + $0x81] sm:$0xff] %v3556
        %3607 = vst [vmem:[#allocation4 + $0x91] sm:$0xff] %v3557
        %3608 = vst [vmem:[#allocation4 + $0x99] sm:$0xff] %v3558
        %3609 = vst [vmem:[#allocation4 + $0xa9] sm:$0xff] %v3559
        %3610 = vst [vmem:[#allocation4 + $0xb1] sm:$0xff] %v3560
        %3611 = vst [vmem:[#allocation4 + $0xc1] sm:$0xff] %v3561
        %3612 = vst [vmem:[#allocation4 + $0xc9] sm:$0xff] %v3562
        %3613 = vst [vmem:[#allocation4 + $0xd9] sm:$0xff] %v3563
        %3614 = vst [vmem:[#allocation4 + $0xe1] sm:$0xff] %v3564
        %v3615 = vld [vmem:[#allocation4] sm:$0xff]
        %v3616 = vld [vmem:[#allocation4 + $0x8] sm:$0xff]
        %v3617 = vld [vmem:[#allocation4 + $0x10] sm:$0x3]
        %v3618 = vld [vmem:[#allocation4 + $0x18] sm:$0xff]
        %v3619 = vld [vmem:[#allocation4 + $0x20] sm:$0xff]
        %v3620 = vld [vmem:[#allocation4 + $0x28] sm:$0x3]
        %v3621 = vld [vmem:[#allocation4 + $0x30] sm:$0xff]
        %v3622 = vld [vmem:[#allocation4 + $0x38] sm:$0xff]
        %v3623 = vld [vmem:[#allocation4 + $0x40] sm:$0x3]
        %v3624 = vld [vmem:[#allocation4 + $0x48] sm:$0xff]
        %v3625 = vld [vmem:[#allocation4 + $0x50] sm:$0xff]
        %v3626 = vld [vmem:[#allocation4 + $0x58] sm:$0x3]
        %v3627 = vld [vmem:[#allocation4 + $0x60] sm:$0xff]
        %v3628 = vld [vmem:[#allocation4 + $0x68] sm:$0xff]
        %v3629 = vld [vmem:[#allocation4 + $0x70] sm:$0x3]
        %v3630 = vld [vmem:[#allocation4 + $0x78] sm:$0xff]
        %v3631 = vld [vmem:[#allocation4 + $0x80] sm:$0xff]
        %v3632 = vld [vmem:[#allocation4 + $0x88] sm:$0x3]
        %v3633 = vld [vmem:[#allocation4 + $0x90] sm:$0xff]
        %v3634 = vld [vmem:[#allocation4 + $0x98] sm:$0xff]
        %v3635 = vld [vmem:[#allocation4 + $0xa0] sm:$0x3]
        %v3636 = vld [vmem:[#allocation4 + $0xa8] sm:$0xff]
        %v3637 = vld [vmem:[#allocation4 + $0xb0] sm:$0xff]
        %v3638 = vld [vmem:[#allocation4 + $0xb8] sm:$0x3]
        %v3639 = vld [vmem:[#allocation4 + $0xc0] sm:$0xff]
        %v3640 = vld [vmem:[#allocation4 + $0xc8] sm:$0xff]
        %v3641 = vld [vmem:[#allocation4 + $0xd0] sm:$0x3]
        %v3642 = vld [vmem:[#allocation4 + $0xd8] sm:$0xff]
        %v3643 = vld [vmem:[#allocation4 + $0xe0] sm:$0xff]
        %v3644 = vld [vmem:[#allocation4 + $0xe8] sm:$0x3]
        %v3645 = vld [vmem:[#allocation14] sm:$0xff]
        %v3646 = vld [vmem:[#allocation14 + $0x8] sm:$0x1]
        %v3647 = vperm.slane %v3645, 0
        %v3648 = vmul.f32 %v3615, %v3647
        %v3649 = vmul.f32 %v3616, %v3647
        %v3650 = vmul.f32 %v3618, %v3647
        %v3651 = vmul.f32 %v3619, %v3647
        %v3652 = vmul.f32 %v3621, %v3647
        %v3653 = vmul.f32 %v3622, %v3647
        %v3654 = vmul.f32 %v3624, %v3647
        %v3655 = vmul.f32 %v3625, %v3647
        %v3656 = vmul.f32 %v3627, %v3647
        %v3657 = vmul.f32 %v3628, %v3647
        %v3658 = vmul.f32 %v3630, %v3647
        %v3659 = vmul.f32 %v3631, %v3647
        %v3660 = vmul.f32 %v3633, %v3647
        %v3661 = vmul.f32 %v3634, %v3647
        %v3662 = vmul.f32 %v3636, %v3647
        %v3663 = vmul.f32 %v3637, %v3647
        %v3664 = vadd.f32 %v3648, 0.0
        %v3665 = vadd.f32 %v3649, 0.0
        %v3666 = vadd.f32 %v3650, 0.0
        %v3667 = vadd.f32 %v3651, 0.0
        %v3668 = vadd.f32 %v3652, 0.0
        %v3669 = vadd.f32 %v3653, 0.0
        %v3670 = vadd.f32 %v3654, 0.0
        %v3671 = vadd.f32 %v3655, 0.0
        %v3672 = vadd.f32 %v3656, 0.0
        %v3673 = vadd.f32 %v3657, 0.0
        %v3674 = vadd.f32 %v3658, 0.0
        %v3675 = vadd.f32 %v3659, 0.0
        %v3676 = vadd.f32 %v3660, 0.0
        %v3677 = vadd.f32 %v3661, 0.0
        %v3678 = vadd.f32 %v3662, 0.0
        %v3679 = vadd.f32 %v3663, 0.0
        %v3680 = vperm.slane %v3645, 3
        %v3681 = vmul.f32 %v3618, %v3680
        %v3682 = vmul.f32 %v3619, %v3680
        %v3683 = vmul.f32 %v3621, %v3680
        %v3684 = vmul.f32 %v3622, %v3680
        %v3685 = vmul.f32 %v3624, %v3680
        %v3686 = vmul.f32 %v3625, %v3680
        %v3687 = vmul.f32 %v3627, %v3680
        %v3688 = vmul.f32 %v3628, %v3680
        %v3689 = vmul.f32 %v3630, %v3680
        %v3690 = vmul.f32 %v3631, %v3680
        %v3691 = vmul.f32 %v3633, %v3680
        %v3692 = vmul.f32 %v3634, %v3680
        %v3693 = vmul.f32 %v3636, %v3680
        %v3694 = vmul.f32 %v3637, %v3680
        %v3695 = vmul.f32 %v3639, %v3680
        %v3696 = vmul.f32 %v3640, %v3680
        %v3697 = vadd.f32 %v3664, %v3681
        %v3698 = vadd.f32 %v3665, %v3682
        %v3699 = vadd.f32 %v3666, %v3683
        %v3700 = vadd.f32 %v3667, %v3684
        %v3701 = vadd.f32 %v3668, %v3685
        %v3702 = vadd.f32 %v3669, %v3686
        %v3703 = vadd.f32 %v3670, %v3687
        %v3704 = vadd.f32 %v3671, %v3688
        %v3705 = vadd.f32 %v3672, %v3689
        %v3706 = vadd.f32 %v3673, %v3690
        %v3707 = vadd.f32 %v3674, %v3691
        %v3708 = vadd.f32 %v3675, %v3692
        %v3709 = vadd.f32 %v3676, %v3693
        %v3710 = vadd.f32 %v3677, %v3694
        %v3711 = vadd.f32 %v3678, %v3695
        %v3712 = vadd.f32 %v3679, %v3696
        %v3713 = vperm.slane %v3645, 6
        %v3714 = vmul.f32 %v3621, %v3713
        %v3715 = vmul.f32 %v3622, %v3713
        %v3716 = vmul.f32 %v3624, %v3713
        %v3717 = vmul.f32 %v3625, %v3713
        %v3718 = vmul.f32 %v3627, %v3713
        %v3719 = vmul.f32 %v3628, %v3713
        %v3720 = vmul.f32 %v3630, %v3713
        %v3721 = vmul.f32 %v3631, %v3713
        %v3722 = vmul.f32 %v3633, %v3713
        %v3723 = vmul.f32 %v3634, %v3713
        %v3724 = vmul.f32 %v3636, %v3713
        %v3725 = vmul.f32 %v3637, %v3713
        %v3726 = vmul.f32 %v3639, %v3713
        %v3727 = vmul.f32 %v3640, %v3713
        %v3728 = vmul.f32 %v3642, %v3713
        %v3729 = vmul.f32 %v3643, %v3713
        %v3730 = vadd.f32 %v3697, %v3714
        %v3731 = vadd.f32 %v3698, %v3715
        %v3732 = vadd.f32 %v3699, %v3716
        %v3733 = vadd.f32 %v3700, %v3717
        %v3734 = vadd.f32 %v3701, %v3718
        %v3735 = vadd.f32 %v3702, %v3719
        %v3736 = vadd.f32 %v3703, %v3720
        %v3737 = vadd.f32 %v3704, %v3721
        %v3738 = vadd.f32 %v3705, %v3722
        %v3739 = vadd.f32 %v3706, %v3723
        %v3740 = vadd.f32 %v3707, %v3724
        %v3741 = vadd.f32 %v3708, %v3725
        %v3742 = vadd.f32 %v3709, %v3726
        %v3743 = vadd.f32 %v3710, %v3727
        %v3744 = vadd.f32 %v3711, %v3728
        %v3745 = vadd.f32 %v3712, %v3729
        %v3746 = vperm.slane %v3645, 1
        %v3747 = vmul.f32 %v3615, %v3746
        %v3748 = vmul.f32 %v3616, %v3746
        %v3749 = vmul.f32 %v3617, %v3746
        %v3750 = vmul.f32 %v3618, %v3746
        %v3751 = vmul.f32 %v3619, %v3746
        %v3752 = vmul.f32 %v3620, %v3746
        %v3753 = vmul.f32 %v3621, %v3746
        %v3754 = vmul.f32 %v3622, %v3746
        %v3755 = vmul.f32 %v3623, %v3746
        %v3756 = vmul.f32 %v3624, %v3746
        %v3757 = vmul.f32 %v3625, %v3746
        %v3758 = vmul.f32 %v3626, %v3746
        %v3759 = vmul.f32 %v3627, %v3746
        %v3760 = vmul.f32 %v3628, %v3746
        %v3761 = vmul.f32 %v3629, %v3746
        %v3762 = vmul.f32 %v3630, %v3746
        %v3763 = vmul.f32 %v3631, %v3746
        %v3764 = vmul.f32 %v3632, %v3746
        %v3765 = vmul.f32 %v3633, %v3746
        %v3766 = vmul.f32 %v3634, %v3746
        %v3767 = vmul.f32 %v3635, %v3746
        %v3768 = vmul.f32 %v3636, %v3746
        %v3769 = vmul.f32 %v3637, %v3746
        %v3770 = vmul.f32 %v3638, %v3746
        %v3795 = vrot.slane %v3747, 1
        %v3796 = vrot.slane %v3748, 1
        %v3797 = vsel %vm995, %v3795, %v3796
        %v3798 = vrot.slane %v3749, 1
        %v3799 = vsel %vm995, %v3796, %v3798
        %v3800 = vrot.slane %v3750, 1
        %v3801 = vrot.slane %v3751, 1
        %v3802 = vsel %vm995, %v3800, %v3801
        %v3803 = vrot.slane %v3752, 1
        %v3804 = vsel %vm995, %v3801, %v3803
        %v3805 = vrot.slane %v3753, 1
        %v3806 = vrot.slane %v3754, 1
        %v3807 = vsel %vm995, %v3805, %v3806
        %v3808 = vrot.slane %v3755, 1
        %v3809 = vsel %vm995, %v3806, %v3808
        %v3810 = vrot.slane %v3756, 1
        %v3811 = vrot.slane %v3757, 1
        %v3812 = vsel %vm995, %v3810, %v3811
        %v3813 = vrot.slane %v3758, 1
        %v3814 = vsel %vm995, %v3811, %v3813
        %v3815 = vrot.slane %v3759, 1
        %v3816 = vrot.slane %v3760, 1
        %v3817 = vsel %vm995, %v3815, %v3816
        %v3818 = vrot.slane %v3761, 1
        %v3819 = vsel %vm995, %v3816, %v3818
        %v3820 = vrot.slane %v3762, 1
        %v3821 = vrot.slane %v3763, 1
        %v3822 = vsel %vm995, %v3820, %v3821
        %v3823 = vrot.slane %v3764, 1
        %v3824 = vsel %vm995, %v3821, %v3823
        %v3825 = vrot.slane %v3765, 1
        %v3826 = vrot.slane %v3766, 1
        %v3827 = vsel %vm995, %v3825, %v3826
        %v3828 = vrot.slane %v3767, 1
        %v3829 = vsel %vm995, %v3826, %v3828
        %v3830 = vrot.slane %v3768, 1
        %v3831 = vrot.slane %v3769, 1
        %v3832 = vsel %vm995, %v3830, %v3831
        %v3833 = vrot.slane %v3770, 1
        %v3834 = vsel %vm995, %v3831, %v3833
        %v3851 = vadd.f32 %v3730, %v3797
        %v3852 = vadd.f32 %v3731, %v3799
        %v3853 = vadd.f32 %v3732, %v3802
        %v3854 = vadd.f32 %v3733, %v3804
        %v3855 = vadd.f32 %v3734, %v3807
        %v3856 = vadd.f32 %v3735, %v3809
        %v3857 = vadd.f32 %v3736, %v3812
        %v3858 = vadd.f32 %v3737, %v3814
        %v3859 = vadd.f32 %v3738, %v3817
        %v3860 = vadd.f32 %v3739, %v3819
        %v3861 = vadd.f32 %v3740, %v3822
        %v3862 = vadd.f32 %v3741, %v3824
        %v3863 = vadd.f32 %v3742, %v3827
        %v3864 = vadd.f32 %v3743, %v3829
        %v3865 = vadd.f32 %v3744, %v3832
        %v3866 = vadd.f32 %v3745, %v3834
        %v3867 = vperm.slane %v3645, 4
        %v3868 = vmul.f32 %v3618, %v3867
        %v3869 = vmul.f32 %v3619, %v3867
        %v3870 = vmul.f32 %v3620, %v3867
        %v3871 = vmul.f32 %v3621, %v3867
        %v3872 = vmul.f32 %v3622, %v3867
        %v3873 = vmul.f32 %v3623, %v3867
        %v3874 = vmul.f32 %v3624, %v3867
        %v3875 = vmul.f32 %v3625, %v3867
        %v3876 = vmul.f32 %v3626, %v3867
        %v3877 = vmul.f32 %v3627, %v3867
        %v3878 = vmul.f32 %v3628, %v3867
        %v3879 = vmul.f32 %v3629, %v3867
        %v3880 = vmul.f32 %v3630, %v3867
        %v3881 = vmul.f32 %v3631, %v3867
        %v3882 = vmul.f32 %v3632, %v3867
        %v3883 = vmul.f32 %v3633, %v3867
        %v3884 = vmul.f32 %v3634, %v3867
        %v3885 = vmul.f32 %v3635, %v3867
        %v3886 = vmul.f32 %v3636, %v3867
        %v3887 = vmul.f32 %v3637, %v3867
        %v3888 = vmul.f32 %v3638, %v3867
        %v3889 = vmul.f32 %v3639, %v3867
        %v3890 = vmul.f32 %v3640, %v3867
        %v3891 = vmul.f32 %v3641, %v3867
        %v3916 = vrot.slane %v3868, 1
        %v3917 = vrot.slane %v3869, 1
        %v3918 = vsel %vm995, %v3916, %v3917
        %v3919 = vrot.slane %v3870, 1
        %v3920 = vsel %vm995, %v3917, %v3919
        %v3921 = vrot.slane %v3871, 1
        %v3922 = vrot.slane %v3872, 1
        %v3923 = vsel %vm995, %v3921, %v3922
        %v3924 = vrot.slane %v3873, 1
        %v3925 = vsel %vm995, %v3922, %v3924
        %v3926 = vrot.slane %v3874, 1
        %v3927 = vrot.slane %v3875, 1
        %v3928 = vsel %vm995, %v3926, %v3927
        %v3929 = vrot.slane %v3876, 1
        %v3930 = vsel %vm995, %v3927, %v3929
        %v3931 = vrot.slane %v3877, 1
        %v3932 = vrot.slane %v3878, 1
        %v3933 = vsel %vm995, %v3931, %v3932
        %v3934 = vrot.slane %v3879, 1
        %v3935 = vsel %vm995, %v3932, %v3934
        %v3936 = vrot.slane %v3880, 1
        %v3937 = vrot.slane %v3881, 1
        %v3938 = vsel %vm995, %v3936, %v3937
        %v3939 = vrot.slane %v3882, 1
        %v3940 = vsel %vm995, %v3937, %v3939
        %v3941 = vrot.slane %v3883, 1
        %v3942 = vrot.slane %v3884, 1
        %v3943 = vsel %vm995, %v3941, %v3942
        %v3944 = vrot.slane %v3885, 1
        %v3945 = vsel %vm995, %v3942, %v3944
        %v3946 = vrot.slane %v3886, 1
        %v3947 = vrot.slane %v3887, 1
        %v3948 = vsel %vm995, %v3946, %v3947
        %v3949 = vrot.slane %v3888, 1
        %v3950 = vsel %vm995, %v3947, %v3949
        %v3951 = vrot.slane %v3889, 1
        %v3952 = vrot.slane %v3890, 1
        %v3953 = vsel %vm995, %v3951, %v3952
        %v3954 = vrot.slane %v3891, 1
        %v3955 = vsel %vm995, %v3952, %v3954
        %v3972 = vadd.f32 %v3851, %v3918
        %v3973 = vadd.f32 %v3852, %v3920
        %v3974 = vadd.f32 %v3853, %v3923
        %v3975 = vadd.f32 %v3854, %v3925
        %v3976 = vadd.f32 %v3855, %v3928
        %v3977 = vadd.f32 %v3856, %v3930
        %v3978 = vadd.f32 %v3857, %v3933
        %v3979 = vadd.f32 %v3858, %v3935
        %v3980 = vadd.f32 %v3859, %v3938
        %v3981 = vadd.f32 %v3860, %v3940
        %v3982 = vadd.f32 %v3861, %v3943
        %v3983 = vadd.f32 %v3862, %v3945
        %v3984 = vadd.f32 %v3863, %v3948
        %v3985 = vadd.f32 %v3864, %v3950
        %v3986 = vadd.f32 %v3865, %v3953
        %v3987 = vadd.f32 %v3866, %v3955
        %v3988 = vperm.slane %v3645, 7
        %v3989 = vmul.f32 %v3621, %v3988
        %v3990 = vmul.f32 %v3622, %v3988
        %v3991 = vmul.f32 %v3623, %v3988
        %v3992 = vmul.f32 %v3624, %v3988
        %v3993 = vmul.f32 %v3625, %v3988
        %v3994 = vmul.f32 %v3626, %v3988
        %v3995 = vmul.f32 %v3627, %v3988
        %v3996 = vmul.f32 %v3628, %v3988
        %v3997 = vmul.f32 %v3629, %v3988
        %v3998 = vmul.f32 %v3630, %v3988
        %v3999 = vmul.f32 %v3631, %v3988
        %v4000 = vmul.f32 %v3632, %v3988
        %v4001 = vmul.f32 %v3633, %v3988
        %v4002 = vmul.f32 %v3634, %v3988
        %v4003 = vmul.f32 %v3635, %v3988
        %v4004 = vmul.f32 %v3636, %v3988
        %v4005 = vmul.f32 %v3637, %v3988
        %v4006 = vmul.f32 %v3638, %v3988
        %v4007 = vmul.f32 %v3639, %v3988
        %v4008 = vmul.f32 %v3640, %v3988
        %v4009 = vmul.f32 %v3641, %v3988
        %v4010 = vmul.f32 %v3642, %v3988
        %v4011 = vmul.f32 %v3643, %v3988
        %v4012 = vmul.f32 %v3644, %v3988
        %v4037 = vrot.slane %v3989, 1
        %v4038 = vrot.slane %v3990, 1
        %v4039 = vsel %vm995, %v4037, %v4038
        %v4040 = vrot.slane %v3991, 1
        %v4041 = vsel %vm995, %v4038, %v4040
        %v4042 = vrot.slane %v3992, 1
        %v4043 = vrot.slane %v3993, 1
        %v4044 = vsel %vm995, %v4042, %v4043
        %v4045 = vrot.slane %v3994, 1
        %v4046 = vsel %vm995, %v4043, %v4045
        %v4047 = vrot.slane %v3995, 1
        %v4048 = vrot.slane %v3996, 1
        %v4049 = vsel %vm995, %v4047, %v4048
        %v4050 = vrot.slane %v3997, 1
        %v4051 = vsel %vm995, %v4048, %v4050
        %v4052 = vrot.slane %v3998, 1
        %v4053 = vrot.slane %v3999, 1
        %v4054 = vsel %vm995, %v4052, %v4053
        %v4055 = vrot.slane %v4000, 1
        %v4056 = vsel %vm995, %v4053, %v4055
        %v4057 = vrot.slane %v4001, 1
        %v4058 = vrot.slane %v4002, 1
        %v4059 = vsel %vm995, %v4057, %v4058
        %v4060 = vrot.slane %v4003, 1
        %v4061 = vsel %vm995, %v4058, %v4060
        %v4062 = vrot.slane %v4004, 1
        %v4063 = vrot.slane %v4005, 1
        %v4064 = vsel %vm995, %v4062, %v4063
        %v4065 = vrot.slane %v4006, 1
        %v4066 = vsel %vm995, %v4063, %v4065
        %v4067 = vrot.slane %v4007, 1
        %v4068 = vrot.slane %v4008, 1
        %v4069 = vsel %vm995, %v4067, %v4068
        %v4070 = vrot.slane %v4009, 1
        %v4071 = vsel %vm995, %v4068, %v4070
        %v4072 = vrot.slane %v4010, 1
        %v4073 = vrot.slane %v4011, 1
        %v4074 = vsel %vm995, %v4072, %v4073
        %v4075 = vrot.slane %v4012, 1
        %v4076 = vsel %vm995, %v4073, %v4075
        %v4093 = vadd.f32 %v3972, %v4039
        %v4094 = vadd.f32 %v3973, %v4041
        %v4095 = vadd.f32 %v3974, %v4044
        %v4096 = vadd.f32 %v3975, %v4046
        %v4097 = vadd.f32 %v3976, %v4049
        %v4098 = vadd.f32 %v3977, %v4051
        %v4099 = vadd.f32 %v3978, %v4054
        %v4100 = vadd.f32 %v3979, %v4056
        %v4101 = vadd.f32 %v3980, %v4059
        %v4102 = vadd.f32 %v3981, %v4061
        %v4103 = vadd.f32 %v3982, %v4064
        %v4104 = vadd.f32 %v3983, %v4066
        %v4105 = vadd.f32 %v3984, %v4069
        %v4106 = vadd.f32 %v3985, %v4071
        %v4107 = vadd.f32 %v3986, %v4074
        %v4108 = vadd.f32 %v3987, %v4076
        %v4109 = vperm.slane %v3645, 2
        %v4110 = vmul.f32 %v3615, %v4109
        %v4111 = vmul.f32 %v3616, %v4109
        %v4112 = vmul.f32 %v3617, %v4109
        %v4113 = vmul.f32 %v3618, %v4109
        %v4114 = vmul.f32 %v3619, %v4109
        %v4115 = vmul.f32 %v3620, %v4109
        %v4116 = vmul.f32 %v3621, %v4109
        %v4117 = vmul.f32 %v3622, %v4109
        %v4118 = vmul.f32 %v3623, %v4109
        %v4119 = vmul.f32 %v3624, %v4109
        %v4120 = vmul.f32 %v3625, %v4109
        %v4121 = vmul.f32 %v3626, %v4109
        %v4122 = vmul.f32 %v3627, %v4109
        %v4123 = vmul.f32 %v3628, %v4109
        %v4124 = vmul.f32 %v3629, %v4109
        %v4125 = vmul.f32 %v3630, %v4109
        %v4126 = vmul.f32 %v3631, %v4109
        %v4127 = vmul.f32 %v3632, %v4109
        %v4128 = vmul.f32 %v3633, %v4109
        %v4129 = vmul.f32 %v3634, %v4109
        %v4130 = vmul.f32 %v3635, %v4109
        %v4131 = vmul.f32 %v3636, %v4109
        %v4132 = vmul.f32 %v3637, %v4109
        %v4133 = vmul.f32 %v3638, %v4109
        %v4158 = vrot.slane %v4110, 2
        %v4159 = vrot.slane %v4111, 2
        %v4160 = vsel %vm1539, %v4158, %v4159
        %v4161 = vrot.slane %v4112, 2
        %v4162 = vsel %vm1539, %v4159, %v4161
        %v4163 = vrot.slane %v4113, 2
        %v4164 = vrot.slane %v4114, 2
        %v4165 = vsel %vm1539, %v4163, %v4164
        %v4166 = vrot.slane %v4115, 2
        %v4167 = vsel %vm1539, %v4164, %v4166
        %v4168 = vrot.slane %v4116, 2
        %v4169 = vrot.slane %v4117, 2
        %v4170 = vsel %vm1539, %v4168, %v4169
        %v4171 = vrot.slane %v4118, 2
        %v4172 = vsel %vm1539, %v4169, %v4171
        %v4173 = vrot.slane %v4119, 2
        %v4174 = vrot.slane %v4120, 2
        %v4175 = vsel %vm1539, %v4173, %v4174
        %v4176 = vrot.slane %v4121, 2
        %v4177 = vsel %vm1539, %v4174, %v4176
        %v4178 = vrot.slane %v4122, 2
        %v4179 = vrot.slane %v4123, 2
        %v4180 = vsel %vm1539, %v4178, %v4179
        %v4181 = vrot.slane %v4124, 2
        %v4182 = vsel %vm1539, %v4179, %v4181
        %v4183 = vrot.slane %v4125, 2
        %v4184 = vrot.slane %v4126, 2
        %v4185 = vsel %vm1539, %v4183, %v4184
        %v4186 = vrot.slane %v4127, 2
        %v4187 = vsel %vm1539, %v4184, %v4186
        %v4188 = vrot.slane %v4128, 2
        %v4189 = vrot.slane %v4129, 2
        %v4190 = vsel %vm1539, %v4188, %v4189
        %v4191 = vrot.slane %v4130, 2
        %v4192 = vsel %vm1539, %v4189, %v4191
        %v4193 = vrot.slane %v4131, 2
        %v4194 = vrot.slane %v4132, 2
        %v4195 = vsel %vm1539, %v4193, %v4194
        %v4196 = vrot.slane %v4133, 2
        %v4197 = vsel %vm1539, %v4194, %v4196
        %v4214 = vadd.f32 %v4093, %v4160
        %v4215 = vadd.f32 %v4094, %v4162
        %v4216 = vadd.f32 %v4095, %v4165
        %v4217 = vadd.f32 %v4096, %v4167
        %v4218 = vadd.f32 %v4097, %v4170
        %v4219 = vadd.f32 %v4098, %v4172
        %v4220 = vadd.f32 %v4099, %v4175
        %v4221 = vadd.f32 %v4100, %v4177
        %v4222 = vadd.f32 %v4101, %v4180
        %v4223 = vadd.f32 %v4102, %v4182
        %v4224 = vadd.f32 %v4103, %v4185
        %v4225 = vadd.f32 %v4104, %v4187
        %v4226 = vadd.f32 %v4105, %v4190
        %v4227 = vadd.f32 %v4106, %v4192
        %v4228 = vadd.f32 %v4107, %v4195
        %v4229 = vadd.f32 %v4108, %v4197
        %v4230 = vperm.slane %v3645, 5
        %v4231 = vmul.f32 %v3618, %v4230
        %v4232 = vmul.f32 %v3619, %v4230
        %v4233 = vmul.f32 %v3620, %v4230
        %v4234 = vmul.f32 %v3621, %v4230
        %v4235 = vmul.f32 %v3622, %v4230
        %v4236 = vmul.f32 %v3623, %v4230
        %v4237 = vmul.f32 %v3624, %v4230
        %v4238 = vmul.f32 %v3625, %v4230
        %v4239 = vmul.f32 %v3626, %v4230
        %v4240 = vmul.f32 %v3627, %v4230
        %v4241 = vmul.f32 %v3628, %v4230
        %v4242 = vmul.f32 %v3629, %v4230
        %v4243 = vmul.f32 %v3630, %v4230
        %v4244 = vmul.f32 %v3631, %v4230
        %v4245 = vmul.f32 %v3632, %v4230
        %v4246 = vmul.f32 %v3633, %v4230
        %v4247 = vmul.f32 %v3634, %v4230
        %v4248 = vmul.f32 %v3635, %v4230
        %v4249 = vmul.f32 %v3636, %v4230
        %v4250 = vmul.f32 %v3637, %v4230
        %v4251 = vmul.f32 %v3638, %v4230
        %v4252 = vmul.f32 %v3639, %v4230
        %v4253 = vmul.f32 %v3640, %v4230
        %v4254 = vmul.f32 %v3641, %v4230
        %v4279 = vrot.slane %v4231, 2
        %v4280 = vrot.slane %v4232, 2
        %v4281 = vsel %vm1539, %v4279, %v4280
        %v4282 = vrot.slane %v4233, 2
        %v4283 = vsel %vm1539, %v4280, %v4282
        %v4284 = vrot.slane %v4234, 2
        %v4285 = vrot.slane %v4235, 2
        %v4286 = vsel %vm1539, %v4284, %v4285
        %v4287 = vrot.slane %v4236, 2
        %v4288 = vsel %vm1539, %v4285, %v4287
        %v4289 = vrot.slane %v4237, 2
        %v4290 = vrot.slane %v4238, 2
        %v4291 = vsel %vm1539, %v4289, %v4290
        %v4292 = vrot.slane %v4239, 2
        %v4293 = vsel %vm1539, %v4290, %v4292
        %v4294 = vrot.slane %v4240, 2
        %v4295 = vrot.slane %v4241, 2
        %v4296 = vsel %vm1539, %v4294, %v4295
        %v4297 = vrot.slane %v4242, 2
        %v4298 = vsel %vm1539, %v4295, %v4297
        %v4299 = vrot.slane %v4243, 2
        %v4300 = vrot.slane %v4244, 2
        %v4301 = vsel %vm1539, %v4299, %v4300
        %v4302 = vrot.slane %v4245, 2
        %v4303 = vsel %vm1539, %v4300, %v4302
        %v4304 = vrot.slane %v4246, 2
        %v4305 = vrot.slane %v4247, 2
        %v4306 = vsel %vm1539, %v4304, %v4305
        %v4307 = vrot.slane %v4248, 2
        %v4308 = vsel %vm1539, %v4305, %v4307
        %v4309 = vrot.slane %v4249, 2
        %v4310 = vrot.slane %v4250, 2
        %v4311 = vsel %vm1539, %v4309, %v4310
        %v4312 = vrot.slane %v4251, 2
        %v4313 = vsel %vm1539, %v4310, %v4312
        %v4314 = vrot.slane %v4252, 2
        %v4315 = vrot.slane %v4253, 2
        %v4316 = vsel %vm1539, %v4314, %v4315
        %v4317 = vrot.slane %v4254, 2
        %v4318 = vsel %vm1539, %v4315, %v4317
        %v4335 = vadd.f32 %v4214, %v4281
        %v4336 = vadd.f32 %v4215, %v4283
        %v4337 = vadd.f32 %v4216, %v4286
        %v4338 = vadd.f32 %v4217, %v4288
        %v4339 = vadd.f32 %v4218, %v4291
        %v4340 = vadd.f32 %v4219, %v4293
        %v4341 = vadd.f32 %v4220, %v4296
        %v4342 = vadd.f32 %v4221, %v4298
        %v4343 = vadd.f32 %v4222, %v4301
        %v4344 = vadd.f32 %v4223, %v4303
        %v4345 = vadd.f32 %v4224, %v4306
        %v4346 = vadd.f32 %v4225, %v4308
        %v4347 = vadd.f32 %v4226, %v4311
        %v4348 = vadd.f32 %v4227, %v4313
        %v4349 = vadd.f32 %v4228, %v4316
        %v4350 = vadd.f32 %v4229, %v4318
        %v4351 = vperm.slane %v3646, 0
        %v4352 = vmul.f32 %v3621, %v4351
        %v4353 = vmul.f32 %v3622, %v4351
        %v4354 = vmul.f32 %v3623, %v4351
        %v4355 = vmul.f32 %v3624, %v4351
        %v4356 = vmul.f32 %v3625, %v4351
        %v4357 = vmul.f32 %v3626, %v4351
        %v4358 = vmul.f32 %v3627, %v4351
        %v4359 = vmul.f32 %v3628, %v4351
        %v4360 = vmul.f32 %v3629, %v4351
        %v4361 = vmul.f32 %v3630, %v4351
        %v4362 = vmul.f32 %v3631, %v4351
        %v4363 = vmul.f32 %v3632, %v4351
        %v4364 = vmul.f32 %v3633, %v4351
        %v4365 = vmul.f32 %v3634, %v4351
        %v4366 = vmul.f32 %v3635, %v4351
        %v4367 = vmul.f32 %v3636, %v4351
        %v4368 = vmul.f32 %v3637, %v4351
        %v4369 = vmul.f32 %v3638, %v4351
        %v4370 = vmul.f32 %v3639, %v4351
        %v4371 = vmul.f32 %v3640, %v4351
        %v4372 = vmul.f32 %v3641, %v4351
        %v4373 = vmul.f32 %v3642, %v4351
        %v4374 = vmul.f32 %v3643, %v4351
        %v4375 = vmul.f32 %v3644, %v4351
        %v4400 = vrot.slane %v4352, 2
        %v4401 = vrot.slane %v4353, 2
        %v4402 = vsel %vm1539, %v4400, %v4401
        %v4403 = vrot.slane %v4354, 2
        %v4404 = vsel %vm1539, %v4401, %v4403
        %v4405 = vrot.slane %v4355, 2
        %v4406 = vrot.slane %v4356, 2
        %v4407 = vsel %vm1539, %v4405, %v4406
        %v4408 = vrot.slane %v4357, 2
        %v4409 = vsel %vm1539, %v4406, %v4408
        %v4410 = vrot.slane %v4358, 2
        %v4411 = vrot.slane %v4359, 2
        %v4412 = vsel %vm1539, %v4410, %v4411
        %v4413 = vrot.slane %v4360, 2
        %v4414 = vsel %vm1539, %v4411, %v4413
        %v4415 = vrot.slane %v4361, 2
        %v4416 = vrot.slane %v4362, 2
        %v4417 = vsel %vm1539, %v4415, %v4416
        %v4418 = vrot.slane %v4363, 2
        %v4419 = vsel %vm1539, %v4416, %v4418
        %v4420 = vrot.slane %v4364, 2
        %v4421 = vrot.slane %v4365, 2
        %v4422 = vsel %vm1539, %v4420, %v4421
        %v4423 = vrot.slane %v4366, 2
        %v4424 = vsel %vm1539, %v4421, %v4423
        %v4425 = vrot.slane %v4367, 2
        %v4426 = vrot.slane %v4368, 2
        %v4427 = vsel %vm1539, %v4425, %v4426
        %v4428 = vrot.slane %v4369, 2
        %v4429 = vsel %vm1539, %v4426, %v4428
        %v4430 = vrot.slane %v4370, 2
        %v4431 = vrot.slane %v4371, 2
        %v4432 = vsel %vm1539, %v4430, %v4431
        %v4433 = vrot.slane %v4372, 2
        %v4434 = vsel %vm1539, %v4431, %v4433
        %v4435 = vrot.slane %v4373, 2
        %v4436 = vrot.slane %v4374, 2
        %v4437 = vsel %vm1539, %v4435, %v4436
        %v4438 = vrot.slane %v4375, 2
        %v4439 = vsel %vm1539, %v4436, %v4438
        %v4456 = vadd.f32 %v4335, %v4402
        %v4457 = vadd.f32 %v4336, %v4404
        %v4458 = vadd.f32 %v4337, %v4407
        %v4459 = vadd.f32 %v4338, %v4409
        %v4460 = vadd.f32 %v4339, %v4412
        %v4461 = vadd.f32 %v4340, %v4414
        %v4462 = vadd.f32 %v4341, %v4417
        %v4463 = vadd.f32 %v4342, %v4419
        %v4464 = vadd.f32 %v4343, %v4422
        %v4465 = vadd.f32 %v4344, %v4424
        %v4466 = vadd.f32 %v4345, %v4427
        %v4467 = vadd.f32 %v4346, %v4429
        %v4468 = vadd.f32 %v4347, %v4432
        %v4469 = vadd.f32 %v4348, %v4434
        %v4470 = vadd.f32 %v4349, %v4437
        %v4471 = vadd.f32 %v4350, %v4439
        %v4472 = vld [vmem:[#allocation16] sm:$0xff]
        %v4473 = vld [vmem:[#allocation16 + $0x8] sm:$0xff]
        %v4474 = vld [vmem:[#allocation16 + $0x10] sm:$0xff]
        %v4475 = vld [vmem:[#allocation16 + $0x18] sm:$0xff]
        %v4476 = vld [vmem:[#allocation16 + $0x20] sm:$0xff]
        %v4477 = vld [vmem:[#allocation16 + $0x28] sm:$0xff]
        %v4478 = vld [vmem:[#allocation16 + $0x30] sm:$0xff]
        %v4479 = vld [vmem:[#allocation16 + $0x38] sm:$0xff]
        %v4480 = vld [vmem:[#allocation16 + $0x40] sm:$0xff]
        %v4481 = vld [vmem:[#allocation16 + $0x48] sm:$0xff]
        %v4482 = vld [vmem:[#allocation16 + $0x50] sm:$0xff]
        %v4483 = vld [vmem:[#allocation16 + $0x58] sm:$0xff]
        %v4484 = vld [vmem:[#allocation16 + $0x60] sm:$0xff]
        %v4485 = vld [vmem:[#allocation16 + $0x68] sm:$0xff]
        %v4486 = vld [vmem:[#allocation16 + $0x70] sm:$0xff]
        %v4487 = vld [vmem:[#allocation16 + $0x78] sm:$0xff]
        %v4488 = vld [vmem:[%s9] sm:$0x1]
        %v4490 = vperm.slane %v4488, 0
        %4492 = vmatpush.msra.mxu0 %v4487
        %4493 = vmatpush.msra.mxu0 %v4486
        %4494 = vmatpush.msra.mxu0 %v4485
        %4495 = vmatpush.msra.mxu0 %v4484
        %4496 = vmatpush.msra.mxu0 %v4483
        %4497 = vmatpush.msra.mxu0 %v4482
        %4498 = vmatpush.msra.mxu0 %v4481
        %4499 = vmatpush.msra.mxu0 %v4480
        %4500 = vmatpush.msra.mxu0 %v4479
        %4501 = vmatpush.msra.mxu0 %v4478
        %4502 = vmatpush.msra.mxu0 %v4477
        %4503 = vmatpush.msra.mxu0 %v4476
        %4504 = vmatpush.msra.mxu0 %v4475
        %4505 = vmatpush.msra.mxu0 %v4474
        %4506 = vmatpush.msra.mxu0 %v4473
        %4507 = vmatpush.msra.mxu0 %v4472
        %4508 = vmatmul.f32.gmra.mxu0 %v4456
        %v4509 = vpop.f32.mrf.mxu0
        %v4510 = vadd.f32 %v4490, %v4509
        %4511 = vmatmul.f32.gmra.mxu0 %v4457
        %v4512 = vpop.f32.mrf.mxu0
        %v4513 = vadd.f32 %v4490, %v4512
        %4514 = vmatmul.f32.gmra.mxu0 %v4458
        %v4515 = vpop.f32.mrf.mxu0
        %v4516 = vadd.f32 %v4490, %v4515
        %4517 = vmatmul.f32.gmra.mxu0 %v4459
        %v4518 = vpop.f32.mrf.mxu0
        %v4519 = vadd.f32 %v4490, %v4518
        %4520 = vmatmul.f32.gmra.mxu0 %v4460
        %v4521 = vpop.f32.mrf.mxu0
        %v4522 = vadd.f32 %v4490, %v4521
        %4523 = vmatmul.f32.gmra.mxu0 %v4461
        %v4524 = vpop.f32.mrf.mxu0
        %v4525 = vadd.f32 %v4490, %v4524
        %4526 = vmatmul.f32.gmra.mxu0 %v4462
        %v4527 = vpop.f32.mrf.mxu0
        %v4528 = vadd.f32 %v4490, %v4527
        %4529 = vmatmul.f32.gmra.mxu0 %v4463
        %v4530 = vpop.f32.mrf.mxu0
        %v4531 = vadd.f32 %v4490, %v4530
        %4532 = vmatmul.f32.gmra.mxu0 %v4464
        %v4533 = vpop.f32.mrf.mxu0
        %v4534 = vadd.f32 %v4490, %v4533
        %4535 = vmatmul.f32.gmra.mxu0 %v4465
        %v4536 = vpop.f32.mrf.mxu0
        %v4537 = vadd.f32 %v4490, %v4536
        %4538 = vmatmul.f32.gmra.mxu0 %v4466
        %v4539 = vpop.f32.mrf.mxu0
        %v4540 = vadd.f32 %v4490, %v4539
        %4541 = vmatmul.f32.gmra.mxu0 %v4467
        %v4542 = vpop.f32.mrf.mxu0
        %v4543 = vadd.f32 %v4490, %v4542
        %4544 = vmatmul.f32.gmra.mxu0 %v4468
        %v4545 = vpop.f32.mrf.mxu0
        %v4546 = vadd.f32 %v4490, %v4545
        %4547 = vmatmul.f32.gmra.mxu0 %v4469
        %v4548 = vpop.f32.mrf.mxu0
        %v4549 = vadd.f32 %v4490, %v4548
        %4550 = vmatmul.f32.gmra.mxu0 %v4470
        %v4551 = vpop.f32.mrf.mxu0
        %v4552 = vadd.f32 %v4490, %v4551
        %4553 = vmatmul.f32.gmra.mxu0 %v4471
        %v4554 = vpop.f32.mrf.mxu0
        %v4555 = vadd.f32 %v4490, %v4554
        %4556 = vdwg.mxu0
        %s4557 = smul.u32 %s565, 16
        %s4558 = scalar_lea.vmem %s487, %s4557 [#allocation5]
        %v4559 = vld [vmem:[%s4558] sm:$0xff]
        %v4560 = vld [vmem:[%s4558 + $0x8] sm:$0xff]
        %v4561 = vld [vmem:[%s4558 + $0x10] sm:$0xff]
        %v4562 = vld [vmem:[%s4558 + $0x18] sm:$0xff]
        %v4563 = vld [vmem:[%s4558 + $0x20] sm:$0xff]
        %v4564 = vld [vmem:[%s4558 + $0x28] sm:$0xff]
        %v4565 = vld [vmem:[%s4558 + $0x30] sm:$0xff]
        %v4566 = vld [vmem:[%s4558 + $0x38] sm:$0xff]
        %v4567 = vld [vmem:[%s4558 + $0x40] sm:$0xff]
        %v4568 = vld [vmem:[%s4558 + $0x48] sm:$0xff]
        %v4569 = vld [vmem:[%s4558 + $0x50] sm:$0xff]
        %v4570 = vld [vmem:[%s4558 + $0x58] sm:$0xff]
        %v4571 = vld [vmem:[%s4558 + $0x60] sm:$0xff]
        %v4572 = vld [vmem:[%s4558 + $0x68] sm:$0xff]
        %v4573 = vld [vmem:[%s4558 + $0x70] sm:$0xff]
        %v4574 = vld [vmem:[%s4558 + $0x78] sm:$0xff]
        %v4575 = vld [vmem:[#allocation17] sm:$0xff]
        %v4576 = vld [vmem:[#allocation17 + $0x8] sm:$0xff]
        %v4577 = vld [vmem:[#allocation17 + $0x10] sm:$0xff]
        %v4578 = vld [vmem:[#allocation17 + $0x18] sm:$0xff]
        %v4579 = vld [vmem:[#allocation17 + $0x20] sm:$0xff]
        %v4580 = vld [vmem:[#allocation17 + $0x28] sm:$0xff]
        %v4581 = vld [vmem:[#allocation17 + $0x30] sm:$0xff]
        %v4582 = vld [vmem:[#allocation17 + $0x38] sm:$0xff]
        %v4583 = vld [vmem:[#allocation17 + $0x40] sm:$0xff]
        %v4584 = vld [vmem:[#allocation17 + $0x48] sm:$0xff]
        %v4585 = vld [vmem:[#allocation17 + $0x50] sm:$0xff]
        %v4586 = vld [vmem:[#allocation17 + $0x58] sm:$0xff]
        %v4587 = vld [vmem:[#allocation17 + $0x60] sm:$0xff]
        %v4588 = vld [vmem:[#allocation17 + $0x68] sm:$0xff]
        %v4589 = vld [vmem:[#allocation17 + $0x70] sm:$0xff]
        %v4590 = vld [vmem:[#allocation17 + $0x78] sm:$0xff]
        %v4591 = vld [vmem:[%s11] sm:$0x1]
        %v4593 = vperm.slane %v4591, 0
        %4595 = vmatpush.msra.mxu0 %v4590
        %4596 = vmatpush.msra.mxu0 %v4589
        %4597 = vmatpush.msra.mxu0 %v4588
        %4598 = vmatpush.msra.mxu0 %v4587
        %4599 = vmatpush.msra.mxu0 %v4586
        %4600 = vmatpush.msra.mxu0 %v4585
        %4601 = vmatpush.msra.mxu0 %v4584
        %4602 = vmatpush.msra.mxu0 %v4583
        %4603 = vmatpush.msra.mxu0 %v4582
        %4604 = vmatpush.msra.mxu0 %v4581
        %4605 = vmatpush.msra.mxu0 %v4580
        %4606 = vmatpush.msra.mxu0 %v4579
        %4607 = vmatpush.msra.mxu0 %v4578
        %4608 = vmatpush.msra.mxu0 %v4577
        %4609 = vmatpush.msra.mxu0 %v4576
        %4610 = vmatpush.msra.mxu0 %v4575
        %4611 = vmatmul.f32.gmra.mxu0 %v4559
        %v4612 = vpop.f32.mrf.mxu0
        %v4613 = vadd.f32 %v4593, %v4612
        %4614 = vmatmul.f32.gmra.mxu0 %v4560
        %v4615 = vpop.f32.mrf.mxu0
        %v4616 = vadd.f32 %v4593, %v4615
        %4617 = vmatmul.f32.gmra.mxu0 %v4561
        %v4618 = vpop.f32.mrf.mxu0
        %v4619 = vadd.f32 %v4593, %v4618
        %4620 = vmatmul.f32.gmra.mxu0 %v4562
        %v4621 = vpop.f32.mrf.mxu0
        %v4622 = vadd.f32 %v4593, %v4621
        %4623 = vmatmul.f32.gmra.mxu0 %v4563
        %v4624 = vpop.f32.mrf.mxu0
        %v4625 = vadd.f32 %v4593, %v4624
        %4626 = vmatmul.f32.gmra.mxu0 %v4564
        %v4627 = vpop.f32.mrf.mxu0
        %v4628 = vadd.f32 %v4593, %v4627
        %4629 = vmatmul.f32.gmra.mxu0 %v4565
        %v4630 = vpop.f32.mrf.mxu0
        %v4631 = vadd.f32 %v4593, %v4630
        %4632 = vmatmul.f32.gmra.mxu0 %v4566
        %v4633 = vpop.f32.mrf.mxu0
        %v4634 = vadd.f32 %v4593, %v4633
        %4635 = vmatmul.f32.gmra.mxu0 %v4567
        %v4636 = vpop.f32.mrf.mxu0
        %v4637 = vadd.f32 %v4593, %v4636
        %4638 = vmatmul.f32.gmra.mxu0 %v4568
        %v4639 = vpop.f32.mrf.mxu0
        %v4640 = vadd.f32 %v4593, %v4639
        %4641 = vmatmul.f32.gmra.mxu0 %v4569
        %v4642 = vpop.f32.mrf.mxu0
        %v4643 = vadd.f32 %v4593, %v4642
        %4644 = vmatmul.f32.gmra.mxu0 %v4570
        %v4645 = vpop.f32.mrf.mxu0
        %v4646 = vadd.f32 %v4593, %v4645
        %4647 = vmatmul.f32.gmra.mxu0 %v4571
        %v4648 = vpop.f32.mrf.mxu0
        %v4649 = vadd.f32 %v4593, %v4648
        %4650 = vmatmul.f32.gmra.mxu0 %v4572
        %v4651 = vpop.f32.mrf.mxu0
        %v4652 = vadd.f32 %v4593, %v4651
        %4653 = vmatmul.f32.gmra.mxu0 %v4573
        %v4654 = vpop.f32.mrf.mxu0
        %v4655 = vadd.f32 %v4593, %v4654
        %4656 = vmatmul.f32.gmra.mxu0 %v4574
        %v4657 = vpop.f32.mrf.mxu0
        %v4658 = vadd.f32 %v4593, %v4657
        %4659 = vdwg.mxu0
        %v4660 = vadd.f32 %v4510, %v4613
        %v4661 = vadd.f32 %v4513, %v4616
        %v4662 = vadd.f32 %v4516, %v4619
        %v4663 = vadd.f32 %v4519, %v4622
        %v4664 = vadd.f32 %v4522, %v4625
        %v4665 = vadd.f32 %v4525, %v4628
        %v4666 = vadd.f32 %v4528, %v4631
        %v4667 = vadd.f32 %v4531, %v4634
        %v4668 = vadd.f32 %v4534, %v4637
        %v4669 = vadd.f32 %v4537, %v4640
        %v4670 = vadd.f32 %v4540, %v4643
        %v4671 = vadd.f32 %v4543, %v4646
        %v4672 = vadd.f32 %v4546, %v4649
        %v4673 = vadd.f32 %v4549, %v4652
        %v4674 = vadd.f32 %v4552, %v4655
        %v4675 = vadd.f32 %v4555, %v4658
        %4676 = vst [vmem:[%s563] sm:$0xff] %v4660
        %4677 = vst [vmem:[%s563 + $0x8] sm:$0xff] %v4661
        %4678 = vst [vmem:[%s563 + $0x10] sm:$0xff] %v4662
        %4679 = vst [vmem:[%s563 + $0x18] sm:$0xff] %v4663
        %4680 = vst [vmem:[%s563 + $0x20] sm:$0xff] %v4664
        %4681 = vst [vmem:[%s563 + $0x28] sm:$0xff] %v4665
        %4682 = vst [vmem:[%s563 + $0x30] sm:$0xff] %v4666
        %4683 = vst [vmem:[%s563 + $0x38] sm:$0xff] %v4667
        %4684 = vst [vmem:[%s563 + $0x40] sm:$0xff] %v4668
        %4685 = vst [vmem:[%s563 + $0x48] sm:$0xff] %v4669
        %4686 = vst [vmem:[%s563 + $0x50] sm:$0xff] %v4670
        %4687 = vst [vmem:[%s563 + $0x58] sm:$0xff] %v4671
        %4688 = vst [vmem:[%s563 + $0x60] sm:$0xff] %v4672
        %4689 = vst [vmem:[%s563 + $0x68] sm:$0xff] %v4673
        %4690 = vst [vmem:[%s563 + $0x70] sm:$0xff] %v4674
        %4691 = vst [vmem:[%s563 + $0x78] sm:$0xff] %v4675
        %s4692 = sand.u32 %s312, 1
        %s4693 = scalar_lea.sflag [#allocation7], %s4692
        %s4694 = sand.u32 %s312, 1
        %s4695 = smul.addr %s4694, 128
        %s4696 = scalar_lea.vmem [#allocation19], %s4695
        // Predicated region
        $region101: #{tpu_custom_call.1} parent=67 // pred_check
          %p4697 = pneg %p322
        $region102: #{tpu_custom_call.1} parent=67 // pred_check_branch
          %4699 = sbr.rel (%p4697) target = $region104
        $region103: #{tpu_custom_call.1} parent=67 // pred_region
          %s4700 = smul.u32 16, %s38
          %4702 = vsyncadd %s4693, 0
          %s4703 = smul.addr %s37, 32
          %s4704 = sadd.s32 %s4700, %s4703
          %s4705 = smul.addr %s4704, 8
          %s4706 = scalar_lea.hbm %s12, %s4705
          %s4707 = sshll.u32 %s4696, 4
          %s4708 = int_to_ptr.vmem [resolvable:$true] %s4707
          %s4709 = sshll.u32 %s4706, 4
          %s4710 = int_to_ptr.hbm [resolvable:$true] %s4709
          %4715 = dma.vmem_to_hbm [thread:$0]  %s4708, 2048, %s4710, %s4693, 128, 128, 8
        $region104: #{tpu_custom_call.1} parent=67 // pred_fallthru
          _
      $region68: #{tpu_custom_call.1} parent=5 // pred_fallthru
        _
      %p4716 = scmp.le.s32.totalorder 2, %s28
      // Predicated region
      $region105: #{tpu_custom_call.1} parent=5 // pred_check
        %p4717 = pneg %p4716
      $region106: #{tpu_custom_call.1} parent=5 // pred_check_branch
        %4719 = sbr.rel (%p4717) target = $region108
      $region107: #{tpu_custom_call.1} parent=5 // pred_region
        %s4720 = ssub.s32 %s28, 2
        // Predicated region
        $region109: #{tpu_custom_call.1} parent=107 // pred_check
          %p4721 = pneg %p328
        $region110: #{tpu_custom_call.1} parent=107 // pred_check_branch
          %4723 = sbr.rel (%p4721) target = $region112
        $region111: #{tpu_custom_call.1} parent=107 // pred_region
          %s4724 = sand.u32 %s313, 1
          %s4725 = scalar_lea.sflag [#allocation7], %s4724
          %s4726 = sand.u32 %s313, 1
          %s4727 = smul.addr %s4726, 128
          %s4728 = scalar_lea.vmem [#allocation19], %s4727
          %4730 = dma.done %s4725, 2048
        $region112: #{tpu_custom_call.1} parent=107 // pred_fallthru
          _
      $region108: #{tpu_custom_call.1} parent=5 // pred_fallthru
        _
    $region6: #{tpu_custom_call.1} parent=1 // loop_footer
      %s32 = sadd.s32 1, %s28
    $region7: #{tpu_custom_call.1} parent=1 // loop_footer_branch
      %27 = sbr.rel target = $region3
    $region8: #{tpu_custom_call.1} parent=1 // loop_exit
      _
    %4731 = vsyncpa [#allocation6], 1
    %s4732 = scalar_lea.sflag [#allocation6], 1
    %4733 = vsyncpa %s4732, 1
    %4734 = vsyncpa [#allocation9], 1
    %4735 = vsyncpa [#allocation12], 1
    %4736 = vsyncpa [#allocation15], 1
    %4737 = vsyncpa [#allocation18], 1
    %4738 = vsyncpa [#allocation7], 1
    %s4739 = scalar_lea.sflag [#allocation7], 1
    %4740 = vsyncpa %s4739, 1

</llo_original>
